<compile_context>
chip_gen: v7x
topology: tpu7x:2x2x1
jax: 0.10.0
libtpu: 0.0.40
codegen_flags: <defaults>
</compile_context>

<pallas_src>
import math
import jax
import jax.numpy as jnp
from jax import lax
from jax.experimental import pallas as pl
from jax.experimental.pallas import tpu as pltpu

IN_LANES = 128    # lane padding for the (tiny) raw input feature dim
OUT_LANES = 128   # lane-dense output width; real output lives in column 0


# ----------------------------------------------------------------------------
# Fused Pallas kernel: encoder LSTM x2 + decoder LSTM x2 + output Linear
# ----------------------------------------------------------------------------
def fused_autoencoder_kernel(
        x_ref,                                   # [T, IN_LANES] padded input
        wih1_ref, whh1_ref, b1_ref,              # enc LSTM1 (n_features -> 2E)
        wih2_ref, whh2_ref, b2_ref,              # enc LSTM2 (2E -> E)
        wih3_ref, whh3_ref, b3_ref,              # dec LSTM1 (E -> E)
        wih4_ref, whh4_ref, b4_ref,              # dec LSTM2 (E -> 2E)
        wo_ref, bo_ref,                          # output Linear (2E -> 1), lane-dense
        y_ref,                                   # [T, OUT_LANES] lane-dense output
        xp1_ref, xp2_ref, xp4_ref,               # hoisted input projections
        h1_ref, d1_ref, d2_ref):                 # hidden sequences (true width)
    T = x_ref.shape[0]
    unroll = True if T <= 16 else 8

    def run_lstm(whh_ref, get_xrow, seq_ref):
        """One LSTM layer.  get_xrow(t) returns the precomputed input
        projection (x_t @ W_ih + b) for step t, shape [1, 4H]; the recurrence
        only carries the h @ W_hh matmul (true-width gates, N = 4H)."""
        H, G = whh_ref.shape                      # G == 4 * H
        whh = whh_ref[...]                        # hoist weight load out of loop
        lane = lax.broadcasted_iota(jnp.int32, (1, G), 1)
        g_mask = (lane >= 2 * H) & (lane < 3 * H)  # tanh lanes (g gate)

        def step(t, carry):
            h, c = carry
            gates = get_xrow(t) + jnp.dot(
                h, whh, preferred_element_type=jnp.float32)     # [1, G]
            # Whole-vector nonlinearities + static-mask blend (2 EUP pushes).
            sig = jax.nn.sigmoid(gates)
            th = jnp.tanh(gates)
            act = jnp.where(g_mask, th, sig)
            i_g = act[:, 0:H]
            f_g = act[:, H:2 * H]
            g_g = act[:, 2 * H:3 * H]
            o_g = act[:, 3 * H:4 * H]
            c_new = f_g * c + i_g * g_g
            h_new = o_g * jnp.tanh(c_new)
            if seq_ref is not None:
                seq_ref[pl.ds(t, 1), :] = h_new
            return (h_new, c_new)

        init = (jnp.zeros((1, H), jnp.float32),
                jnp.zeros((1, H), jnp.float32))
        return lax.fori_loop(0, T, step, init, unroll=unroll)

    # --- Encoder LSTM 1: whole-sequence input projection hoisted out of loop.
    xp1_ref[...] = jnp.dot(x_ref[...], wih1_ref[...],
                           preferred_element_type=jnp.float32) + b1_ref[...]
    run_lstm(whh1_ref, lambda t: xp1_ref[pl.ds(t, 1), :], h1_ref)

    # --- Encoder LSTM 2: only the final hidden state (z) is consumed -> no
    #     per-step sequence stores at all.
    xp2_ref[...] = jnp.dot(h1_ref[...], wih2_ref[...],
                           preferred_element_type=jnp.float32) + b2_ref[...]
    z, _ = run_lstm(whh2_ref, lambda t: xp2_ref[pl.ds(t, 1), :], None)  # [1, E]

    # --- Decoder LSTM 1: input is the constant z at every step -> one
    #     projection, reused every step.
    zproj = jnp.dot(z, wih3_ref[...],
                    preferred_element_type=jnp.float32) + b3_ref[...]   # [1, 4E]
    run_lstm(whh3_ref, lambda t: zproj, d1_ref)

    # --- Decoder LSTM 2.
    xp4_ref[...] = jnp.dot(d1_ref[...], wih4_ref[...],
                           preferred_element_type=jnp.float32) + b4_ref[...]
    run_lstm(whh4_ref, lambda t: xp4_ref[pl.ds(t, 1), :], d2_ref)

    # --- Final Linear fused as epilogue; lane-dense [T, OUT_LANES] writeback
    #     (real result in column 0, remaining columns zero).
    y_ref[...] = jnp.dot(d2_ref[...], wo_ref[...],
                         preferred_element_type=jnp.float32) + bo_ref[...]


# ----------------------------------------------------------------------------
# Wrapper
# ----------------------------------------------------------------------------
def recurrent_autoencoder_forward(packed, x, seq_len, n_features, embedding_dim):
    T = seq_len
    E = embedding_dim
    xe = x.reshape(T, n_features).astype(jnp.float32)
    x_pad = jnp.zeros((T, IN_LANES), jnp.float32).at[:, :n_features].set(xe)

    in_specs = [pl.BlockSpec(memory_space=pltpu.MemorySpace.VMEM)
                for _ in range(15)]
    out_spec = pl.BlockSpec(memory_space=pltpu.MemorySpace.VMEM)

    scratch_shapes = [
        pltpu.VMEM((T, 8 * E), jnp.float32),   # xp1: enc1 hoisted projections
        pltpu.VMEM((T, 4 * E), jnp.float32),   # xp2: enc2 hoisted projections
        pltpu.VMEM((T, 8 * E), jnp.float32),   # xp4: dec2 hoisted projections
        pltpu.VMEM((T, 2 * E), jnp.float32),   # enc1 hidden sequence
        pltpu.VMEM((T, E), jnp.float32),       # dec1 hidden sequence
        pltpu.VMEM((T, 2 * E), jnp.float32),   # dec2 hidden sequence
    ]

    # Explicit VMEM budget: T-proportional scratch (~6 KB/step incl. lane
    # padding) + padded input/output + weights, with headroom; capped below
    # v7x's 64 MiB physical VMEM.
    est = T * 8 * 1024 + 4 * 1024 * 1024
    vmem_limit = int(min(64 * 1024 * 1024, max(16 * 1024 * 1024, est)))

    y = pl.pallas_call(
        fused_autoencoder_kernel,
        out_shape=jax.ShapeDtypeStruct((T, OUT_LANES), jnp.float32),
        in_specs=in_specs,
        out_specs=out_spec,
        scratch_shapes=scratch_shapes,
        compiler_params=pltpu.CompilerParams(vmem_limit_bytes=vmem_limit),
    )(x_pad,
      *packed["enc1"], *packed["enc2"],
      *packed["dec1"], *packed["dec2"],
      *packed["out"])
    return y[:, :n_features]


# ----------------------------------------------------------------------------
# Parameter construction (PyTorch-style uniform init) + kernel repacking
# ----------------------------------------------------------------------------
def init_lstm_raw(key, input_dim, hidden_dim):
    k = 1.0 / math.sqrt(hidden_dim)
    k1, k2, k3, k4 = jax.random.split(key, 4)
    w_ih = jax.random.uniform(k1, (4 * hidden_dim, input_dim), jnp.float32, -k, k)
    w_hh = jax.random.uniform(k2, (4 * hidden_dim, hidden_dim), jnp.float32, -k, k)
    b_ih = jax.random.uniform(k3, (4 * hidden_dim,), jnp.float32, -k, k)
    b_hh = jax.random.uniform(k4, (4 * hidden_dim,), jnp.float32, -k, k)
    return (w_ih, w_hh, b_ih, b_hh)


def init_linear_raw(key, in_dim, out_dim):
    k = 1.0 / math.sqrt(in_dim)
    k1, k2 = jax.random.split(key)
    w = jax.random.uniform(k1, (out_dim, in_dim), jnp.float32, -k, k)
    b = jax.random.uniform(k2, (out_dim,), jnp.float32, -k, k)
    return (w, b)


def pack_lstm(w_ih, w_hh, b_ih, b_hh, in_pad=None):
    """Repack PyTorch-layout LSTM weights (gate order i,f,g,o stacked in dim 0)
    into transposed, true-width (GATES = 4*H) kernel layout.  Only the input
    dimension of the first layer is zero-padded (to IN_LANES)."""
    four_h, din = w_ih.shape
    wih_t = jnp.asarray(w_ih, jnp.float32).T            # [din, 4H]
    if in_pad is not None and in_pad != din:
        wih_p = jnp.zeros((in_pad, four_h), jnp.float32).at[:din, :].set(wih_t)
    else:
        wih_p = wih_t
    whh_p = jnp.asarray(w_hh, jnp.float32).T             # [H, 4H]
    b_p = (b_ih + b_hh).astype(jnp.float32).reshape(1, four_h)
    return (wih_p, whh_p, b_p)


def pack_linear(w, b, out_pad):
    """Lane-dense output packing: real output columns first, rest zero."""
    out_dim, din = w.shape
    w_p = jnp.zeros((din, out_pad), jnp.float32).at[:, :out_dim].set(
        jnp.asarray(w, jnp.float32).T)
    b_p = jnp.zeros((1, out_pad), jnp.float32).at[0, :out_dim].set(
        jnp.asarray(b, jnp.float32))
    return (w_p, b_p)


def init_recurrent_autoencoder(key, n_features, embedding_dim):
    assert n_features == 1, "original PyTorch module only works for n_features=1"
    E = embedding_dim
    ks = jax.random.split(key, 5)
    raw = {
        "enc1": init_lstm_raw(ks[0], n_features, 2 * E),
        "enc2": init_lstm_raw(ks[1], 2 * E, E),
        "dec1": init_lstm_raw(ks[2], E, E),
        "dec2": init_lstm_raw(ks[3], E, 2 * E),
        "out": init_linear_raw(ks[4], 2 * E, n_features),
    }
    packed = {
        "enc1": pack_lstm(*raw["enc1"], in_pad=IN_LANES),
        "enc2": pack_lstm(*raw["enc2"]),
        "dec1": pack_lstm(*raw["dec1"]),
        "dec2": pack_lstm(*raw["dec2"]),
        "out": pack_linear(*raw["out"], out_pad=OUT_LANES),
    }
    return raw, packed


# ----------------------------------------------------------------------------
# Pure-JAX reference (PyTorch semantics) for correctness checking
# ----------------------------------------------------------------------------
def _lstm_ref(x_seq, w_ih, w_hh, b_ih, b_hh):
    H = w_hh.shape[1]
    b = b_ih + b_hh
    prec = lax.Precision.HIGHEST

    def step(carry, x_t):
        h, c = carry
        gates = (jnp.dot(w_ih, x_t, precision=prec)
                 + jnp.dot(w_hh, h, precision=prec) + b)
        i_g, f_g, g_g, o_g = jnp.split(gates, 4)
        i_g = jax.nn.sigmoid(i_g)
        f_g = jax.nn.sigmoid(f_g)
        g_g = jnp.tanh(g_g)
        o_g = jax.nn.sigmoid(o_g)
        c_new = f_g * c + i_g * g_g
        h_new = o_g * jnp.tanh(c_new)
        return (h_new, c_new), h_new

    init = (jnp.zeros((H,), jnp.float32), jnp.zeros((H,), jnp.float32))
    (h_n, _), ys = lax.scan(step, init, x_seq)
    return ys, h_n


def reference_forward(raw, x, seq_len, n_features):
    xe = x.reshape(seq_len, n_features).astype(jnp.float32)
    h1, _ = _lstm_ref(xe, *raw["enc1"])
    _, z = _lstm_ref(h1, *raw["enc2"])
    xd = jnp.tile(z[None, :], (seq_len, 1))
    d1, _ = _lstm_ref(xd, *raw["dec1"])
    d2, _ = _lstm_ref(d1, *raw["dec2"])
    w, b = raw["out"]
    return jnp.dot(d2, w.T, precision=lax.Precision.HIGHEST) + b


# ----------------------------------------------------------------------------
if __name__ == "__main__":
    seq_len = 8
    n_features = 1
    embedding_dim = 32

    key = jax.random.PRNGKey(0)
    k_param, k_data = jax.random.split(key)

    raw_params, packed_params = init_recurrent_autoencoder(
        k_param, n_features, embedding_dim)
    x = jax.random.normal(k_data, (seq_len, n_features), dtype=jnp.float32)

    fwd = jax.jit(lambda p, xx: recurrent_autoencoder_forward(
        p, xx, seq_len, n_features, embedding_dim))
    y = fwd(packed_params, x)
    jax.block_until_ready(y)

    assert y.shape == (seq_len, n_features), y.shape
    assert bool(jnp.all(jnp.isfinite(y)))

    y_ref = reference_forward(raw_params, x, seq_len, n_features)
    max_err = float(jnp.max(jnp.abs(y - y_ref)))
    assert max_err < 1e-3, f"kernel vs reference mismatch: max|diff|={max_err}"

    print("KERNEL_OK")
</pallas_src>

<mosaic_0001>
module attributes {stable_mosaic.version = 11 : i64} {
  func.func @fused_autoencoder_kernel(%arg0: memref<8x128xf32, #tpu.memory_space<vmem>>, %arg1: memref<128x256xf32, #tpu.memory_space<vmem>>, %arg2: memref<64x256xf32, #tpu.memory_space<vmem>>, %arg3: memref<1x256xf32, #tpu.memory_space<vmem>>, %arg4: memref<64x128xf32, #tpu.memory_space<vmem>>, %arg5: memref<32x128xf32, #tpu.memory_space<vmem>>, %arg6: memref<1x128xf32, #tpu.memory_space<vmem>>, %arg7: memref<32x128xf32, #tpu.memory_space<vmem>>, %arg8: memref<32x128xf32, #tpu.memory_space<vmem>>, %arg9: memref<1x128xf32, #tpu.memory_space<vmem>>, %arg10: memref<32x256xf32, #tpu.memory_space<vmem>>, %arg11: memref<64x256xf32, #tpu.memory_space<vmem>>, %arg12: memref<1x256xf32, #tpu.memory_space<vmem>>, %arg13: memref<64x128xf32, #tpu.memory_space<vmem>>, %arg14: memref<1x128xf32, #tpu.memory_space<vmem>>, %arg15: memref<8x128xf32, #tpu.memory_space<vmem>>, %arg16: memref<8x256xf32, #tpu.memory_space<vmem>>, %arg17: memref<8x128xf32, #tpu.memory_space<vmem>>, %arg18: memref<8x256xf32, #tpu.memory_space<vmem>>, %arg19: memref<8x64xf32, #tpu.memory_space<vmem>>, %arg20: memref<8x32xf32, #tpu.memory_space<vmem>>, %arg21: memref<8x64xf32, #tpu.memory_space<vmem>>) attributes {dimension_semantics = [], scalar_prefetch = 0 : i64, scratch_operands = 6 : i64, tpu.core_type = #tpu.core_type<tc>} {
    %c0 = arith.constant 0 : index
    %c0_0 = arith.constant 0 : index
    %0 = vector.load %arg0[%c0, %c0_0] : memref<8x128xf32, #tpu.memory_space<vmem>>, vector<8x128xf32>
    %c0_1 = arith.constant 0 : index
    %c0_2 = arith.constant 0 : index
    %1 = vector.load %arg1[%c0_1, %c0_2] : memref<128x256xf32, #tpu.memory_space<vmem>>, vector<128x256xf32>
    %cst = arith.constant dense<0.000000e+00> : vector<8x256xf32>
    %2 = tpu.matmul %0, %1, %cst {dimension_numbers = #tpu.dot_dimension_numbers<[1], [0], [0], [1], [0, 0, 1, 1], [], []>} : vector<8x128xf32>, vector<128x256xf32>, vector<8x256xf32> -> vector<8x256xf32>
    %c0_3 = arith.constant 0 : index
    %c0_4 = arith.constant 0 : index
    %3 = vector.load %arg3[%c0_3, %c0_4] : memref<1x256xf32, #tpu.memory_space<vmem>>, vector<1x256xf32>
    %4 = vector.broadcast %3 : vector<1x256xf32> to vector<8x256xf32>
    %5 = arith.addf %2, %4 : vector<8x256xf32>
    %c0_5 = arith.constant 0 : index
    %c0_6 = arith.constant 0 : index
    %6 = vector.load %arg16[%c0_5, %c0_6] : memref<8x256xf32, #tpu.memory_space<vmem>>, vector<8x256xf32>
    tpu.vector_store %arg16[%c0_5, %c0_6], %5 {strides = array<i32>} : memref<8x256xf32, #tpu.memory_space<vmem>>, vector<8x256xf32>,
    %c0_7 = arith.constant 0 : index
    %c0_8 = arith.constant 0 : index
    %7 = vector.load %arg2[%c0_7, %c0_8] : memref<64x256xf32, #tpu.memory_space<vmem>>, vector<64x256xf32>
    %8 = tpu.iota {dimensions = array<i32: 1>} : vector<1x256xi32>
    %c128_i32 = arith.constant 128 : i32
    %9 = vector.broadcast %c128_i32 : i32 to vector<1x256xi32>
    %10 = arith.cmpi sge, %8, %9 : vector<1x256xi32>
    %c192_i32 = arith.constant 192 : i32
    %11 = vector.broadcast %c192_i32 : i32 to vector<1x256xi32>
    %12 = arith.cmpi slt, %8, %11 : vector<1x256xi32>
    %13 = arith.andi %10, %12 : vector<1x256xi1>
    %cst_9 = arith.constant 0.000000e+00 : f32
    %14 = vector.broadcast %cst_9 : f32 to vector<1x64xf32>
    %cst_10 = arith.constant 0.000000e+00 : f32
    %15 = vector.broadcast %cst_10 : f32 to vector<1x64xf32>
    %c0_i32 = arith.constant 0 : i32
    %16 = arith.index_cast %c0_i32 : i32 to index
    %c0_11 = arith.constant 0 : index
    %17 = vector.load %arg16[%16, %c0_11] : memref<8x256xf32, #tpu.memory_space<vmem>>, vector<1x256xf32>
    %cst_12 = arith.constant dense<0.000000e+00> : vector<1x256xf32>
    %18 = tpu.matmul %14, %7, %cst_12 {dimension_numbers = #tpu.dot_dimension_numbers<[1], [0], [0], [1], [0, 0, 1, 1], [], []>} : vector<1x64xf32>, vector<64x256xf32>, vector<1x256xf32> -> vector<1x256xf32>
    %19 = arith.addf %17, %18 : vector<1x256xf32>
    %20 = arith.negf %19 : vector<1x256xf32>
    %21 = math.exp %20 : vector<1x256xf32>
    %cst_13 = arith.constant 1.000000e+00 : f32
    %22 = vector.broadcast %cst_13 : f32 to vector<1x256xf32>
    %23 = arith.addf %22, %21 : vector<1x256xf32>
    %24 = arith.divf %22, %23 : vector<1x256xf32>
    %25 = math.tanh %19 : vector<1x256xf32>
    %26 = arith.select %13, %25, %24 : vector<1x256xi1>, vector<1x256xf32>
    %27 = vector.extract_strided_slice %26 {offsets = [0, 0], sizes = [1, 64], strides = [1, 1]} : vector<1x256xf32> to vector<1x64xf32>
    %28 = vector.extract_strided_slice %26 {offsets = [0, 64], sizes = [1, 64], strides = [1, 1]} : vector<1x256xf32> to vector<1x64xf32>
    %29 = vector.extract_strided_slice %26 {offsets = [0, 128], sizes = [1, 64], strides = [1, 1]} : vector<1x256xf32> to vector<1x64xf32>
    %30 = vector.extract_strided_slice %26 {offsets = [0, 192], sizes = [1, 64], strides = [1, 1]} : vector<1x256xf32> to vector<1x64xf32>
    %31 = arith.mulf %28, %15 : vector<1x64xf32>
    %32 = arith.mulf %27, %29 : vector<1x64xf32>
    %33 = arith.addf %31, %32 : vector<1x64xf32>
    %34 = math.tanh %33 : vector<1x64xf32>
    %35 = arith.mulf %30, %34 : vector<1x64xf32>
    %36 = arith.index_cast %c0_i32 : i32 to index
    %c0_14 = arith.constant 0 : index
    %37 = vector.load %arg19[%36, %c0_14] : memref<8x64xf32, #tpu.memory_space<vmem>>, vector<1x64xf32>
    tpu.vector_store %arg19[%36, %c0_14], %35 {strides = array<i32>} : memref<8x64xf32, #tpu.memory_space<vmem>>, vector<1x64xf32>,
    %c1_i32 = arith.constant 1 : i32
    %38 = arith.index_cast %c1_i32 : i32 to index
    %c0_15 = arith.constant 0 : index
    %39 = vector.load %arg16[%38, %c0_15] : memref<8x256xf32, #tpu.memory_space<vmem>>, vector<1x256xf32>
    %cst_16 = arith.constant dense<0.000000e+00> : vector<1x256xf32>
    %40 = tpu.matmul %35, %7, %cst_16 {dimension_numbers = #tpu.dot_dimension_numbers<[1], [0], [0], [1], [0, 0, 1, 1], [], []>} : vector<1x64xf32>, vector<64x256xf32>, vector<1x256xf32> -> vector<1x256xf32>
    %41 = arith.addf %39, %40 : vector<1x256xf32>
    %42 = arith.negf %41 : vector<1x256xf32>
    %43 = math.exp %42 : vector<1x256xf32>
    %cst_17 = arith.constant 1.000000e+00 : f32
    %44 = vector.broadcast %cst_17 : f32 to vector<1x256xf32>
    %45 = arith.addf %44, %43 : vector<1x256xf32>
    %46 = arith.divf %44, %45 : vector<1x256xf32>
    %47 = math.tanh %41 : vector<1x256xf32>
    %48 = arith.select %13, %47, %46 : vector<1x256xi1>, vector<1x256xf32>
    %49 = vector.extract_strided_slice %48 {offsets = [0, 0], sizes = [1, 64], strides = [1, 1]} : vector<1x256xf32> to vector<1x64xf32>
    %50 = vector.extract_strided_slice %48 {offsets = [0, 64], sizes = [1, 64], strides = [1, 1]} : vector<1x256xf32> to vector<1x64xf32>
    %51 = vector.extract_strided_slice %48 {offsets = [0, 128], sizes = [1, 64], strides = [1, 1]} : vector<1x256xf32> to vector<1x64xf32>
    %52 = vector.extract_strided_slice %48 {offsets = [0, 192], sizes = [1, 64], strides = [1, 1]} : vector<1x256xf32> to vector<1x64xf32>
    %53 = arith.mulf %50, %33 : vector<1x64xf32>
    %54 = arith.mulf %49, %51 : vector<1x64xf32>
    %55 = arith.addf %53, %54 : vector<1x64xf32>
    %56 = math.tanh %55 : vector<1x64xf32>
    %57 = arith.mulf %52, %56 : vector<1x64xf32>
    %58 = arith.index_cast %c1_i32 : i32 to index
    %c0_18 = arith.constant 0 : index
    %59 = vector.load %arg19[%58, %c0_18] : memref<8x64xf32, #tpu.memory_space<vmem>>, vector<1x64xf32>
    tpu.vector_store %arg19[%58, %c0_18], %57 {strides = array<i32>} : memref<8x64xf32, #tpu.memory_space<vmem>>, vector<1x64xf32>,
    %c2_i32 = arith.constant 2 : i32
    %60 = arith.index_cast %c2_i32 : i32 to index
    %c0_19 = arith.constant 0 : index
    %61 = vector.load %arg16[%60, %c0_19] : memref<8x256xf32, #tpu.memory_space<vmem>>, vector<1x256xf32>
    %cst_20 = arith.constant dense<0.000000e+00> : vector<1x256xf32>
    %62 = tpu.matmul %57, %7, %cst_20 {dimension_numbers = #tpu.dot_dimension_numbers<[1], [0], [0], [1], [0, 0, 1, 1], [], []>} : vector<1x64xf32>, vector<64x256xf32>, vector<1x256xf32> -> vector<1x256xf32>
    %63 = arith.addf %61, %62 : vector<1x256xf32>
    %64 = arith.negf %63 : vector<1x256xf32>
    %65 = math.exp %64 : vector<1x256xf32>
    %cst_21 = arith.constant 1.000000e+00 : f32
    %66 = vector.broadcast %cst_21 : f32 to vector<1x256xf32>
    %67 = arith.addf %66, %65 : vector<1x256xf32>
    %68 = arith.divf %66, %67 : vector<1x256xf32>
    %69 = math.tanh %63 : vector<1x256xf32>
    %70 = arith.select %13, %69, %68 : vector<1x256xi1>, vector<1x256xf32>
    %71 = vector.extract_strided_slice %70 {offsets = [0, 0], sizes = [1, 64], strides = [1, 1]} : vector<1x256xf32> to vector<1x64xf32>
    %72 = vector.extract_strided_slice %70 {offsets = [0, 64], sizes = [1, 64], strides = [1, 1]} : vector<1x256xf32> to vector<1x64xf32>
    %73 = vector.extract_strided_slice %70 {offsets = [0, 128], sizes = [1, 64], strides = [1, 1]} : vector<1x256xf32> to vector<1x64xf32>
    %74 = vector.extract_strided_slice %70 {offsets = [0, 192], sizes = [1, 64], strides = [1, 1]} : vector<1x256xf32> to vector<1x64xf32>
    %75 = arith.mulf %72, %55 : vector<1x64xf32>
    %76 = arith.mulf %71, %73 : vector<1x64xf32>
    %77 = arith.addf %75, %76 : vector<1x64xf32>
    %78 = math.tanh %77 : vector<1x64xf32>
    %79 = arith.mulf %74, %78 : vector<1x64xf32>
    %80 = arith.index_cast %c2_i32 : i32 to index
    %c0_22 = arith.constant 0 : index
    %81 = vector.load %arg19[%80, %c0_22] : memref<8x64xf32, #tpu.memory_space<vmem>>, vector<1x64xf32>
    tpu.vector_store %arg19[%80, %c0_22], %79 {strides = array<i32>} : memref<8x64xf32, #tpu.memory_space<vmem>>, vector<1x64xf32>,
    %c3_i32 = arith.constant 3 : i32
    %82 = arith.index_cast %c3_i32 : i32 to index
    %c0_23 = arith.constant 0 : index
    %83 = vector.load %arg16[%82, %c0_23] : memref<8x256xf32, #tpu.memory_space<vmem>>, vector<1x256xf32>
    %cst_24 = arith.constant dense<0.000000e+00> : vector<1x256xf32>
    %84 = tpu.matmul %79, %7, %cst_24 {dimension_numbers = #tpu.dot_dimension_numbers<[1], [0], [0], [1], [0, 0, 1, 1], [], []>} : vector<1x64xf32>, vector<64x256xf32>, vector<1x256xf32> -> vector<1x256xf32>
    %85 = arith.addf %83, %84 : vector<1x256xf32>
    %86 = arith.negf %85 : vector<1x256xf32>
    %87 = math.exp %86 : vector<1x256xf32>
    %cst_25 = arith.constant 1.000000e+00 : f32
    %88 = vector.broadcast %cst_25 : f32 to vector<1x256xf32>
    %89 = arith.addf %88, %87 : vector<1x256xf32>
    %90 = arith.divf %88, %89 : vector<1x256xf32>
    %91 = math.tanh %85 : vector<1x256xf32>
    %92 = arith.select %13, %91, %90 : vector<1x256xi1>, vector<1x256xf32>
    %93 = vector.extract_strided_slice %92 {offsets = [0, 0], sizes = [1, 64], strides = [1, 1]} : vector<1x256xf32> to vector<1x64xf32>
    %94 = vector.extract_strided_slice %92 {offsets = [0, 64], sizes = [1, 64], strides = [1, 1]} : vector<1x256xf32> to vector<1x64xf32>
    %95 = vector.extract_strided_slice %92 {offsets = [0, 128], sizes = [1, 64], strides = [1, 1]} : vector<1x256xf32> to vector<1x64xf32>
    %96 = vector.extract_strided_slice %92 {offsets = [0, 192], sizes = [1, 64], strides = [1, 1]} : vector<1x256xf32> to vector<1x64xf32>
    %97 = arith.mulf %94, %77 : vector<1x64xf32>
    %98 = arith.mulf %93, %95 : vector<1x64xf32>
    %99 = arith.addf %97, %98 : vector<1x64xf32>
    %100 = math.tanh %99 : vector<1x64xf32>
    %101 = arith.mulf %96, %100 : vector<1x64xf32>
    %102 = arith.index_cast %c3_i32 : i32 to index
    %c0_26 = arith.constant 0 : index
    %103 = vector.load %arg19[%102, %c0_26] : memref<8x64xf32, #tpu.memory_space<vmem>>, vector<1x64xf32>
    tpu.vector_store %arg19[%102, %c0_26], %101 {strides = array<i32>} : memref<8x64xf32, #tpu.memory_space<vmem>>, vector<1x64xf32>,
    %c4_i32 = arith.constant 4 : i32
    %104 = arith.index_cast %c4_i32 : i32 to index
    %c0_27 = arith.constant 0 : index
    %105 = vector.load %arg16[%104, %c0_27] : memref<8x256xf32, #tpu.memory_space<vmem>>, vector<1x256xf32>
    %cst_28 = arith.constant dense<0.000000e+00> : vector<1x256xf32>
    %106 = tpu.matmul %101, %7, %cst_28 {dimension_numbers = #tpu.dot_dimension_numbers<[1], [0], [0], [1], [0, 0, 1, 1], [], []>} : vector<1x64xf32>, vector<64x256xf32>, vector<1x256xf32> -> vector<1x256xf32>
    %107 = arith.addf %105, %106 : vector<1x256xf32>
    %108 = arith.negf %107 : vector<1x256xf32>
    %109 = math.exp %108 : vector<1x256xf32>
    %cst_29 = arith.constant 1.000000e+00 : f32
    %110 = vector.broadcast %cst_29 : f32 to vector<1x256xf32>
    %111 = arith.addf %110, %109 : vector<1x256xf32>
    %112 = arith.divf %110, %111 : vector<1x256xf32>
    %113 = math.tanh %107 : vector<1x256xf32>
    %114 = arith.select %13, %113, %112 : vector<1x256xi1>, vector<1x256xf32>
    %115 = vector.extract_strided_slice %114 {offsets = [0, 0], sizes = [1, 64], strides = [1, 1]} : vector<1x256xf32> to vector<1x64xf32>
    %116 = vector.extract_strided_slice %114 {offsets = [0, 64], sizes = [1, 64], strides = [1, 1]} : vector<1x256xf32> to vector<1x64xf32>
    %117 = vector.extract_strided_slice %114 {offsets = [0, 128], sizes = [1, 64], strides = [1, 1]} : vector<1x256xf32> to vector<1x64xf32>
    %118 = vector.extract_strided_slice %114 {offsets = [0, 192], sizes = [1, 64], strides = [1, 1]} : vector<1x256xf32> to vector<1x64xf32>
    %119 = arith.mulf %116, %99 : vector<1x64xf32>
    %120 = arith.mulf %115, %117 : vector<1x64xf32>
    %121 = arith.addf %119, %120 : vector<1x64xf32>
    %122 = math.tanh %121 : vector<1x64xf32>
    %123 = arith.mulf %118, %122 : vector<1x64xf32>
    %124 = arith.index_cast %c4_i32 : i32 to index
    %c0_30 = arith.constant 0 : index
    %125 = vector.load %arg19[%124, %c0_30] : memref<8x64xf32, #tpu.memory_space<vmem>>, vector<1x64xf32>
    tpu.vector_store %arg19[%124, %c0_30], %123 {strides = array<i32>} : memref<8x64xf32, #tpu.memory_space<vmem>>, vector<1x64xf32>,
    %c5_i32 = arith.constant 5 : i32
    %126 = arith.index_cast %c5_i32 : i32 to index
    %c0_31 = arith.constant 0 : index
    %127 = vector.load %arg16[%126, %c0_31] : memref<8x256xf32, #tpu.memory_space<vmem>>, vector<1x256xf32>
    %cst_32 = arith.constant dense<0.000000e+00> : vector<1x256xf32>
    %128 = tpu.matmul %123, %7, %cst_32 {dimension_numbers = #tpu.dot_dimension_numbers<[1], [0], [0], [1], [0, 0, 1, 1], [], []>} : vector<1x64xf32>, vector<64x256xf32>, vector<1x256xf32> -> vector<1x256xf32>
    %129 = arith.addf %127, %128 : vector<1x256xf32>
    %130 = arith.negf %129 : vector<1x256xf32>
    %131 = math.exp %130 : vector<1x256xf32>
    %cst_33 = arith.constant 1.000000e+00 : f32
    %132 = vector.broadcast %cst_33 : f32 to vector<1x256xf32>
    %133 = arith.addf %132, %131 : vector<1x256xf32>
    %134 = arith.divf %132, %133 : vector<1x256xf32>
    %135 = math.tanh %129 : vector<1x256xf32>
    %136 = arith.select %13, %135, %134 : vector<1x256xi1>, vector<1x256xf32>
    %137 = vector.extract_strided_slice %136 {offsets = [0, 0], sizes = [1, 64], strides = [1, 1]} : vector<1x256xf32> to vector<1x64xf32>
    %138 = vector.extract_strided_slice %136 {offsets = [0, 64], sizes = [1, 64], strides = [1, 1]} : vector<1x256xf32> to vector<1x64xf32>
    %139 = vector.extract_strided_slice %136 {offsets = [0, 128], sizes = [1, 64], strides = [1, 1]} : vector<1x256xf32> to vector<1x64xf32>
    %140 = vector.extract_strided_slice %136 {offsets = [0, 192], sizes = [1, 64], strides = [1, 1]} : vector<1x256xf32> to vector<1x64xf32>
    %141 = arith.mulf %138, %121 : vector<1x64xf32>
    %142 = arith.mulf %137, %139 : vector<1x64xf32>
    %143 = arith.addf %141, %142 : vector<1x64xf32>
    %144 = math.tanh %143 : vector<1x64xf32>
    %145 = arith.mulf %140, %144 : vector<1x64xf32>
    %146 = arith.index_cast %c5_i32 : i32 to index
    %c0_34 = arith.constant 0 : index
    %147 = vector.load %arg19[%146, %c0_34] : memref<8x64xf32, #tpu.memory_space<vmem>>, vector<1x64xf32>
    tpu.vector_store %arg19[%146, %c0_34], %145 {strides = array<i32>} : memref<8x64xf32, #tpu.memory_space<vmem>>, vector<1x64xf32>,
    %c6_i32 = arith.constant 6 : i32
    %148 = arith.index_cast %c6_i32 : i32 to index
    %c0_35 = arith.constant 0 : index
    %149 = vector.load %arg16[%148, %c0_35] : memref<8x256xf32, #tpu.memory_space<vmem>>, vector<1x256xf32>
    %cst_36 = arith.constant dense<0.000000e+00> : vector<1x256xf32>
    %150 = tpu.matmul %145, %7, %cst_36 {dimension_numbers = #tpu.dot_dimension_numbers<[1], [0], [0], [1], [0, 0, 1, 1], [], []>} : vector<1x64xf32>, vector<64x256xf32>, vector<1x256xf32> -> vector<1x256xf32>
    %151 = arith.addf %149, %150 : vector<1x256xf32>
    %152 = arith.negf %151 : vector<1x256xf32>
    %153 = math.exp %152 : vector<1x256xf32>
    %cst_37 = arith.constant 1.000000e+00 : f32
    %154 = vector.broadcast %cst_37 : f32 to vector<1x256xf32>
    %155 = arith.addf %154, %153 : vector<1x256xf32>
    %156 = arith.divf %154, %155 : vector<1x256xf32>
    %157 = math.tanh %151 : vector<1x256xf32>
    %158 = arith.select %13, %157, %156 : vector<1x256xi1>, vector<1x256xf32>
    %159 = vector.extract_strided_slice %158 {offsets = [0, 0], sizes = [1, 64], strides = [1, 1]} : vector<1x256xf32> to vector<1x64xf32>
    %160 = vector.extract_strided_slice %158 {offsets = [0, 64], sizes = [1, 64], strides = [1, 1]} : vector<1x256xf32> to vector<1x64xf32>
    %161 = vector.extract_strided_slice %158 {offsets = [0, 128], sizes = [1, 64], strides = [1, 1]} : vector<1x256xf32> to vector<1x64xf32>
    %162 = vector.extract_strided_slice %158 {offsets = [0, 192], sizes = [1, 64], strides = [1, 1]} : vector<1x256xf32> to vector<1x64xf32>
    %163 = arith.mulf %160, %143 : vector<1x64xf32>
    %164 = arith.mulf %159, %161 : vector<1x64xf32>
    %165 = arith.addf %163, %164 : vector<1x64xf32>
    %166 = math.tanh %165 : vector<1x64xf32>
    %167 = arith.mulf %162, %166 : vector<1x64xf32>
    %168 = arith.index_cast %c6_i32 : i32 to index
    %c0_38 = arith.constant 0 : index
    %169 = vector.load %arg19[%168, %c0_38] : memref<8x64xf32, #tpu.memory_space<vmem>>, vector<1x64xf32>
    tpu.vector_store %arg19[%168, %c0_38], %167 {strides = array<i32>} : memref<8x64xf32, #tpu.memory_space<vmem>>, vector<1x64xf32>,
    %c7_i32 = arith.constant 7 : i32
    %170 = arith.index_cast %c7_i32 : i32 to index
    %c0_39 = arith.constant 0 : index
    %171 = vector.load %arg16[%170, %c0_39] : memref<8x256xf32, #tpu.memory_space<vmem>>, vector<1x256xf32>
    %cst_40 = arith.constant dense<0.000000e+00> : vector<1x256xf32>
    %172 = tpu.matmul %167, %7, %cst_40 {dimension_numbers = #tpu.dot_dimension_numbers<[1], [0], [0], [1], [0, 0, 1, 1], [], []>} : vector<1x64xf32>, vector<64x256xf32>, vector<1x256xf32> -> vector<1x256xf32>
    %173 = arith.addf %171, %172 : vector<1x256xf32>
    %174 = arith.negf %173 : vector<1x256xf32>
    %175 = math.exp %174 : vector<1x256xf32>
    %cst_41 = arith.constant 1.000000e+00 : f32
    %176 = vector.broadcast %cst_41 : f32 to vector<1x256xf32>
    %177 = arith.addf %176, %175 : vector<1x256xf32>
    %178 = arith.divf %176, %177 : vector<1x256xf32>
    %179 = math.tanh %173 : vector<1x256xf32>
    %180 = arith.select %13, %179, %178 : vector<1x256xi1>, vector<1x256xf32>
    %181 = vector.extract_strided_slice %180 {offsets = [0, 0], sizes = [1, 64], strides = [1, 1]} : vector<1x256xf32> to vector<1x64xf32>
    %182 = vector.extract_strided_slice %180 {offsets = [0, 64], sizes = [1, 64], strides = [1, 1]} : vector<1x256xf32> to vector<1x64xf32>
    %183 = vector.extract_strided_slice %180 {offsets = [0, 128], sizes = [1, 64], strides = [1, 1]} : vector<1x256xf32> to vector<1x64xf32>
    %184 = vector.extract_strided_slice %180 {offsets = [0, 192], sizes = [1, 64], strides = [1, 1]} : vector<1x256xf32> to vector<1x64xf32>
    %185 = arith.mulf %182, %165 : vector<1x64xf32>
    %186 = arith.mulf %181, %183 : vector<1x64xf32>
    %187 = arith.addf %185, %186 : vector<1x64xf32>
    %188 = math.tanh %187 : vector<1x64xf32>
    %189 = arith.mulf %184, %188 : vector<1x64xf32>
    %190 = arith.index_cast %c7_i32 : i32 to index
    %c0_42 = arith.constant 0 : index
    %191 = vector.load %arg19[%190, %c0_42] : memref<8x64xf32, #tpu.memory_space<vmem>>, vector<1x64xf32>
    tpu.vector_store %arg19[%190, %c0_42], %189 {strides = array<i32>} : memref<8x64xf32, #tpu.memory_space<vmem>>, vector<1x64xf32>,
    %c8_i32 = arith.constant 8 : i32
    %c0_43 = arith.constant 0 : index
    %c0_44 = arith.constant 0 : index
    %192 = vector.load %arg19[%c0_43, %c0_44] : memref<8x64xf32, #tpu.memory_space<vmem>>, vector<8x64xf32>
    %c0_45 = arith.constant 0 : index
    %c0_46 = arith.constant 0 : index
    %193 = vector.load %arg4[%c0_45, %c0_46] : memref<64x128xf32, #tpu.memory_space<vmem>>, vector<64x128xf32>
    %cst_47 = arith.constant dense<0.000000e+00> : vector<8x128xf32>
    %194 = tpu.matmul %192, %193, %cst_47 {dimension_numbers = #tpu.dot_dimension_numbers<[1], [0], [0], [1], [0, 0, 1, 1], [], []>} : vector<8x64xf32>, vector<64x128xf32>, vector<8x128xf32> -> vector<8x128xf32>
    %c0_48 = arith.constant 0 : index
    %c0_49 = arith.constant 0 : index
    %195 = vector.load %arg6[%c0_48, %c0_49] : memref<1x128xf32, #tpu.memory_space<vmem>>, vector<1x128xf32>
    %196 = vector.broadcast %195 : vector<1x128xf32> to vector<8x128xf32>
    %197 = arith.addf %194, %196 : vector<8x128xf32>
    %c0_50 = arith.constant 0 : index
    %c0_51 = arith.constant 0 : index
    %198 = vector.load %arg17[%c0_50, %c0_51] : memref<8x128xf32, #tpu.memory_space<vmem>>, vector<8x128xf32>
    tpu.vector_store %arg17[%c0_50, %c0_51], %197 {strides = array<i32>} : memref<8x128xf32, #tpu.memory_space<vmem>>, vector<8x128xf32>,
    %c0_52 = arith.constant 0 : index
    %c0_53 = arith.constant 0 : index
    %199 = vector.load %arg5[%c0_52, %c0_53] : memref<32x128xf32, #tpu.memory_space<vmem>>, vector<32x128xf32>
    %200 = tpu.iota {dimensions = array<i32: 1>} : vector<1x128xi32>
    %c64_i32 = arith.constant 64 : i32
    %201 = vector.broadcast %c64_i32 : i32 to vector<1x128xi32>
    %202 = arith.cmpi sge, %200, %201 : vector<1x128xi32>
    %c96_i32 = arith.constant 96 : i32
    %203 = vector.broadcast %c96_i32 : i32 to vector<1x128xi32>
    %204 = arith.cmpi slt, %200, %203 : vector<1x128xi32>
    %205 = arith.andi %202, %204 : vector<1x128xi1>
    %cst_54 = arith.constant 0.000000e+00 : f32
    %206 = vector.broadcast %cst_54 : f32 to vector<1x32xf32>
    %cst_55 = arith.constant 0.000000e+00 : f32
    %207 = vector.broadcast %cst_55 : f32 to vector<1x32xf32>
    %c0_i32_56 = arith.constant 0 : i32
    %208 = arith.index_cast %c0_i32_56 : i32 to index
    %c0_57 = arith.constant 0 : index
    %209 = vector.load %arg17[%208, %c0_57] : memref<8x128xf32, #tpu.memory_space<vmem>>, vector<1x128xf32>
    %cst_58 = arith.constant dense<0.000000e+00> : vector<1x128xf32>
    %210 = tpu.matmul %206, %199, %cst_58 {dimension_numbers = #tpu.dot_dimension_numbers<[1], [0], [0], [1], [0, 0, 1, 1], [], []>} : vector<1x32xf32>, vector<32x128xf32>, vector<1x128xf32> -> vector<1x128xf32>
    %211 = arith.addf %209, %210 : vector<1x128xf32>
    %212 = arith.negf %211 : vector<1x128xf32>
    %213 = math.exp %212 : vector<1x128xf32>
    %cst_59 = arith.constant 1.000000e+00 : f32
    %214 = vector.broadcast %cst_59 : f32 to vector<1x128xf32>
    %215 = arith.addf %214, %213 : vector<1x128xf32>
    %216 = arith.divf %214, %215 : vector<1x128xf32>
    %217 = math.tanh %211 : vector<1x128xf32>
    %218 = arith.select %205, %217, %216 : vector<1x128xi1>, vector<1x128xf32>
    %219 = vector.extract_strided_slice %218 {offsets = [0, 0], sizes = [1, 32], strides = [1, 1]} : vector<1x128xf32> to vector<1x32xf32>
    %220 = vector.extract_strided_slice %218 {offsets = [0, 32], sizes = [1, 32], strides = [1, 1]} : vector<1x128xf32> to vector<1x32xf32>
    %221 = vector.extract_strided_slice %218 {offsets = [0, 64], sizes = [1, 32], strides = [1, 1]} : vector<1x128xf32> to vector<1x32xf32>
    %222 = vector.extract_strided_slice %218 {offsets = [0, 96], sizes = [1, 32], strides = [1, 1]} : vector<1x128xf32> to vector<1x32xf32>
    %223 = arith.mulf %220, %207 : vector<1x32xf32>
    %224 = arith.mulf %219, %221 : vector<1x32xf32>
    %225 = arith.addf %223, %224 : vector<1x32xf32>
    %226 = math.tanh %225 : vector<1x32xf32>
    %227 = arith.mulf %222, %226 : vector<1x32xf32>
    %c1_i32_60 = arith.constant 1 : i32
    %228 = arith.index_cast %c1_i32_60 : i32 to index
    %c0_61 = arith.constant 0 : index
    %229 = vector.load %arg17[%228, %c0_61] : memref<8x128xf32, #tpu.memory_space<vmem>>, vector<1x128xf32>
    %cst_62 = arith.constant dense<0.000000e+00> : vector<1x128xf32>
    %230 = tpu.matmul %227, %199, %cst_62 {dimension_numbers = #tpu.dot_dimension_numbers<[1], [0], [0], [1], [0, 0, 1, 1], [], []>} : vector<1x32xf32>, vector<32x128xf32>, vector<1x128xf32> -> vector<1x128xf32>
    %231 = arith.addf %229, %230 : vector<1x128xf32>
    %232 = arith.negf %231 : vector<1x128xf32>
    %233 = math.exp %232 : vector<1x128xf32>
    %cst_63 = arith.constant 1.000000e+00 : f32
    %234 = vector.broadcast %cst_63 : f32 to vector<1x128xf32>
    %235 = arith.addf %234, %233 : vector<1x128xf32>
    %236 = arith.divf %234, %235 : vector<1x128xf32>
    %237 = math.tanh %231 : vector<1x128xf32>
    %238 = arith.select %205, %237, %236 : vector<1x128xi1>, vector<1x128xf32>
    %239 = vector.extract_strided_slice %238 {offsets = [0, 0], sizes = [1, 32], strides = [1, 1]} : vector<1x128xf32> to vector<1x32xf32>
    %240 = vector.extract_strided_slice %238 {offsets = [0, 32], sizes = [1, 32], strides = [1, 1]} : vector<1x128xf32> to vector<1x32xf32>
    %241 = vector.extract_strided_slice %238 {offsets = [0, 64], sizes = [1, 32], strides = [1, 1]} : vector<1x128xf32> to vector<1x32xf32>
    %242 = vector.extract_strided_slice %238 {offsets = [0, 96], sizes = [1, 32], strides = [1, 1]} : vector<1x128xf32> to vector<1x32xf32>
    %243 = arith.mulf %240, %225 : vector<1x32xf32>
    %244 = arith.mulf %239, %241 : vector<1x32xf32>
    %245 = arith.addf %243, %244 : vector<1x32xf32>
    %246 = math.tanh %245 : vector<1x32xf32>
    %247 = arith.mulf %242, %246 : vector<1x32xf32>
    %c2_i32_64 = arith.constant 2 : i32
    %248 = arith.index_cast %c2_i32_64 : i32 to index
    %c0_65 = arith.constant 0 : index
    %249 = vector.load %arg17[%248, %c0_65] : memref<8x128xf32, #tpu.memory_space<vmem>>, vector<1x128xf32>
    %cst_66 = arith.constant dense<0.000000e+00> : vector<1x128xf32>
    %250 = tpu.matmul %247, %199, %cst_66 {dimension_numbers = #tpu.dot_dimension_numbers<[1], [0], [0], [1], [0, 0, 1, 1], [], []>} : vector<1x32xf32>, vector<32x128xf32>, vector<1x128xf32> -> vector<1x128xf32>
    %251 = arith.addf %249, %250 : vector<1x128xf32>
    %252 = arith.negf %251 : vector<1x128xf32>
    %253 = math.exp %252 : vector<1x128xf32>
    %cst_67 = arith.constant 1.000000e+00 : f32
    %254 = vector.broadcast %cst_67 : f32 to vector<1x128xf32>
    %255 = arith.addf %254, %253 : vector<1x128xf32>
    %256 = arith.divf %254, %255 : vector<1x128xf32>
    %257 = math.tanh %251 : vector<1x128xf32>
    %258 = arith.select %205, %257, %256 : vector<1x128xi1>, vector<1x128xf32>
    %259 = vector.extract_strided_slice %258 {offsets = [0, 0], sizes = [1, 32], strides = [1, 1]} : vector<1x128xf32> to vector<1x32xf32>
    %260 = vector.extract_strided_slice %258 {offsets = [0, 32], sizes = [1, 32], strides = [1, 1]} : vector<1x128xf32> to vector<1x32xf32>
    %261 = vector.extract_strided_slice %258 {offsets = [0, 64], sizes = [1, 32], strides = [1, 1]} : vector<1x128xf32> to vector<1x32xf32>
    %262 = vector.extract_strided_slice %258 {offsets = [0, 96], sizes = [1, 32], strides = [1, 1]} : vector<1x128xf32> to vector<1x32xf32>
    %263 = arith.mulf %260, %245 : vector<1x32xf32>
    %264 = arith.mulf %259, %261 : vector<1x32xf32>
    %265 = arith.addf %263, %264 : vector<1x32xf32>
    %266 = math.tanh %265 : vector<1x32xf32>
    %267 = arith.mulf %262, %266 : vector<1x32xf32>
    %c3_i32_68 = arith.constant 3 : i32
    %268 = arith.index_cast %c3_i32_68 : i32 to index
    %c0_69 = arith.constant 0 : index
    %269 = vector.load %arg17[%268, %c0_69] : memref<8x128xf32, #tpu.memory_space<vmem>>, vector<1x128xf32>
    %cst_70 = arith.constant dense<0.000000e+00> : vector<1x128xf32>
    %270 = tpu.matmul %267, %199, %cst_70 {dimension_numbers = #tpu.dot_dimension_numbers<[1], [0], [0], [1], [0, 0, 1, 1], [], []>} : vector<1x32xf32>, vector<32x128xf32>, vector<1x128xf32> -> vector<1x128xf32>
    %271 = arith.addf %269, %270 : vector<1x128xf32>
    %272 = arith.negf %271 : vector<1x128xf32>
    %273 = math.exp %272 : vector<1x128xf32>
    %cst_71 = arith.constant 1.000000e+00 : f32
    %274 = vector.broadcast %cst_71 : f32 to vector<1x128xf32>
    %275 = arith.addf %274, %273 : vector<1x128xf32>
    %276 = arith.divf %274, %275 : vector<1x128xf32>
    %277 = math.tanh %271 : vector<1x128xf32>
    %278 = arith.select %205, %277, %276 : vector<1x128xi1>, vector<1x128xf32>
    %279 = vector.extract_strided_slice %278 {offsets = [0, 0], sizes = [1, 32], strides = [1, 1]} : vector<1x128xf32> to vector<1x32xf32>
    %280 = vector.extract_strided_slice %278 {offsets = [0, 32], sizes = [1, 32], strides = [1, 1]} : vector<1x128xf32> to vector<1x32xf32>
    %281 = vector.extract_strided_slice %278 {offsets = [0, 64], sizes = [1, 32], strides = [1, 1]} : vector<1x128xf32> to vector<1x32xf32>
    %282 = vector.extract_strided_slice %278 {offsets = [0, 96], sizes = [1, 32], strides = [1, 1]} : vector<1x128xf32> to vector<1x32xf32>
    %283 = arith.mulf %280, %265 : vector<1x32xf32>
    %284 = arith.mulf %279, %281 : vector<1x32xf32>
    %285 = arith.addf %283, %284 : vector<1x32xf32>
    %286 = math.tanh %285 : vector<1x32xf32>
    %287 = arith.mulf %282, %286 : vector<1x32xf32>
    %c4_i32_72 = arith.constant 4 : i32
    %288 = arith.index_cast %c4_i32_72 : i32 to index
    %c0_73 = arith.constant 0 : index
    %289 = vector.load %arg17[%288, %c0_73] : memref<8x128xf32, #tpu.memory_space<vmem>>, vector<1x128xf32>
    %cst_74 = arith.constant dense<0.000000e+00> : vector<1x128xf32>
    %290 = tpu.matmul %287, %199, %cst_74 {dimension_numbers = #tpu.dot_dimension_numbers<[1], [0], [0], [1], [0, 0, 1, 1], [], []>} : vector<1x32xf32>, vector<32x128xf32>, vector<1x128xf32> -> vector<1x128xf32>
    %291 = arith.addf %289, %290 : vector<1x128xf32>
    %292 = arith.negf %291 : vector<1x128xf32>
    %293 = math.exp %292 : vector<1x128xf32>
    %cst_75 = arith.constant 1.000000e+00 : f32
    %294 = vector.broadcast %cst_75 : f32 to vector<1x128xf32>
    %295 = arith.addf %294, %293 : vector<1x128xf32>
    %296 = arith.divf %294, %295 : vector<1x128xf32>
    %297 = math.tanh %291 : vector<1x128xf32>
    %298 = arith.select %205, %297, %296 : vector<1x128xi1>, vector<1x128xf32>
    %299 = vector.extract_strided_slice %298 {offsets = [0, 0], sizes = [1, 32], strides = [1, 1]} : vector<1x128xf32> to vector<1x32xf32>
    %300 = vector.extract_strided_slice %298 {offsets = [0, 32], sizes = [1, 32], strides = [1, 1]} : vector<1x128xf32> to vector<1x32xf32>
    %301 = vector.extract_strided_slice %298 {offsets = [0, 64], sizes = [1, 32], strides = [1, 1]} : vector<1x128xf32> to vector<1x32xf32>
    %302 = vector.extract_strided_slice %298 {offsets = [0, 96], sizes = [1, 32], strides = [1, 1]} : vector<1x128xf32> to vector<1x32xf32>
    %303 = arith.mulf %300, %285 : vector<1x32xf32>
    %304 = arith.mulf %299, %301 : vector<1x32xf32>
    %305 = arith.addf %303, %304 : vector<1x32xf32>
    %306 = math.tanh %305 : vector<1x32xf32>
    %307 = arith.mulf %302, %306 : vector<1x32xf32>
    %c5_i32_76 = arith.constant 5 : i32
    %308 = arith.index_cast %c5_i32_76 : i32 to index
    %c0_77 = arith.constant 0 : index
    %309 = vector.load %arg17[%308, %c0_77] : memref<8x128xf32, #tpu.memory_space<vmem>>, vector<1x128xf32>
    %cst_78 = arith.constant dense<0.000000e+00> : vector<1x128xf32>
    %310 = tpu.matmul %307, %199, %cst_78 {dimension_numbers = #tpu.dot_dimension_numbers<[1], [0], [0], [1], [0, 0, 1, 1], [], []>} : vector<1x32xf32>, vector<32x128xf32>, vector<1x128xf32> -> vector<1x128xf32>
    %311 = arith.addf %309, %310 : vector<1x128xf32>
    %312 = arith.negf %311 : vector<1x128xf32>
    %313 = math.exp %312 : vector<1x128xf32>
    %cst_79 = arith.constant 1.000000e+00 : f32
    %314 = vector.broadcast %cst_79 : f32 to vector<1x128xf32>
    %315 = arith.addf %314, %313 : vector<1x128xf32>
    %316 = arith.divf %314, %315 : vector<1x128xf32>
    %317 = math.tanh %311 : vector<1x128xf32>
    %318 = arith.select %205, %317, %316 : vector<1x128xi1>, vector<1x128xf32>
    %319 = vector.extract_strided_slice %318 {offsets = [0, 0], sizes = [1, 32], strides = [1, 1]} : vector<1x128xf32> to vector<1x32xf32>
    %320 = vector.extract_strided_slice %318 {offsets = [0, 32], sizes = [1, 32], strides = [1, 1]} : vector<1x128xf32> to vector<1x32xf32>
    %321 = vector.extract_strided_slice %318 {offsets = [0, 64], sizes = [1, 32], strides = [1, 1]} : vector<1x128xf32> to vector<1x32xf32>
    %322 = vector.extract_strided_slice %318 {offsets = [0, 96], sizes = [1, 32], strides = [1, 1]} : vector<1x128xf32> to vector<1x32xf32>
    %323 = arith.mulf %320, %305 : vector<1x32xf32>
    %324 = arith.mulf %319, %321 : vector<1x32xf32>
    %325 = arith.addf %323, %324 : vector<1x32xf32>
    %326 = math.tanh %325 : vector<1x32xf32>
    %327 = arith.mulf %322, %326 : vector<1x32xf32>
    %c6_i32_80 = arith.constant 6 : i32
    %328 = arith.index_cast %c6_i32_80 : i32 to index
    %c0_81 = arith.constant 0 : index
    %329 = vector.load %arg17[%328, %c0_81] : memref<8x128xf32, #tpu.memory_space<vmem>>, vector<1x128xf32>
    %cst_82 = arith.constant dense<0.000000e+00> : vector<1x128xf32>
    %330 = tpu.matmul %327, %199, %cst_82 {dimension_numbers = #tpu.dot_dimension_numbers<[1], [0], [0], [1], [0, 0, 1, 1], [], []>} : vector<1x32xf32>, vector<32x128xf32>, vector<1x128xf32> -> vector<1x128xf32>
    %331 = arith.addf %329, %330 : vector<1x128xf32>
    %332 = arith.negf %331 : vector<1x128xf32>
    %333 = math.exp %332 : vector<1x128xf32>
    %cst_83 = arith.constant 1.000000e+00 : f32
    %334 = vector.broadcast %cst_83 : f32 to vector<1x128xf32>
    %335 = arith.addf %334, %333 : vector<1x128xf32>
    %336 = arith.divf %334, %335 : vector<1x128xf32>
    %337 = math.tanh %331 : vector<1x128xf32>
    %338 = arith.select %205, %337, %336 : vector<1x128xi1>, vector<1x128xf32>
    %339 = vector.extract_strided_slice %338 {offsets = [0, 0], sizes = [1, 32], strides = [1, 1]} : vector<1x128xf32> to vector<1x32xf32>
    %340 = vector.extract_strided_slice %338 {offsets = [0, 32], sizes = [1, 32], strides = [1, 1]} : vector<1x128xf32> to vector<1x32xf32>
    %341 = vector.extract_strided_slice %338 {offsets = [0, 64], sizes = [1, 32], strides = [1, 1]} : vector<1x128xf32> to vector<1x32xf32>
    %342 = vector.extract_strided_slice %338 {offsets = [0, 96], sizes = [1, 32], strides = [1, 1]} : vector<1x128xf32> to vector<1x32xf32>
    %343 = arith.mulf %340, %325 : vector<1x32xf32>
    %344 = arith.mulf %339, %341 : vector<1x32xf32>
    %345 = arith.addf %343, %344 : vector<1x32xf32>
    %346 = math.tanh %345 : vector<1x32xf32>
    %347 = arith.mulf %342, %346 : vector<1x32xf32>
    %c7_i32_84 = arith.constant 7 : i32
    %348 = arith.index_cast %c7_i32_84 : i32 to index
    %c0_85 = arith.constant 0 : index
    %349 = vector.load %arg17[%348, %c0_85] : memref<8x128xf32, #tpu.memory_space<vmem>>, vector<1x128xf32>
    %cst_86 = arith.constant dense<0.000000e+00> : vector<1x128xf32>
    %350 = tpu.matmul %347, %199, %cst_86 {dimension_numbers = #tpu.dot_dimension_numbers<[1], [0], [0], [1], [0, 0, 1, 1], [], []>} : vector<1x32xf32>, vector<32x128xf32>, vector<1x128xf32> -> vector<1x128xf32>
    %351 = arith.addf %349, %350 : vector<1x128xf32>
    %352 = arith.negf %351 : vector<1x128xf32>
    %353 = math.exp %352 : vector<1x128xf32>
    %cst_87 = arith.constant 1.000000e+00 : f32
    %354 = vector.broadcast %cst_87 : f32 to vector<1x128xf32>
    %355 = arith.addf %354, %353 : vector<1x128xf32>
    %356 = arith.divf %354, %355 : vector<1x128xf32>
    %357 = math.tanh %351 : vector<1x128xf32>
    %358 = arith.select %205, %357, %356 : vector<1x128xi1>, vector<1x128xf32>
    %359 = vector.extract_strided_slice %358 {offsets = [0, 0], sizes = [1, 32], strides = [1, 1]} : vector<1x128xf32> to vector<1x32xf32>
    %360 = vector.extract_strided_slice %358 {offsets = [0, 32], sizes = [1, 32], strides = [1, 1]} : vector<1x128xf32> to vector<1x32xf32>
    %361 = vector.extract_strided_slice %358 {offsets = [0, 64], sizes = [1, 32], strides = [1, 1]} : vector<1x128xf32> to vector<1x32xf32>
    %362 = vector.extract_strided_slice %358 {offsets = [0, 96], sizes = [1, 32], strides = [1, 1]} : vector<1x128xf32> to vector<1x32xf32>
    %363 = arith.mulf %360, %345 : vector<1x32xf32>
    %364 = arith.mulf %359, %361 : vector<1x32xf32>
    %365 = arith.addf %363, %364 : vector<1x32xf32>
    %366 = math.tanh %365 : vector<1x32xf32>
    %367 = arith.mulf %362, %366 : vector<1x32xf32>
    %c8_i32_88 = arith.constant 8 : i32
    %c0_89 = arith.constant 0 : index
    %c0_90 = arith.constant 0 : index
    %368 = vector.load %arg7[%c0_89, %c0_90] : memref<32x128xf32, #tpu.memory_space<vmem>>, vector<32x128xf32>
    %cst_91 = arith.constant dense<0.000000e+00> : vector<1x128xf32>
    %369 = tpu.matmul %367, %368, %cst_91 {dimension_numbers = #tpu.dot_dimension_numbers<[1], [0], [0], [1], [0, 0, 1, 1], [], []>} : vector<1x32xf32>, vector<32x128xf32>, vector<1x128xf32> -> vector<1x128xf32>
    %c0_92 = arith.constant 0 : index
    %c0_93 = arith.constant 0 : index
    %370 = vector.load %arg9[%c0_92, %c0_93] : memref<1x128xf32, #tpu.memory_space<vmem>>, vector<1x128xf32>
    %371 = arith.addf %369, %370 : vector<1x128xf32>
    %c0_94 = arith.constant 0 : index
    %c0_95 = arith.constant 0 : index
    %372 = vector.load %arg8[%c0_94, %c0_95] : memref<32x128xf32, #tpu.memory_space<vmem>>, vector<32x128xf32>
    %373 = tpu.iota {dimensions = array<i32: 1>} : vector<1x128xi32>
    %c64_i32_96 = arith.constant 64 : i32
    %374 = vector.broadcast %c64_i32_96 : i32 to vector<1x128xi32>
    %375 = arith.cmpi sge, %373, %374 : vector<1x128xi32>
    %c96_i32_97 = arith.constant 96 : i32
    %376 = vector.broadcast %c96_i32_97 : i32 to vector<1x128xi32>
    %377 = arith.cmpi slt, %373, %376 : vector<1x128xi32>
    %378 = arith.andi %375, %377 : vector<1x128xi1>
    %cst_98 = arith.constant 0.000000e+00 : f32
    %379 = vector.broadcast %cst_98 : f32 to vector<1x32xf32>
    %cst_99 = arith.constant 0.000000e+00 : f32
    %380 = vector.broadcast %cst_99 : f32 to vector<1x32xf32>
    %c0_i32_100 = arith.constant 0 : i32
    %cst_101 = arith.constant dense<0.000000e+00> : vector<1x128xf32>
    %381 = tpu.matmul %379, %372, %cst_101 {dimension_numbers = #tpu.dot_dimension_numbers<[1], [0], [0], [1], [0, 0, 1, 1], [], []>} : vector<1x32xf32>, vector<32x128xf32>, vector<1x128xf32> -> vector<1x128xf32>
    %382 = arith.addf %371, %381 : vector<1x128xf32>
    %383 = arith.negf %382 : vector<1x128xf32>
    %384 = math.exp %383 : vector<1x128xf32>
    %cst_102 = arith.constant 1.000000e+00 : f32
    %385 = vector.broadcast %cst_102 : f32 to vector<1x128xf32>
    %386 = arith.addf %385, %384 : vector<1x128xf32>
    %387 = arith.divf %385, %386 : vector<1x128xf32>
    %388 = math.tanh %382 : vector<1x128xf32>
    %389 = arith.select %378, %388, %387 : vector<1x128xi1>, vector<1x128xf32>
    %390 = vector.extract_strided_slice %389 {offsets = [0, 0], sizes = [1, 32], strides = [1, 1]} : vector<1x128xf32> to vector<1x32xf32>
    %391 = vector.extract_strided_slice %389 {offsets = [0, 32], sizes = [1, 32], strides = [1, 1]} : vector<1x128xf32> to vector<1x32xf32>
    %392 = vector.extract_strided_slice %389 {offsets = [0, 64], sizes = [1, 32], strides = [1, 1]} : vector<1x128xf32> to vector<1x32xf32>
    %393 = vector.extract_strided_slice %389 {offsets = [0, 96], sizes = [1, 32], strides = [1, 1]} : vector<1x128xf32> to vector<1x32xf32>
    %394 = arith.mulf %391, %380 : vector<1x32xf32>
    %395 = arith.mulf %390, %392 : vector<1x32xf32>
    %396 = arith.addf %394, %395 : vector<1x32xf32>
    %397 = math.tanh %396 : vector<1x32xf32>
    %398 = arith.mulf %393, %397 : vector<1x32xf32>
    %399 = arith.index_cast %c0_i32_100 : i32 to index
    %c0_103 = arith.constant 0 : index
    %400 = vector.load %arg20[%399, %c0_103] : memref<8x32xf32, #tpu.memory_space<vmem>>, vector<1x32xf32>
    tpu.vector_store %arg20[%399, %c0_103], %398 {strides = array<i32>} : memref<8x32xf32, #tpu.memory_space<vmem>>, vector<1x32xf32>,
    %c1_i32_104 = arith.constant 1 : i32
    %cst_105 = arith.constant dense<0.000000e+00> : vector<1x128xf32>
    %401 = tpu.matmul %398, %372, %cst_105 {dimension_numbers = #tpu.dot_dimension_numbers<[1], [0], [0], [1], [0, 0, 1, 1], [], []>} : vector<1x32xf32>, vector<32x128xf32>, vector<1x128xf32> -> vector<1x128xf32>
    %402 = arith.addf %371, %401 : vector<1x128xf32>
    %403 = arith.negf %402 : vector<1x128xf32>
    %404 = math.exp %403 : vector<1x128xf32>
    %cst_106 = arith.constant 1.000000e+00 : f32
    %405 = vector.broadcast %cst_106 : f32 to vector<1x128xf32>
    %406 = arith.addf %405, %404 : vector<1x128xf32>
    %407 = arith.divf %405, %406 : vector<1x128xf32>
    %408 = math.tanh %402 : vector<1x128xf32>
    %409 = arith.select %378, %408, %407 : vector<1x128xi1>, vector<1x128xf32>
    %410 = vector.extract_strided_slice %409 {offsets = [0, 0], sizes = [1, 32], strides = [1, 1]} : vector<1x128xf32> to vector<1x32xf32>
    %411 = vector.extract_strided_slice %409 {offsets = [0, 32], sizes = [1, 32], strides = [1, 1]} : vector<1x128xf32> to vector<1x32xf32>
    %412 = vector.extract_strided_slice %409 {offsets = [0, 64], sizes = [1, 32], strides = [1, 1]} : vector<1x128xf32> to vector<1x32xf32>
    %413 = vector.extract_strided_slice %409 {offsets = [0, 96], sizes = [1, 32], strides = [1, 1]} : vector<1x128xf32> to vector<1x32xf32>
    %414 = arith.mulf %411, %396 : vector<1x32xf32>
    %415 = arith.mulf %410, %412 : vector<1x32xf32>
    %416 = arith.addf %414, %415 : vector<1x32xf32>
    %417 = math.tanh %416 : vector<1x32xf32>
    %418 = arith.mulf %413, %417 : vector<1x32xf32>
    %419 = arith.index_cast %c1_i32_104 : i32 to index
    %c0_107 = arith.constant 0 : index
    %420 = vector.load %arg20[%419, %c0_107] : memref<8x32xf32, #tpu.memory_space<vmem>>, vector<1x32xf32>
    tpu.vector_store %arg20[%419, %c0_107], %418 {strides = array<i32>} : memref<8x32xf32, #tpu.memory_space<vmem>>, vector<1x32xf32>,
    %c2_i32_108 = arith.constant 2 : i32
    %cst_109 = arith.constant dense<0.000000e+00> : vector<1x128xf32>
    %421 = tpu.matmul %418, %372, %cst_109 {dimension_numbers = #tpu.dot_dimension_numbers<[1], [0], [0], [1], [0, 0, 1, 1], [], []>} : vector<1x32xf32>, vector<32x128xf32>, vector<1x128xf32> -> vector<1x128xf32>
    %422 = arith.addf %371, %421 : vector<1x128xf32>
    %423 = arith.negf %422 : vector<1x128xf32>
    %424 = math.exp %423 : vector<1x128xf32>
    %cst_110 = arith.constant 1.000000e+00 : f32
    %425 = vector.broadcast %cst_110 : f32 to vector<1x128xf32>
    %426 = arith.addf %425, %424 : vector<1x128xf32>
    %427 = arith.divf %425, %426 : vector<1x128xf32>
    %428 = math.tanh %422 : vector<1x128xf32>
    %429 = arith.select %378, %428, %427 : vector<1x128xi1>, vector<1x128xf32>
    %430 = vector.extract_strided_slice %429 {offsets = [0, 0], sizes = [1, 32], strides = [1, 1]} : vector<1x128xf32> to vector<1x32xf32>
    %431 = vector.extract_strided_slice %429 {offsets = [0, 32], sizes = [1, 32], strides = [1, 1]} : vector<1x128xf32> to vector<1x32xf32>
    %432 = vector.extract_strided_slice %429 {offsets = [0, 64], sizes = [1, 32], strides = [1, 1]} : vector<1x128xf32> to vector<1x32xf32>
    %433 = vector.extract_strided_slice %429 {offsets = [0, 96], sizes = [1, 32], strides = [1, 1]} : vector<1x128xf32> to vector<1x32xf32>
    %434 = arith.mulf %431, %416 : vector<1x32xf32>
    %435 = arith.mulf %430, %432 : vector<1x32xf32>
    %436 = arith.addf %434, %435 : vector<1x32xf32>
    %437 = math.tanh %436 : vector<1x32xf32>
    %438 = arith.mulf %433, %437 : vector<1x32xf32>
    %439 = arith.index_cast %c2_i32_108 : i32 to index
    %c0_111 = arith.constant 0 : index
    %440 = vector.load %arg20[%439, %c0_111] : memref<8x32xf32, #tpu.memory_space<vmem>>, vector<1x32xf32>
    tpu.vector_store %arg20[%439, %c0_111], %438 {strides = array<i32>} : memref<8x32xf32, #tpu.memory_space<vmem>>, vector<1x32xf32>,
    %c3_i32_112 = arith.constant 3 : i32
    %cst_113 = arith.constant dense<0.000000e+00> : vector<1x128xf32>
    %441 = tpu.matmul %438, %372, %cst_113 {dimension_numbers = #tpu.dot_dimension_numbers<[1], [0], [0], [1], [0, 0, 1, 1], [], []>} : vector<1x32xf32>, vector<32x128xf32>, vector<1x128xf32> -> vector<1x128xf32>
    %442 = arith.addf %371, %441 : vector<1x128xf32>
    %443 = arith.negf %442 : vector<1x128xf32>
    %444 = math.exp %443 : vector<1x128xf32>
    %cst_114 = arith.constant 1.000000e+00 : f32
    %445 = vector.broadcast %cst_114 : f32 to vector<1x128xf32>
    %446 = arith.addf %445, %444 : vector<1x128xf32>
    %447 = arith.divf %445, %446 : vector<1x128xf32>
    %448 = math.tanh %442 : vector<1x128xf32>
    %449 = arith.select %378, %448, %447 : vector<1x128xi1>, vector<1x128xf32>
    %450 = vector.extract_strided_slice %449 {offsets = [0, 0], sizes = [1, 32], strides = [1, 1]} : vector<1x128xf32> to vector<1x32xf32>
    %451 = vector.extract_strided_slice %449 {offsets = [0, 32], sizes = [1, 32], strides = [1, 1]} : vector<1x128xf32> to vector<1x32xf32>
    %452 = vector.extract_strided_slice %449 {offsets = [0, 64], sizes = [1, 32], strides = [1, 1]} : vector<1x128xf32> to vector<1x32xf32>
    %453 = vector.extract_strided_slice %449 {offsets = [0, 96], sizes = [1, 32], strides = [1, 1]} : vector<1x128xf32> to vector<1x32xf32>
    %454 = arith.mulf %451, %436 : vector<1x32xf32>
    %455 = arith.mulf %450, %452 : vector<1x32xf32>
    %456 = arith.addf %454, %455 : vector<1x32xf32>
    %457 = math.tanh %456 : vector<1x32xf32>
    %458 = arith.mulf %453, %457 : vector<1x32xf32>
    %459 = arith.index_cast %c3_i32_112 : i32 to index
    %c0_115 = arith.constant 0 : index
    %460 = vector.load %arg20[%459, %c0_115] : memref<8x32xf32, #tpu.memory_space<vmem>>, vector<1x32xf32>
    tpu.vector_store %arg20[%459, %c0_115], %458 {strides = array<i32>} : memref<8x32xf32, #tpu.memory_space<vmem>>, vector<1x32xf32>,
    %c4_i32_116 = arith.constant 4 : i32
    %cst_117 = arith.constant dense<0.000000e+00> : vector<1x128xf32>
    %461 = tpu.matmul %458, %372, %cst_117 {dimension_numbers = #tpu.dot_dimension_numbers<[1], [0], [0], [1], [0, 0, 1, 1], [], []>} : vector<1x32xf32>, vector<32x128xf32>, vector<1x128xf32> -> vector<1x128xf32>
    %462 = arith.addf %371, %461 : vector<1x128xf32>
    %463 = arith.negf %462 : vector<1x128xf32>
    %464 = math.exp %463 : vector<1x128xf32>
    %cst_118 = arith.constant 1.000000e+00 : f32
    %465 = vector.broadcast %cst_118 : f32 to vector<1x128xf32>
    %466 = arith.addf %465, %464 : vector<1x128xf32>
    %467 = arith.divf %465, %466 : vector<1x128xf32>
    %468 = math.tanh %462 : vector<1x128xf32>
    %469 = arith.select %378, %468, %467 : vector<1x128xi1>, vector<1x128xf32>
    %470 = vector.extract_strided_slice %469 {offsets = [0, 0], sizes = [1, 32], strides = [1, 1]} : vector<1x128xf32> to vector<1x32xf32>
    %471 = vector.extract_strided_slice %469 {offsets = [0, 32], sizes = [1, 32], strides = [1, 1]} : vector<1x128xf32> to vector<1x32xf32>
    %472 = vector.extract_strided_slice %469 {offsets = [0, 64], sizes = [1, 32], strides = [1, 1]} : vector<1x128xf32> to vector<1x32xf32>
    %473 = vector.extract_strided_slice %469 {offsets = [0, 96], sizes = [1, 32], strides = [1, 1]} : vector<1x128xf32> to vector<1x32xf32>
    %474 = arith.mulf %471, %456 : vector<1x32xf32>
    %475 = arith.mulf %470, %472 : vector<1x32xf32>
    %476 = arith.addf %474, %475 : vector<1x32xf32>
    %477 = math.tanh %476 : vector<1x32xf32>
    %478 = arith.mulf %473, %477 : vector<1x32xf32>
    %479 = arith.index_cast %c4_i32_116 : i32 to index
    %c0_119 = arith.constant 0 : index
    %480 = vector.load %arg20[%479, %c0_119] : memref<8x32xf32, #tpu.memory_space<vmem>>, vector<1x32xf32>
    tpu.vector_store %arg20[%479, %c0_119], %478 {strides = array<i32>} : memref<8x32xf32, #tpu.memory_space<vmem>>, vector<1x32xf32>,
    %c5_i32_120 = arith.constant 5 : i32
    %cst_121 = arith.constant dense<0.000000e+00> : vector<1x128xf32>
    %481 = tpu.matmul %478, %372, %cst_121 {dimension_numbers = #tpu.dot_dimension_numbers<[1], [0], [0], [1], [0, 0, 1, 1], [], []>} : vector<1x32xf32>, vector<32x128xf32>, vector<1x128xf32> -> vector<1x128xf32>
    %482 = arith.addf %371, %481 : vector<1x128xf32>
    %483 = arith.negf %482 : vector<1x128xf32>
    %484 = math.exp %483 : vector<1x128xf32>
    %cst_122 = arith.constant 1.000000e+00 : f32
    %485 = vector.broadcast %cst_122 : f32 to vector<1x128xf32>
    %486 = arith.addf %485, %484 : vector<1x128xf32>
    %487 = arith.divf %485, %486 : vector<1x128xf32>
    %488 = math.tanh %482 : vector<1x128xf32>
    %489 = arith.select %378, %488, %487 : vector<1x128xi1>, vector<1x128xf32>
    %490 = vector.extract_strided_slice %489 {offsets = [0, 0], sizes = [1, 32], strides = [1, 1]} : vector<1x128xf32> to vector<1x32xf32>
    %491 = vector.extract_strided_slice %489 {offsets = [0, 32], sizes = [1, 32], strides = [1, 1]} : vector<1x128xf32> to vector<1x32xf32>
    %492 = vector.extract_strided_slice %489 {offsets = [0, 64], sizes = [1, 32], strides = [1, 1]} : vector<1x128xf32> to vector<1x32xf32>
    %493 = vector.extract_strided_slice %489 {offsets = [0, 96], sizes = [1, 32], strides = [1, 1]} : vector<1x128xf32> to vector<1x32xf32>
    %494 = arith.mulf %491, %476 : vector<1x32xf32>
    %495 = arith.mulf %490, %492 : vector<1x32xf32>
    %496 = arith.addf %494, %495 : vector<1x32xf32>
    %497 = math.tanh %496 : vector<1x32xf32>
    %498 = arith.mulf %493, %497 : vector<1x32xf32>
    %499 = arith.index_cast %c5_i32_120 : i32 to index
    %c0_123 = arith.constant 0 : index
    %500 = vector.load %arg20[%499, %c0_123] : memref<8x32xf32, #tpu.memory_space<vmem>>, vector<1x32xf32>
    tpu.vector_store %arg20[%499, %c0_123], %498 {strides = array<i32>} : memref<8x32xf32, #tpu.memory_space<vmem>>, vector<1x32xf32>,
    %c6_i32_124 = arith.constant 6 : i32
    %cst_125 = arith.constant dense<0.000000e+00> : vector<1x128xf32>
    %501 = tpu.matmul %498, %372, %cst_125 {dimension_numbers = #tpu.dot_dimension_numbers<[1], [0], [0], [1], [0, 0, 1, 1], [], []>} : vector<1x32xf32>, vector<32x128xf32>, vector<1x128xf32> -> vector<1x128xf32>
    %502 = arith.addf %371, %501 : vector<1x128xf32>
    %503 = arith.negf %502 : vector<1x128xf32>
    %504 = math.exp %503 : vector<1x128xf32>
    %cst_126 = arith.constant 1.000000e+00 : f32
    %505 = vector.broadcast %cst_126 : f32 to vector<1x128xf32>
    %506 = arith.addf %505, %504 : vector<1x128xf32>
    %507 = arith.divf %505, %506 : vector<1x128xf32>
    %508 = math.tanh %502 : vector<1x128xf32>
    %509 = arith.select %378, %508, %507 : vector<1x128xi1>, vector<1x128xf32>
    %510 = vector.extract_strided_slice %509 {offsets = [0, 0], sizes = [1, 32], strides = [1, 1]} : vector<1x128xf32> to vector<1x32xf32>
    %511 = vector.extract_strided_slice %509 {offsets = [0, 32], sizes = [1, 32], strides = [1, 1]} : vector<1x128xf32> to vector<1x32xf32>
    %512 = vector.extract_strided_slice %509 {offsets = [0, 64], sizes = [1, 32], strides = [1, 1]} : vector<1x128xf32> to vector<1x32xf32>
    %513 = vector.extract_strided_slice %509 {offsets = [0, 96], sizes = [1, 32], strides = [1, 1]} : vector<1x128xf32> to vector<1x32xf32>
    %514 = arith.mulf %511, %496 : vector<1x32xf32>
    %515 = arith.mulf %510, %512 : vector<1x32xf32>
    %516 = arith.addf %514, %515 : vector<1x32xf32>
    %517 = math.tanh %516 : vector<1x32xf32>
    %518 = arith.mulf %513, %517 : vector<1x32xf32>
    %519 = arith.index_cast %c6_i32_124 : i32 to index
    %c0_127 = arith.constant 0 : index
    %520 = vector.load %arg20[%519, %c0_127] : memref<8x32xf32, #tpu.memory_space<vmem>>, vector<1x32xf32>
    tpu.vector_store %arg20[%519, %c0_127], %518 {strides = array<i32>} : memref<8x32xf32, #tpu.memory_space<vmem>>, vector<1x32xf32>,
    %c7_i32_128 = arith.constant 7 : i32
    %cst_129 = arith.constant dense<0.000000e+00> : vector<1x128xf32>
    %521 = tpu.matmul %518, %372, %cst_129 {dimension_numbers = #tpu.dot_dimension_numbers<[1], [0], [0], [1], [0, 0, 1, 1], [], []>} : vector<1x32xf32>, vector<32x128xf32>, vector<1x128xf32> -> vector<1x128xf32>
    %522 = arith.addf %371, %521 : vector<1x128xf32>
    %523 = arith.negf %522 : vector<1x128xf32>
    %524 = math.exp %523 : vector<1x128xf32>
    %cst_130 = arith.constant 1.000000e+00 : f32
    %525 = vector.broadcast %cst_130 : f32 to vector<1x128xf32>
    %526 = arith.addf %525, %524 : vector<1x128xf32>
    %527 = arith.divf %525, %526 : vector<1x128xf32>
    %528 = math.tanh %522 : vector<1x128xf32>
    %529 = arith.select %378, %528, %527 : vector<1x128xi1>, vector<1x128xf32>
    %530 = vector.extract_strided_slice %529 {offsets = [0, 0], sizes = [1, 32], strides = [1, 1]} : vector<1x128xf32> to vector<1x32xf32>
    %531 = vector.extract_strided_slice %529 {offsets = [0, 32], sizes = [1, 32], strides = [1, 1]} : vector<1x128xf32> to vector<1x32xf32>
    %532 = vector.extract_strided_slice %529 {offsets = [0, 64], sizes = [1, 32], strides = [1, 1]} : vector<1x128xf32> to vector<1x32xf32>
    %533 = vector.extract_strided_slice %529 {offsets = [0, 96], sizes = [1, 32], strides = [1, 1]} : vector<1x128xf32> to vector<1x32xf32>
    %534 = arith.mulf %531, %516 : vector<1x32xf32>
    %535 = arith.mulf %530, %532 : vector<1x32xf32>
    %536 = arith.addf %534, %535 : vector<1x32xf32>
    %537 = math.tanh %536 : vector<1x32xf32>
    %538 = arith.mulf %533, %537 : vector<1x32xf32>
    %539 = arith.index_cast %c7_i32_128 : i32 to index
    %c0_131 = arith.constant 0 : index
    %540 = vector.load %arg20[%539, %c0_131] : memref<8x32xf32, #tpu.memory_space<vmem>>, vector<1x32xf32>
    tpu.vector_store %arg20[%539, %c0_131], %538 {strides = array<i32>} : memref<8x32xf32, #tpu.memory_space<vmem>>, vector<1x32xf32>,
    %c8_i32_132 = arith.constant 8 : i32
    %c0_133 = arith.constant 0 : index
    %c0_134 = arith.constant 0 : index
    %541 = vector.load %arg20[%c0_133, %c0_134] : memref<8x32xf32, #tpu.memory_space<vmem>>, vector<8x32xf32>
    %c0_135 = arith.constant 0 : index
    %c0_136 = arith.constant 0 : index
    %542 = vector.load %arg10[%c0_135, %c0_136] : memref<32x256xf32, #tpu.memory_space<vmem>>, vector<32x256xf32>
    %cst_137 = arith.constant dense<0.000000e+00> : vector<8x256xf32>
    %543 = tpu.matmul %541, %542, %cst_137 {dimension_numbers = #tpu.dot_dimension_numbers<[1], [0], [0], [1], [0, 0, 1, 1], [], []>} : vector<8x32xf32>, vector<32x256xf32>, vector<8x256xf32> -> vector<8x256xf32>
    %c0_138 = arith.constant 0 : index
    %c0_139 = arith.constant 0 : index
    %544 = vector.load %arg12[%c0_138, %c0_139] : memref<1x256xf32, #tpu.memory_space<vmem>>, vector<1x256xf32>
    %545 = vector.broadcast %544 : vector<1x256xf32> to vector<8x256xf32>
    %546 = arith.addf %543, %545 : vector<8x256xf32>
    %c0_140 = arith.constant 0 : index
    %c0_141 = arith.constant 0 : index
    %547 = vector.load %arg18[%c0_140, %c0_141] : memref<8x256xf32, #tpu.memory_space<vmem>>, vector<8x256xf32>
    tpu.vector_store %arg18[%c0_140, %c0_141], %546 {strides = array<i32>} : memref<8x256xf32, #tpu.memory_space<vmem>>, vector<8x256xf32>,
    %c0_142 = arith.constant 0 : index
    %c0_143 = arith.constant 0 : index
    %548 = vector.load %arg11[%c0_142, %c0_143] : memref<64x256xf32, #tpu.memory_space<vmem>>, vector<64x256xf32>
    %549 = tpu.iota {dimensions = array<i32: 1>} : vector<1x256xi32>
    %c128_i32_144 = arith.constant 128 : i32
    %550 = vector.broadcast %c128_i32_144 : i32 to vector<1x256xi32>
    %551 = arith.cmpi sge, %549, %550 : vector<1x256xi32>
    %c192_i32_145 = arith.constant 192 : i32
    %552 = vector.broadcast %c192_i32_145 : i32 to vector<1x256xi32>
    %553 = arith.cmpi slt, %549, %552 : vector<1x256xi32>
    %554 = arith.andi %551, %553 : vector<1x256xi1>
    %cst_146 = arith.constant 0.000000e+00 : f32
    %555 = vector.broadcast %cst_146 : f32 to vector<1x64xf32>
    %cst_147 = arith.constant 0.000000e+00 : f32
    %556 = vector.broadcast %cst_147 : f32 to vector<1x64xf32>
    %c0_i32_148 = arith.constant 0 : i32
    %557 = arith.index_cast %c0_i32_148 : i32 to index
    %c0_149 = arith.constant 0 : index
    %558 = vector.load %arg18[%557, %c0_149] : memref<8x256xf32, #tpu.memory_space<vmem>>, vector<1x256xf32>
    %cst_150 = arith.constant dense<0.000000e+00> : vector<1x256xf32>
    %559 = tpu.matmul %555, %548, %cst_150 {dimension_numbers = #tpu.dot_dimension_numbers<[1], [0], [0], [1], [0, 0, 1, 1], [], []>} : vector<1x64xf32>, vector<64x256xf32>, vector<1x256xf32> -> vector<1x256xf32>
    %560 = arith.addf %558, %559 : vector<1x256xf32>
    %561 = arith.negf %560 : vector<1x256xf32>
    %562 = math.exp %561 : vector<1x256xf32>
    %cst_151 = arith.constant 1.000000e+00 : f32
    %563 = vector.broadcast %cst_151 : f32 to vector<1x256xf32>
    %564 = arith.addf %563, %562 : vector<1x256xf32>
    %565 = arith.divf %563, %564 : vector<1x256xf32>
    %566 = math.tanh %560 : vector<1x256xf32>
    %567 = arith.select %554, %566, %565 : vector<1x256xi1>, vector<1x256xf32>
    %568 = vector.extract_strided_slice %567 {offsets = [0, 0], sizes = [1, 64], strides = [1, 1]} : vector<1x256xf32> to vector<1x64xf32>
    %569 = vector.extract_strided_slice %567 {offsets = [0, 64], sizes = [1, 64], strides = [1, 1]} : vector<1x256xf32> to vector<1x64xf32>
    %570 = vector.extract_strided_slice %567 {offsets = [0, 128], sizes = [1, 64], strides = [1, 1]} : vector<1x256xf32> to vector<1x64xf32>
    %571 = vector.extract_strided_slice %567 {offsets = [0, 192], sizes = [1, 64], strides = [1, 1]} : vector<1x256xf32> to vector<1x64xf32>
    %572 = arith.mulf %569, %556 : vector<1x64xf32>
    %573 = arith.mulf %568, %570 : vector<1x64xf32>
    %574 = arith.addf %572, %573 : vector<1x64xf32>
    %575 = math.tanh %574 : vector<1x64xf32>
    %576 = arith.mulf %571, %575 : vector<1x64xf32>
    %577 = arith.index_cast %c0_i32_148 : i32 to index
    %c0_152 = arith.constant 0 : index
    %578 = vector.load %arg21[%577, %c0_152] : memref<8x64xf32, #tpu.memory_space<vmem>>, vector<1x64xf32>
    tpu.vector_store %arg21[%577, %c0_152], %576 {strides = array<i32>} : memref<8x64xf32, #tpu.memory_space<vmem>>, vector<1x64xf32>,
    %c1_i32_153 = arith.constant 1 : i32
    %579 = arith.index_cast %c1_i32_153 : i32 to index
    %c0_154 = arith.constant 0 : index
    %580 = vector.load %arg18[%579, %c0_154] : memref<8x256xf32, #tpu.memory_space<vmem>>, vector<1x256xf32>
    %cst_155 = arith.constant dense<0.000000e+00> : vector<1x256xf32>
    %581 = tpu.matmul %576, %548, %cst_155 {dimension_numbers = #tpu.dot_dimension_numbers<[1], [0], [0], [1], [0, 0, 1, 1], [], []>} : vector<1x64xf32>, vector<64x256xf32>, vector<1x256xf32> -> vector<1x256xf32>
    %582 = arith.addf %580, %581 : vector<1x256xf32>
    %583 = arith.negf %582 : vector<1x256xf32>
    %584 = math.exp %583 : vector<1x256xf32>
    %cst_156 = arith.constant 1.000000e+00 : f32
    %585 = vector.broadcast %cst_156 : f32 to vector<1x256xf32>
    %586 = arith.addf %585, %584 : vector<1x256xf32>
    %587 = arith.divf %585, %586 : vector<1x256xf32>
    %588 = math.tanh %582 : vector<1x256xf32>
    %589 = arith.select %554, %588, %587 : vector<1x256xi1>, vector<1x256xf32>
    %590 = vector.extract_strided_slice %589 {offsets = [0, 0], sizes = [1, 64], strides = [1, 1]} : vector<1x256xf32> to vector<1x64xf32>
    %591 = vector.extract_strided_slice %589 {offsets = [0, 64], sizes = [1, 64], strides = [1, 1]} : vector<1x256xf32> to vector<1x64xf32>
    %592 = vector.extract_strided_slice %589 {offsets = [0, 128], sizes = [1, 64], strides = [1, 1]} : vector<1x256xf32> to vector<1x64xf32>
    %593 = vector.extract_strided_slice %589 {offsets = [0, 192], sizes = [1, 64], strides = [1, 1]} : vector<1x256xf32> to vector<1x64xf32>
    %594 = arith.mulf %591, %574 : vector<1x64xf32>
    %595 = arith.mulf %590, %592 : vector<1x64xf32>
    %596 = arith.addf %594, %595 : vector<1x64xf32>
    %597 = math.tanh %596 : vector<1x64xf32>
    %598 = arith.mulf %593, %597 : vector<1x64xf32>
    %599 = arith.index_cast %c1_i32_153 : i32 to index
    %c0_157 = arith.constant 0 : index
    %600 = vector.load %arg21[%599, %c0_157] : memref<8x64xf32, #tpu.memory_space<vmem>>, vector<1x64xf32>
    tpu.vector_store %arg21[%599, %c0_157], %598 {strides = array<i32>} : memref<8x64xf32, #tpu.memory_space<vmem>>, vector<1x64xf32>,
    %c2_i32_158 = arith.constant 2 : i32
    %601 = arith.index_cast %c2_i32_158 : i32 to index
    %c0_159 = arith.constant 0 : index
    %602 = vector.load %arg18[%601, %c0_159] : memref<8x256xf32, #tpu.memory_space<vmem>>, vector<1x256xf32>
    %cst_160 = arith.constant dense<0.000000e+00> : vector<1x256xf32>
    %603 = tpu.matmul %598, %548, %cst_160 {dimension_numbers = #tpu.dot_dimension_numbers<[1], [0], [0], [1], [0, 0, 1, 1], [], []>} : vector<1x64xf32>, vector<64x256xf32>, vector<1x256xf32> -> vector<1x256xf32>
    %604 = arith.addf %602, %603 : vector<1x256xf32>
    %605 = arith.negf %604 : vector<1x256xf32>
    %606 = math.exp %605 : vector<1x256xf32>
    %cst_161 = arith.constant 1.000000e+00 : f32
    %607 = vector.broadcast %cst_161 : f32 to vector<1x256xf32>
    %608 = arith.addf %607, %606 : vector<1x256xf32>
    %609 = arith.divf %607, %608 : vector<1x256xf32>
    %610 = math.tanh %604 : vector<1x256xf32>
    %611 = arith.select %554, %610, %609 : vector<1x256xi1>, vector<1x256xf32>
    %612 = vector.extract_strided_slice %611 {offsets = [0, 0], sizes = [1, 64], strides = [1, 1]} : vector<1x256xf32> to vector<1x64xf32>
    %613 = vector.extract_strided_slice %611 {offsets = [0, 64], sizes = [1, 64], strides = [1, 1]} : vector<1x256xf32> to vector<1x64xf32>
    %614 = vector.extract_strided_slice %611 {offsets = [0, 128], sizes = [1, 64], strides = [1, 1]} : vector<1x256xf32> to vector<1x64xf32>
    %615 = vector.extract_strided_slice %611 {offsets = [0, 192], sizes = [1, 64], strides = [1, 1]} : vector<1x256xf32> to vector<1x64xf32>
    %616 = arith.mulf %613, %596 : vector<1x64xf32>
    %617 = arith.mulf %612, %614 : vector<1x64xf32>
    %618 = arith.addf %616, %617 : vector<1x64xf32>
    %619 = math.tanh %618 : vector<1x64xf32>
    %620 = arith.mulf %615, %619 : vector<1x64xf32>
    %621 = arith.index_cast %c2_i32_158 : i32 to index
    %c0_162 = arith.constant 0 : index
    %622 = vector.load %arg21[%621, %c0_162] : memref<8x64xf32, #tpu.memory_space<vmem>>, vector<1x64xf32>
    tpu.vector_store %arg21[%621, %c0_162], %620 {strides = array<i32>} : memref<8x64xf32, #tpu.memory_space<vmem>>, vector<1x64xf32>,
    %c3_i32_163 = arith.constant 3 : i32
    %623 = arith.index_cast %c3_i32_163 : i32 to index
    %c0_164 = arith.constant 0 : index
    %624 = vector.load %arg18[%623, %c0_164] : memref<8x256xf32, #tpu.memory_space<vmem>>, vector<1x256xf32>
    %cst_165 = arith.constant dense<0.000000e+00> : vector<1x256xf32>
    %625 = tpu.matmul %620, %548, %cst_165 {dimension_numbers = #tpu.dot_dimension_numbers<[1], [0], [0], [1], [0, 0, 1, 1], [], []>} : vector<1x64xf32>, vector<64x256xf32>, vector<1x256xf32> -> vector<1x256xf32>
    %626 = arith.addf %624, %625 : vector<1x256xf32>
    %627 = arith.negf %626 : vector<1x256xf32>
    %628 = math.exp %627 : vector<1x256xf32>
    %cst_166 = arith.constant 1.000000e+00 : f32
    %629 = vector.broadcast %cst_166 : f32 to vector<1x256xf32>
    %630 = arith.addf %629, %628 : vector<1x256xf32>
    %631 = arith.divf %629, %630 : vector<1x256xf32>
    %632 = math.tanh %626 : vector<1x256xf32>
    %633 = arith.select %554, %632, %631 : vector<1x256xi1>, vector<1x256xf32>
    %634 = vector.extract_strided_slice %633 {offsets = [0, 0], sizes = [1, 64], strides = [1, 1]} : vector<1x256xf32> to vector<1x64xf32>
    %635 = vector.extract_strided_slice %633 {offsets = [0, 64], sizes = [1, 64], strides = [1, 1]} : vector<1x256xf32> to vector<1x64xf32>
    %636 = vector.extract_strided_slice %633 {offsets = [0, 128], sizes = [1, 64], strides = [1, 1]} : vector<1x256xf32> to vector<1x64xf32>
    %637 = vector.extract_strided_slice %633 {offsets = [0, 192], sizes = [1, 64], strides = [1, 1]} : vector<1x256xf32> to vector<1x64xf32>
    %638 = arith.mulf %635, %618 : vector<1x64xf32>
    %639 = arith.mulf %634, %636 : vector<1x64xf32>
    %640 = arith.addf %638, %639 : vector<1x64xf32>
    %641 = math.tanh %640 : vector<1x64xf32>
    %642 = arith.mulf %637, %641 : vector<1x64xf32>
    %643 = arith.index_cast %c3_i32_163 : i32 to index
    %c0_167 = arith.constant 0 : index
    %644 = vector.load %arg21[%643, %c0_167] : memref<8x64xf32, #tpu.memory_space<vmem>>, vector<1x64xf32>
    tpu.vector_store %arg21[%643, %c0_167], %642 {strides = array<i32>} : memref<8x64xf32, #tpu.memory_space<vmem>>, vector<1x64xf32>,
    %c4_i32_168 = arith.constant 4 : i32
    %645 = arith.index_cast %c4_i32_168 : i32 to index
    %c0_169 = arith.constant 0 : index
    %646 = vector.load %arg18[%645, %c0_169] : memref<8x256xf32, #tpu.memory_space<vmem>>, vector<1x256xf32>
    %cst_170 = arith.constant dense<0.000000e+00> : vector<1x256xf32>
    %647 = tpu.matmul %642, %548, %cst_170 {dimension_numbers = #tpu.dot_dimension_numbers<[1], [0], [0], [1], [0, 0, 1, 1], [], []>} : vector<1x64xf32>, vector<64x256xf32>, vector<1x256xf32> -> vector<1x256xf32>
    %648 = arith.addf %646, %647 : vector<1x256xf32>
    %649 = arith.negf %648 : vector<1x256xf32>
    %650 = math.exp %649 : vector<1x256xf32>
    %cst_171 = arith.constant 1.000000e+00 : f32
    %651 = vector.broadcast %cst_171 : f32 to vector<1x256xf32>
    %652 = arith.addf %651, %650 : vector<1x256xf32>
    %653 = arith.divf %651, %652 : vector<1x256xf32>
    %654 = math.tanh %648 : vector<1x256xf32>
    %655 = arith.select %554, %654, %653 : vector<1x256xi1>, vector<1x256xf32>
    %656 = vector.extract_strided_slice %655 {offsets = [0, 0], sizes = [1, 64], strides = [1, 1]} : vector<1x256xf32> to vector<1x64xf32>
    %657 = vector.extract_strided_slice %655 {offsets = [0, 64], sizes = [1, 64], strides = [1, 1]} : vector<1x256xf32> to vector<1x64xf32>
    %658 = vector.extract_strided_slice %655 {offsets = [0, 128], sizes = [1, 64], strides = [1, 1]} : vector<1x256xf32> to vector<1x64xf32>
    %659 = vector.extract_strided_slice %655 {offsets = [0, 192], sizes = [1, 64], strides = [1, 1]} : vector<1x256xf32> to vector<1x64xf32>
    %660 = arith.mulf %657, %640 : vector<1x64xf32>
    %661 = arith.mulf %656, %658 : vector<1x64xf32>
    %662 = arith.addf %660, %661 : vector<1x64xf32>
    %663 = math.tanh %662 : vector<1x64xf32>
    %664 = arith.mulf %659, %663 : vector<1x64xf32>
    %665 = arith.index_cast %c4_i32_168 : i32 to index
    %c0_172 = arith.constant 0 : index
    %666 = vector.load %arg21[%665, %c0_172] : memref<8x64xf32, #tpu.memory_space<vmem>>, vector<1x64xf32>
    tpu.vector_store %arg21[%665, %c0_172], %664 {strides = array<i32>} : memref<8x64xf32, #tpu.memory_space<vmem>>, vector<1x64xf32>,
    %c5_i32_173 = arith.constant 5 : i32
    %667 = arith.index_cast %c5_i32_173 : i32 to index
    %c0_174 = arith.constant 0 : index
    %668 = vector.load %arg18[%667, %c0_174] : memref<8x256xf32, #tpu.memory_space<vmem>>, vector<1x256xf32>
    %cst_175 = arith.constant dense<0.000000e+00> : vector<1x256xf32>
    %669 = tpu.matmul %664, %548, %cst_175 {dimension_numbers = #tpu.dot_dimension_numbers<[1], [0], [0], [1], [0, 0, 1, 1], [], []>} : vector<1x64xf32>, vector<64x256xf32>, vector<1x256xf32> -> vector<1x256xf32>
    %670 = arith.addf %668, %669 : vector<1x256xf32>
    %671 = arith.negf %670 : vector<1x256xf32>
    %672 = math.exp %671 : vector<1x256xf32>
    %cst_176 = arith.constant 1.000000e+00 : f32
    %673 = vector.broadcast %cst_176 : f32 to vector<1x256xf32>
    %674 = arith.addf %673, %672 : vector<1x256xf32>
    %675 = arith.divf %673, %674 : vector<1x256xf32>
    %676 = math.tanh %670 : vector<1x256xf32>
    %677 = arith.select %554, %676, %675 : vector<1x256xi1>, vector<1x256xf32>
    %678 = vector.extract_strided_slice %677 {offsets = [0, 0], sizes = [1, 64], strides = [1, 1]} : vector<1x256xf32> to vector<1x64xf32>
    %679 = vector.extract_strided_slice %677 {offsets = [0, 64], sizes = [1, 64], strides = [1, 1]} : vector<1x256xf32> to vector<1x64xf32>
    %680 = vector.extract_strided_slice %677 {offsets = [0, 128], sizes = [1, 64], strides = [1, 1]} : vector<1x256xf32> to vector<1x64xf32>
    %681 = vector.extract_strided_slice %677 {offsets = [0, 192], sizes = [1, 64], strides = [1, 1]} : vector<1x256xf32> to vector<1x64xf32>
    %682 = arith.mulf %679, %662 : vector<1x64xf32>
    %683 = arith.mulf %678, %680 : vector<1x64xf32>
    %684 = arith.addf %682, %683 : vector<1x64xf32>
    %685 = math.tanh %684 : vector<1x64xf32>
    %686 = arith.mulf %681, %685 : vector<1x64xf32>
    %687 = arith.index_cast %c5_i32_173 : i32 to index
    %c0_177 = arith.constant 0 : index
    %688 = vector.load %arg21[%687, %c0_177] : memref<8x64xf32, #tpu.memory_space<vmem>>, vector<1x64xf32>
    tpu.vector_store %arg21[%687, %c0_177], %686 {strides = array<i32>} : memref<8x64xf32, #tpu.memory_space<vmem>>, vector<1x64xf32>,
    %c6_i32_178 = arith.constant 6 : i32
    %689 = arith.index_cast %c6_i32_178 : i32 to index
    %c0_179 = arith.constant 0 : index
    %690 = vector.load %arg18[%689, %c0_179] : memref<8x256xf32, #tpu.memory_space<vmem>>, vector<1x256xf32>
    %cst_180 = arith.constant dense<0.000000e+00> : vector<1x256xf32>
    %691 = tpu.matmul %686, %548, %cst_180 {dimension_numbers = #tpu.dot_dimension_numbers<[1], [0], [0], [1], [0, 0, 1, 1], [], []>} : vector<1x64xf32>, vector<64x256xf32>, vector<1x256xf32> -> vector<1x256xf32>
    %692 = arith.addf %690, %691 : vector<1x256xf32>
    %693 = arith.negf %692 : vector<1x256xf32>
    %694 = math.exp %693 : vector<1x256xf32>
    %cst_181 = arith.constant 1.000000e+00 : f32
    %695 = vector.broadcast %cst_181 : f32 to vector<1x256xf32>
    %696 = arith.addf %695, %694 : vector<1x256xf32>
    %697 = arith.divf %695, %696 : vector<1x256xf32>
    %698 = math.tanh %692 : vector<1x256xf32>
    %699 = arith.select %554, %698, %697 : vector<1x256xi1>, vector<1x256xf32>
    %700 = vector.extract_strided_slice %699 {offsets = [0, 0], sizes = [1, 64], strides = [1, 1]} : vector<1x256xf32> to vector<1x64xf32>
    %701 = vector.extract_strided_slice %699 {offsets = [0, 64], sizes = [1, 64], strides = [1, 1]} : vector<1x256xf32> to vector<1x64xf32>
    %702 = vector.extract_strided_slice %699 {offsets = [0, 128], sizes = [1, 64], strides = [1, 1]} : vector<1x256xf32> to vector<1x64xf32>
    %703 = vector.extract_strided_slice %699 {offsets = [0, 192], sizes = [1, 64], strides = [1, 1]} : vector<1x256xf32> to vector<1x64xf32>
    %704 = arith.mulf %701, %684 : vector<1x64xf32>
    %705 = arith.mulf %700, %702 : vector<1x64xf32>
    %706 = arith.addf %704, %705 : vector<1x64xf32>
    %707 = math.tanh %706 : vector<1x64xf32>
    %708 = arith.mulf %703, %707 : vector<1x64xf32>
    %709 = arith.index_cast %c6_i32_178 : i32 to index
    %c0_182 = arith.constant 0 : index
    %710 = vector.load %arg21[%709, %c0_182] : memref<8x64xf32, #tpu.memory_space<vmem>>, vector<1x64xf32>
    tpu.vector_store %arg21[%709, %c0_182], %708 {strides = array<i32>} : memref<8x64xf32, #tpu.memory_space<vmem>>, vector<1x64xf32>,
    %c7_i32_183 = arith.constant 7 : i32
    %711 = arith.index_cast %c7_i32_183 : i32 to index
    %c0_184 = arith.constant 0 : index
    %712 = vector.load %arg18[%711, %c0_184] : memref<8x256xf32, #tpu.memory_space<vmem>>, vector<1x256xf32>
    %cst_185 = arith.constant dense<0.000000e+00> : vector<1x256xf32>
    %713 = tpu.matmul %708, %548, %cst_185 {dimension_numbers = #tpu.dot_dimension_numbers<[1], [0], [0], [1], [0, 0, 1, 1], [], []>} : vector<1x64xf32>, vector<64x256xf32>, vector<1x256xf32> -> vector<1x256xf32>
    %714 = arith.addf %712, %713 : vector<1x256xf32>
    %715 = arith.negf %714 : vector<1x256xf32>
    %716 = math.exp %715 : vector<1x256xf32>
    %cst_186 = arith.constant 1.000000e+00 : f32
    %717 = vector.broadcast %cst_186 : f32 to vector<1x256xf32>
    %718 = arith.addf %717, %716 : vector<1x256xf32>
    %719 = arith.divf %717, %718 : vector<1x256xf32>
    %720 = math.tanh %714 : vector<1x256xf32>
    %721 = arith.select %554, %720, %719 : vector<1x256xi1>, vector<1x256xf32>
    %722 = vector.extract_strided_slice %721 {offsets = [0, 0], sizes = [1, 64], strides = [1, 1]} : vector<1x256xf32> to vector<1x64xf32>
    %723 = vector.extract_strided_slice %721 {offsets = [0, 64], sizes = [1, 64], strides = [1, 1]} : vector<1x256xf32> to vector<1x64xf32>
    %724 = vector.extract_strided_slice %721 {offsets = [0, 128], sizes = [1, 64], strides = [1, 1]} : vector<1x256xf32> to vector<1x64xf32>
    %725 = vector.extract_strided_slice %721 {offsets = [0, 192], sizes = [1, 64], strides = [1, 1]} : vector<1x256xf32> to vector<1x64xf32>
    %726 = arith.mulf %723, %706 : vector<1x64xf32>
    %727 = arith.mulf %722, %724 : vector<1x64xf32>
    %728 = arith.addf %726, %727 : vector<1x64xf32>
    %729 = math.tanh %728 : vector<1x64xf32>
    %730 = arith.mulf %725, %729 : vector<1x64xf32>
    %731 = arith.index_cast %c7_i32_183 : i32 to index
    %c0_187 = arith.constant 0 : index
    %732 = vector.load %arg21[%731, %c0_187] : memref<8x64xf32, #tpu.memory_space<vmem>>, vector<1x64xf32>
    tpu.vector_store %arg21[%731, %c0_187], %730 {strides = array<i32>} : memref<8x64xf32, #tpu.memory_space<vmem>>, vector<1x64xf32>,
    %c8_i32_188 = arith.constant 8 : i32
    %c0_189 = arith.constant 0 : index
    %c0_190 = arith.constant 0 : index
    %733 = vector.load %arg21[%c0_189, %c0_190] : memref<8x64xf32, #tpu.memory_space<vmem>>, vector<8x64xf32>
    %c0_191 = arith.constant 0 : index
    %c0_192 = arith.constant 0 : index
    %734 = vector.load %arg13[%c0_191, %c0_192] : memref<64x128xf32, #tpu.memory_space<vmem>>, vector<64x128xf32>
    %cst_193 = arith.constant dense<0.000000e+00> : vector<8x128xf32>
    %735 = tpu.matmul %733, %734, %cst_193 {dimension_numbers = #tpu.dot_dimension_numbers<[1], [0], [0], [1], [0, 0, 1, 1], [], []>} : vector<8x64xf32>, vector<64x128xf32>, vector<8x128xf32> -> vector<8x128xf32>
    %c0_194 = arith.constant 0 : index
    %c0_195 = arith.constant 0 : index
    %736 = vector.load %arg14[%c0_194, %c0_195] : memref<1x128xf32, #tpu.memory_space<vmem>>, vector<1x128xf32>
    %737 = vector.broadcast %736 : vector<1x128xf32> to vector<8x128xf32>
    %738 = arith.addf %735, %737 : vector<8x128xf32>
    %c0_196 = arith.constant 0 : index
    %c0_197 = arith.constant 0 : index
    %739 = vector.load %arg15[%c0_196, %c0_197] : memref<8x128xf32, #tpu.memory_space<vmem>>, vector<8x128xf32>
    tpu.vector_store %arg15[%c0_196, %c0_197], %738 {strides = array<i32>} : memref<8x128xf32, #tpu.memory_space<vmem>>, vector<8x128xf32>,
    return
  }
}

</mosaic_0001>

<llo_original>
// kernel: _lambda_.1
$region0: #{_lambda_.1}
  #allocation0 [shape = 'u32[]', space=smem, size = 0x4, offset = 0x4, fixed_abs, tag = 'smem constant byte address 0x4 - core index']
  #allocation1 [shape = 'u32[144,128]{1,0:T(1,128)}', space=vmem, size = 0x12000, scoped, tag = 'internal scratch']
  #allocation2 [shape = 'f32[8,256]{1,0:T(8,128)}', space=vmem, size = 0x2000, scoped, tag = 'scratch operand']
  #allocation3 [shape = 'f32[8,128]{1,0:T(8,128)}', space=vmem, size = 0x1000, scoped, tag = 'scratch operand']
  #allocation4 [shape = 'f32[8,256]{1,0:T(8,128)}', space=vmem, size = 0x2000, scoped, tag = 'scratch operand']
  #allocation5 [shape = 'f32[8,64]{1,0:T(8,128)}', space=vmem, size = 0x1000, scoped, tag = 'scratch operand']
  #allocation6 [shape = 'f32[8,32]{1,0:T(8,128)}', space=vmem, size = 0x1000, scoped, tag = 'scratch operand']
  #allocation7 [shape = 'f32[8,64]{1,0:T(8,128)}', space=vmem, size = 0x1000, scoped, tag = 'scratch operand']
  %s0 = inlined_call_operand.vmem [shape: f32[8,128], index: 0, kind: input, shape index: {}]
  %s1 = inlined_call_operand.hbm [shape: f32[128,256], index: 1, kind: input, shape index: {}]
  %s2 = inlined_call_operand.hbm [shape: f32[64,256], index: 2, kind: input, shape index: {}]
  %s3 = inlined_call_operand.vmem [shape: f32[1,256], index: 3, kind: input, shape index: {}]
  %s4 = inlined_call_operand.vmem [shape: f32[64,128], index: 4, kind: input, shape index: {}]
  %s5 = inlined_call_operand.hbm [shape: f32[32,128], index: 5, kind: input, shape index: {}]
  %s6 = inlined_call_operand.vmem [shape: f32[1,128], index: 6, kind: input, shape index: {}]
  %s7 = inlined_call_operand.hbm [shape: f32[32,128], index: 7, kind: input, shape index: {}]
  %s8 = inlined_call_operand.hbm [shape: f32[32,128], index: 8, kind: input, shape index: {}]
  %s9 = inlined_call_operand.vmem [shape: f32[1,128], index: 9, kind: input, shape index: {}]
  %s10 = inlined_call_operand.hbm [shape: f32[32,256], index: 10, kind: input, shape index: {}]
  %s11 = inlined_call_operand.hbm [shape: f32[64,256], index: 11, kind: input, shape index: {}]
  %s12 = inlined_call_operand.vmem [shape: f32[1,256], index: 12, kind: input, shape index: {}]
  %s13 = inlined_call_operand.hbm [shape: f32[64,128], index: 13, kind: input, shape index: {}]
  %s14 = inlined_call_operand.vmem [shape: f32[1,128], index: 14, kind: input, shape index: {}]
  %s15 = inlined_call_operand.vmem [shape: f32[8,128], index: 15, kind: output, shape index: {}]
  %s16 = sld [smem:[#allocation0]]
  $region102: #{_lambda_.1} parent=0
    _
  %s18 = ssub.s32 1, %s16
  %s19 = scalar_select 0, %s18, %s16
  $region1: #{_lambda_.1} parent=0
    #allocation8 [shape = 'u8[131072]{0}', space=vmem, size = 0x20000, scoped, tag = 'input window, operand 1, single buffered']
    #allocation9 [shape = 's32[1]{0}', space=sflag, size = 0x4, scoped, tag = 'scoped memory for _lambda_.1']
    #allocation10 [shape = 'u8[65536]{0}', space=vmem, size = 0x10000, scoped, tag = 'input window, operand 2, single buffered']
    #allocation11 [shape = 's32[1]{0}', space=sflag, size = 0x4, scoped, tag = 'scoped memory for _lambda_.1']
    #allocation12 [shape = 'u8[16384]{0}', space=vmem, size = 0x4000, scoped, tag = 'input window, operand 5, single buffered']
    #allocation13 [shape = 'u8[16384]{0}', space=vmem, size = 0x4000, scoped, tag = 'input window, operand 7, single buffered']
    #allocation14 [shape = 's32[1]{0}', space=sflag, size = 0x4, scoped, tag = 'scoped memory for _lambda_.1']
    #allocation15 [shape = 'u8[16384]{0}', space=vmem, size = 0x4000, scoped, tag = 'input window, operand 8, single buffered']
    #allocation16 [shape = 'u8[32768]{0}', space=vmem, size = 0x8000, scoped, tag = 'input window, operand 10, single buffered']
    #allocation17 [shape = 's32[1]{0}', space=sflag, size = 0x4, scoped, tag = 'scoped memory for _lambda_.1']
    #allocation18 [shape = 'u8[65536]{0}', space=vmem, size = 0x10000, scoped, tag = 'input window, operand 11, single buffered']
    #allocation19 [shape = 'u8[32768]{0}', space=vmem, size = 0x8000, scoped, tag = 'input window, operand 13, single buffered']
    #allocation20 [shape = 's32[1]{0}', space=sflag, size = 0x4, scoped, tag = 'scoped memory for _lambda_.1']
    %20 = vsyncpa [#allocation9], 0
    %21 = vsyncpa [#allocation11], 0
    %22 = vsyncpa [#allocation14], 0
    %23 = vsyncpa [#allocation17], 0
    %24 = vsyncpa [#allocation20], 0
    // Predicated region
    $region2: #{_lambda_.1} parent=1 // pred_check
      _
    $region3: #{_lambda_.1} parent=1 // pred_check_branch
      %26 = sbr.rel (0) target = $region5
    $region4: #{_lambda_.1} parent=1 // pred_region
      _
    $region5: #{_lambda_.1} parent=1 // pred_fallthru
      _
    // Predicated region
    $region6: #{_lambda_.1} parent=1 // pred_check
      _
    $region7: #{_lambda_.1} parent=1 // pred_check_branch
      %28 = sbr.rel (0) target = $region9
    $region8: #{_lambda_.1} parent=1 // pred_region
      %s30 = ssub.s32 4096, 4096
      %31 = vsyncadd [#allocation9], %s30
      %s32 = sshll.u32 [#allocation8], 4
      %s33 = int_to_ptr.vmem [resolvable:$true] %s32
      %38 = dma.hbm_to_vmem [thread:$0]  %s1, 4096, %s33, [#allocation9], 256, 256, 16
    $region9: #{_lambda_.1} parent=1 // pred_fallthru
      _
    // Predicated region
    $region10: #{_lambda_.1} parent=1 // pred_check
      _
    $region11: #{_lambda_.1} parent=1 // pred_check_branch
      %40 = sbr.rel (0) target = $region13
    $region12: #{_lambda_.1} parent=1 // pred_region
      %s42 = ssub.s32 2048, 2048
      %43 = vsyncadd [#allocation11], %s42
      %s44 = sshll.u32 [#allocation10], 4
      %s45 = int_to_ptr.vmem [resolvable:$true] %s44
      %50 = dma.hbm_to_vmem [thread:$0]  %s2, 2048, %s45, [#allocation11], 256, 256, 16
    $region13: #{_lambda_.1} parent=1 // pred_fallthru
      _
    // Predicated region
    $region14: #{_lambda_.1} parent=1 // pred_check
      _
    $region15: #{_lambda_.1} parent=1 // pred_check_branch
      %52 = sbr.rel (0) target = $region17
    $region16: #{_lambda_.1} parent=1 // pred_region
      _
    $region17: #{_lambda_.1} parent=1 // pred_fallthru
      _
    // Predicated region
    $region18: #{_lambda_.1} parent=1 // pred_check
      _
    $region19: #{_lambda_.1} parent=1 // pred_check_branch
      %54 = sbr.rel (0) target = $region21
    $region20: #{_lambda_.1} parent=1 // pred_region
      _
    $region21: #{_lambda_.1} parent=1 // pred_fallthru
      _
    // Predicated region
    $region22: #{_lambda_.1} parent=1 // pred_check
      _
    $region23: #{_lambda_.1} parent=1 // pred_check_branch
      %56 = sbr.rel (0) target = $region25
    $region24: #{_lambda_.1} parent=1 // pred_region
      %s58 = ssub.s32 512, 512
      %59 = vsyncadd [#allocation11], %s58
      %s60 = sshll.u32 [#allocation12], 4
      %s61 = int_to_ptr.vmem [resolvable:$true] %s60
      %66 = dma.hbm_to_vmem [thread:$0]  %s5, 512, %s61, [#allocation11], 128, 128, 8
    $region25: #{_lambda_.1} parent=1 // pred_fallthru
      _
    // Predicated region
    $region26: #{_lambda_.1} parent=1 // pred_check
      _
    $region27: #{_lambda_.1} parent=1 // pred_check_branch
      %68 = sbr.rel (0) target = $region29
    $region28: #{_lambda_.1} parent=1 // pred_region
      _
    $region29: #{_lambda_.1} parent=1 // pred_fallthru
      _
    // Predicated region
    $region30: #{_lambda_.1} parent=1 // pred_check
      _
    $region31: #{_lambda_.1} parent=1 // pred_check_branch
      %70 = sbr.rel (0) target = $region33
    $region32: #{_lambda_.1} parent=1 // pred_region
      %s72 = ssub.s32 512, 512
      %73 = vsyncadd [#allocation14], %s72
      %s74 = sshll.u32 [#allocation13], 4
      %s75 = int_to_ptr.vmem [resolvable:$true] %s74
      %80 = dma.hbm_to_vmem [thread:$0]  %s7, 512, %s75, [#allocation14], 128, 128, 8
    $region33: #{_lambda_.1} parent=1 // pred_fallthru
      _
    // Predicated region
    $region34: #{_lambda_.1} parent=1 // pred_check
      _
    $region35: #{_lambda_.1} parent=1 // pred_check_branch
      %82 = sbr.rel (0) target = $region37
    $region36: #{_lambda_.1} parent=1 // pred_region
      %s84 = ssub.s32 512, 512
      %85 = vsyncadd [#allocation14], %s84
      %s86 = sshll.u32 [#allocation15], 4
      %s87 = int_to_ptr.vmem [resolvable:$true] %s86
      %92 = dma.hbm_to_vmem [thread:$0]  %s8, 512, %s87, [#allocation14], 128, 128, 8
    $region37: #{_lambda_.1} parent=1 // pred_fallthru
      _
    // Predicated region
    $region38: #{_lambda_.1} parent=1 // pred_check
      _
    $region39: #{_lambda_.1} parent=1 // pred_check_branch
      %94 = sbr.rel (0) target = $region41
    $region40: #{_lambda_.1} parent=1 // pred_region
      _
    $region41: #{_lambda_.1} parent=1 // pred_fallthru
      _
    // Predicated region
    $region42: #{_lambda_.1} parent=1 // pred_check
      _
    $region43: #{_lambda_.1} parent=1 // pred_check_branch
      %96 = sbr.rel (0) target = $region45
    $region44: #{_lambda_.1} parent=1 // pred_region
      %s98 = ssub.s32 1024, 1024
      %99 = vsyncadd [#allocation17], %s98
      %s100 = sshll.u32 [#allocation16], 4
      %s101 = int_to_ptr.vmem [resolvable:$true] %s100
      %106 = dma.hbm_to_vmem [thread:$0]  %s10, 1024, %s101, [#allocation17], 256, 256, 16
    $region45: #{_lambda_.1} parent=1 // pred_fallthru
      _
    // Predicated region
    $region46: #{_lambda_.1} parent=1 // pred_check
      _
    $region47: #{_lambda_.1} parent=1 // pred_check_branch
      %108 = sbr.rel (0) target = $region49
    $region48: #{_lambda_.1} parent=1 // pred_region
      %s110 = ssub.s32 2048, 2048
      %111 = vsyncadd [#allocation17], %s110
      %s112 = sshll.u32 [#allocation18], 4
      %s113 = int_to_ptr.vmem [resolvable:$true] %s112
      %118 = dma.hbm_to_vmem [thread:$0]  %s11, 2048, %s113, [#allocation17], 256, 256, 16
    $region49: #{_lambda_.1} parent=1 // pred_fallthru
      _
    // Predicated region
    $region50: #{_lambda_.1} parent=1 // pred_check
      _
    $region51: #{_lambda_.1} parent=1 // pred_check_branch
      %120 = sbr.rel (0) target = $region53
    $region52: #{_lambda_.1} parent=1 // pred_region
      _
    $region53: #{_lambda_.1} parent=1 // pred_fallthru
      _
    // Predicated region
    $region54: #{_lambda_.1} parent=1 // pred_check
      _
    $region55: #{_lambda_.1} parent=1 // pred_check_branch
      %122 = sbr.rel (0) target = $region57
    $region56: #{_lambda_.1} parent=1 // pred_region
      %s124 = ssub.s32 1024, 1024
      %125 = vsyncadd [#allocation20], %s124
      %s126 = sshll.u32 [#allocation19], 4
      %s127 = int_to_ptr.vmem [resolvable:$true] %s126
      %132 = dma.hbm_to_vmem [thread:$0]  %s13, 1024, %s127, [#allocation20], 128, 128, 8
    $region57: #{_lambda_.1} parent=1 // pred_fallthru
      _
    // Predicated region
    $region58: #{_lambda_.1} parent=1 // pred_check
      _
    $region59: #{_lambda_.1} parent=1 // pred_check_branch
      %134 = sbr.rel (0) target = $region61
    $region60: #{_lambda_.1} parent=1 // pred_region
      _
    $region61: #{_lambda_.1} parent=1 // pred_fallthru
      _
    // Predicated region
    $region62: #{_lambda_.1} parent=1 // pred_check
      _
    $region63: #{_lambda_.1} parent=1 // pred_check_branch
      %136 = sbr.rel (0) target = $region65
    $region64: #{_lambda_.1} parent=1 // pred_region
      %137 = dma.done [#allocation9], 4096
    $region65: #{_lambda_.1} parent=1 // pred_fallthru
      _
    // Predicated region
    $region66: #{_lambda_.1} parent=1 // pred_check
      _
    $region67: #{_lambda_.1} parent=1 // pred_check_branch
      %139 = sbr.rel (0) target = $region69
    $region68: #{_lambda_.1} parent=1 // pred_region
      %140 = dma.done [#allocation11], 2048
    $region69: #{_lambda_.1} parent=1 // pred_fallthru
      _
    // Predicated region
    $region70: #{_lambda_.1} parent=1 // pred_check
      _
    $region71: #{_lambda_.1} parent=1 // pred_check_branch
      %142 = sbr.rel (0) target = $region73
    $region72: #{_lambda_.1} parent=1 // pred_region
      %143 = dma.done [#allocation11], 512
    $region73: #{_lambda_.1} parent=1 // pred_fallthru
      _
    // Predicated region
    $region74: #{_lambda_.1} parent=1 // pred_check
      _
    $region75: #{_lambda_.1} parent=1 // pred_check_branch
      %145 = sbr.rel (0) target = $region77
    $region76: #{_lambda_.1} parent=1 // pred_region
      %146 = dma.done [#allocation14], 512
    $region77: #{_lambda_.1} parent=1 // pred_fallthru
      _
    // Predicated region
    $region78: #{_lambda_.1} parent=1 // pred_check
      _
    $region79: #{_lambda_.1} parent=1 // pred_check_branch
      %148 = sbr.rel (0) target = $region81
    $region80: #{_lambda_.1} parent=1 // pred_region
      %149 = dma.done [#allocation14], 512
    $region81: #{_lambda_.1} parent=1 // pred_fallthru
      _
    // Predicated region
    $region82: #{_lambda_.1} parent=1 // pred_check
      _
    $region83: #{_lambda_.1} parent=1 // pred_check_branch
      %151 = sbr.rel (0) target = $region85
    $region84: #{_lambda_.1} parent=1 // pred_region
      %152 = dma.done [#allocation17], 1024
    $region85: #{_lambda_.1} parent=1 // pred_fallthru
      _
    // Predicated region
    $region86: #{_lambda_.1} parent=1 // pred_check
      _
    $region87: #{_lambda_.1} parent=1 // pred_check_branch
      %154 = sbr.rel (0) target = $region89
    $region88: #{_lambda_.1} parent=1 // pred_region
      %155 = dma.done [#allocation17], 2048
    $region89: #{_lambda_.1} parent=1 // pred_fallthru
      _
    // Predicated region
    $region90: #{_lambda_.1} parent=1 // pred_check
      _
    $region91: #{_lambda_.1} parent=1 // pred_check_branch
      %157 = sbr.rel (0) target = $region93
    $region92: #{_lambda_.1} parent=1 // pred_region
      %158 = dma.done [#allocation20], 1024
    $region93: #{_lambda_.1} parent=1 // pred_fallthru
      _
    %v159 = vld [vmem:[%s0] sm:$0xff]
    %v160 = vld [vmem:[#allocation8] sm:$0xff]
    %v161 = vld [vmem:[#allocation8 + $0x8] sm:$0xff]
    %v162 = vld [vmem:[#allocation8 + $0x10] sm:$0xff]
    %v163 = vld [vmem:[#allocation8 + $0x18] sm:$0xff]
    %v164 = vld [vmem:[#allocation8 + $0x20] sm:$0xff]
    %v165 = vld [vmem:[#allocation8 + $0x28] sm:$0xff]
    %v166 = vld [vmem:[#allocation8 + $0x30] sm:$0xff]
    %v167 = vld [vmem:[#allocation8 + $0x38] sm:$0xff]
    %v168 = vld [vmem:[#allocation8 + $0x40] sm:$0xff]
    %v169 = vld [vmem:[#allocation8 + $0x48] sm:$0xff]
    %v170 = vld [vmem:[#allocation8 + $0x50] sm:$0xff]
    %v171 = vld [vmem:[#allocation8 + $0x58] sm:$0xff]
    %v172 = vld [vmem:[#allocation8 + $0x60] sm:$0xff]
    %v173 = vld [vmem:[#allocation8 + $0x68] sm:$0xff]
    %v174 = vld [vmem:[#allocation8 + $0x70] sm:$0xff]
    %v175 = vld [vmem:[#allocation8 + $0x78] sm:$0xff]
    %v176 = vld [vmem:[#allocation8 + $0x80] sm:$0xff]
    %v177 = vld [vmem:[#allocation8 + $0x88] sm:$0xff]
    %v178 = vld [vmem:[#allocation8 + $0x90] sm:$0xff]
    %v179 = vld [vmem:[#allocation8 + $0x98] sm:$0xff]
    %v180 = vld [vmem:[#allocation8 + $0xa0] sm:$0xff]
    %v181 = vld [vmem:[#allocation8 + $0xa8] sm:$0xff]
    %v182 = vld [vmem:[#allocation8 + $0xb0] sm:$0xff]
    %v183 = vld [vmem:[#allocation8 + $0xb8] sm:$0xff]
    %v184 = vld [vmem:[#allocation8 + $0xc0] sm:$0xff]
    %v185 = vld [vmem:[#allocation8 + $0xc8] sm:$0xff]
    %v186 = vld [vmem:[#allocation8 + $0xd0] sm:$0xff]
    %v187 = vld [vmem:[#allocation8 + $0xd8] sm:$0xff]
    %v188 = vld [vmem:[#allocation8 + $0xe0] sm:$0xff]
    %v189 = vld [vmem:[#allocation8 + $0xe8] sm:$0xff]
    %v190 = vld [vmem:[#allocation8 + $0xf0] sm:$0xff]
    %v191 = vld [vmem:[#allocation8 + $0xf8] sm:$0xff]
    %v192 = vld [vmem:[%s3] sm:$0x3]
    %v194 = vlaneseq
    %v195 = vshrl.u32 %v194, 7
    %v196 = vsub.s32 0, %v195
    %v197 = vrot.slane %v192, %v196
    %v198 = vlaneseq
    %v199 = vshrl.u32 %v198, 7
    %v200 = vsub.s32 1, %v199
    %v201 = vrot.slane %v192, %v200
    %204 = vmatprep.subr.mxu0 %v161
    %205 = vmatpush1.msra.mxu0 %v160
    %206 = vmatprep.subr.mxu0 %v163
    %207 = vmatpush1.msra.mxu0 %v162
    %208 = vmatprep.subr.mxu0 %v165
    %209 = vmatpush1.msra.mxu0 %v164
    %210 = vmatprep.subr.mxu0 %v167
    %211 = vmatpush1.msra.mxu0 %v166
    %212 = vmatprep.subr.mxu0 %v169
    %213 = vmatpush1.msra.mxu0 %v168
    %214 = vmatprep.subr.mxu0 %v171
    %215 = vmatpush1.msra.mxu0 %v170
    %216 = vmatprep.subr.mxu0 %v173
    %217 = vmatpush1.msra.mxu0 %v172
    %218 = vmatprep.subr.mxu0 %v175
    %219 = vmatpush1.msra.mxu0 %v174
    %220 = vmatprep.subr.mxu0 %v177
    %221 = vmatpush1.msra.mxu0 %v176
    %222 = vmatprep.subr.mxu0 %v179
    %223 = vmatpush1.msra.mxu0 %v178
    %224 = vmatprep.subr.mxu0 %v181
    %225 = vmatpush1.msra.mxu0 %v180
    %226 = vmatprep.subr.mxu0 %v183
    %227 = vmatpush1.msra.mxu0 %v182
    %228 = vmatprep.subr.mxu0 %v185
    %229 = vmatpush1.msra.mxu0 %v184
    %230 = vmatprep.subr.mxu0 %v187
    %231 = vmatpush1.msra.mxu0 %v186
    %232 = vmatprep.subr.mxu0 %v189
    %233 = vmatpush1.msra.mxu0 %v188
    %234 = vmatprep.subr.mxu0 %v191
    %235 = vmatpush1.msra.mxu0 %v190
    %236 = vmatprep.subr.mxu0 0.0
    %237 = vmatpush1.msra.mxu0 0.0
    %238 = vmatprep.subr.mxu0 0.0
    %239 = vmatpush1.msra.mxu0 0.0
    %240 = vmatprep.subr.mxu0 0.0
    %241 = vmatpush1.msra.mxu0 0.0
    %242 = vmatprep.subr.mxu0 0.0
    %243 = vmatpush1.msra.mxu0 0.0
    %244 = vmatprep.subr.mxu0 0.0
    %245 = vmatpush1.msra.mxu0 0.0
    %246 = vmatprep.subr.mxu0 0.0
    %247 = vmatpush1.msra.mxu0 0.0
    %248 = vmatprep.subr.mxu0 0.0
    %249 = vmatpush1.msra.mxu0 0.0
    %250 = vmatprep.subr.mxu0 0.0
    %251 = vmatpush1.msra.mxu0 0.0
    %252 = vmatprep.subr.mxu0 0.0
    %253 = vmatpush1.msra.mxu0 0.0
    %254 = vmatprep.subr.mxu0 0.0
    %255 = vmatpush1.msra.mxu0 0.0
    %256 = vmatprep.subr.mxu0 0.0
    %257 = vmatpush1.msra.mxu0 0.0
    %258 = vmatprep.subr.mxu0 0.0
    %259 = vmatpush1.msra.mxu0 0.0
    %260 = vmatprep.subr.mxu0 0.0
    %261 = vmatpush1.msra.mxu0 0.0
    %262 = vmatprep.subr.mxu0 0.0
    %263 = vmatpush1.msra.mxu0 0.0
    %264 = vmatprep.subr.mxu0 0.0
    %265 = vmatpush1.msra.mxu0 0.0
    %266 = vmatprep.subr.mxu0 0.0
    %267 = vmatpush1.msra.mxu0 0.0
    %268 = vmatprep.mubr.f32.mxu0 0.0
    %269 = vmatmul.mubr.f32.gmra.mrb[0].mxu0 %v159
    %v270 = vpop.f32.mrb[0].mxu0
    %v271 = vadd.f32 %v197, %v270
    %v272 = vpop.f32.mrb[0].mxu0
    %v273 = vadd.f32 %v201, %v272
    %274 = vdwg.mxu0
    %275 = vst [vmem:[#allocation2] sm:$0xff] %v271
    %276 = vst [vmem:[#allocation2 + $0x8] sm:$0xff] %v273
    %v277 = vld [vmem:[#allocation10] sm:$0xff]
    %v278 = vld [vmem:[#allocation10 + $0x8] sm:$0xff]
    %v279 = vld [vmem:[#allocation10 + $0x10] sm:$0xff]
    %v280 = vld [vmem:[#allocation10 + $0x18] sm:$0xff]
    %v281 = vld [vmem:[#allocation10 + $0x20] sm:$0xff]
    %v282 = vld [vmem:[#allocation10 + $0x28] sm:$0xff]
    %v283 = vld [vmem:[#allocation10 + $0x30] sm:$0xff]
    %v284 = vld [vmem:[#allocation10 + $0x38] sm:$0xff]
    %v285 = vld [vmem:[#allocation10 + $0x40] sm:$0xff]
    %v286 = vld [vmem:[#allocation10 + $0x48] sm:$0xff]
    %v287 = vld [vmem:[#allocation10 + $0x50] sm:$0xff]
    %v288 = vld [vmem:[#allocation10 + $0x58] sm:$0xff]
    %v289 = vld [vmem:[#allocation10 + $0x60] sm:$0xff]
    %v290 = vld [vmem:[#allocation10 + $0x68] sm:$0xff]
    %v291 = vld [vmem:[#allocation10 + $0x70] sm:$0xff]
    %v292 = vld [vmem:[#allocation10 + $0x78] sm:$0xff]
    %v293 = vlaneseq
    %v294 = vand.u32 %v293, 127
    %v295 = vadd.s32 %v294, 128
    %vm296 = vcmp.ge.s32.totalorder %v294, 128
    %vm297 = vcmp.ge.s32.totalorder %v295, 128
    %vm298 = vcmp.lt.s32.totalorder %v294, 192
    %vm299 = vcmp.lt.s32.totalorder %v295, 192
    %vm300 = vmand %vm296, %vm298
    %vm301 = vmand %vm297, %vm299
    %v302 = vld [vmem:[#allocation2] ss:$8 sm:$0x3]
    %vm303 = vcmask 523264
    %v305 = vsel %vm303, 0.0, 0
    %307 = vmatprep.subr.mxu0 %v278
    %308 = vmatpush1.msra.mxu0 %v277
    %309 = vmatprep.subr.mxu0 %v280
    %310 = vmatpush1.msra.mxu0 %v279
    %311 = vmatprep.subr.mxu0 %v282
    %312 = vmatpush1.msra.mxu0 %v281
    %313 = vmatprep.subr.mxu0 %v284
    %314 = vmatpush1.msra.mxu0 %v283
    %315 = vmatprep.subr.mxu0 %v286
    %316 = vmatpush1.msra.mxu0 %v285
    %317 = vmatprep.subr.mxu0 %v288
    %318 = vmatpush1.msra.mxu0 %v287
    %319 = vmatprep.subr.mxu0 %v290
    %320 = vmatpush1.msra.mxu0 %v289
    %321 = vmatprep.subr.mxu0 %v292
    %322 = vmatpush1.msra.mxu0 %v291
    %323 = vmatprep.subr.mxu0 0.0
    %324 = vmatpush1.msra.mxu0 0.0
    %325 = vmatprep.subr.mxu0 0.0
    %326 = vmatpush1.msra.mxu0 0.0
    %327 = vmatprep.subr.mxu0 0.0
    %328 = vmatpush1.msra.mxu0 0.0
    %329 = vmatprep.subr.mxu0 0.0
    %330 = vmatpush1.msra.mxu0 0.0
    %331 = vmatprep.subr.mxu0 0.0
    %332 = vmatpush1.msra.mxu0 0.0
    %333 = vmatprep.subr.mxu0 0.0
    %334 = vmatpush1.msra.mxu0 0.0
    %335 = vmatprep.subr.mxu0 0.0
    %336 = vmatpush1.msra.mxu0 0.0
    %337 = vmatprep.subr.mxu0 0.0
    %338 = vmatpush1.msra.mxu0 0.0
    %339 = vmatprep.subr.mxu0 0.0
    %340 = vmatpush1.msra.mxu0 0.0
    %341 = vmatprep.subr.mxu0 0.0
    %342 = vmatpush1.msra.mxu0 0.0
    %343 = vmatprep.subr.mxu0 0.0
    %344 = vmatpush1.msra.mxu0 0.0
    %345 = vmatprep.subr.mxu0 0.0
    %346 = vmatpush1.msra.mxu0 0.0
    %347 = vmatprep.subr.mxu0 0.0
    %348 = vmatpush1.msra.mxu0 0.0
    %349 = vmatprep.subr.mxu0 0.0
    %350 = vmatpush1.msra.mxu0 0.0
    %351 = vmatprep.subr.mxu0 0.0
    %352 = vmatpush1.msra.mxu0 0.0
    %353 = vmatprep.subr.mxu0 0.0
    %354 = vmatpush1.msra.mxu0 0.0
    %355 = vmatprep.subr.mxu0 0.0
    %356 = vmatpush1.msra.mxu0 0.0
    %357 = vmatprep.subr.mxu0 0.0
    %358 = vmatpush1.msra.mxu0 0.0
    %359 = vmatprep.subr.mxu0 0.0
    %360 = vmatpush1.msra.mxu0 0.0
    %361 = vmatprep.subr.mxu0 0.0
    %362 = vmatpush1.msra.mxu0 0.0
    %363 = vmatprep.subr.mxu0 0.0
    %364 = vmatpush1.msra.mxu0 0.0
    %365 = vmatprep.subr.mxu0 0.0
    %366 = vmatpush1.msra.mxu0 0.0
    %367 = vmatprep.subr.mxu0 0.0
    %368 = vmatpush1.msra.mxu0 0.0
    %369 = vmatprep.subr.mxu0 0.0
    %370 = vmatpush1.msra.mxu0 0.0
    %371 = vmatprep.mubr.f32.mxu0 0.0
    %372 = vmatmul.mubr.f32.gmra.mrb[0].mxu0 %v305
    %v373 = vpop.f32.mrb[0].mxu0
    %v374 = vadd.f32 0.0, %v373
    %v375 = vpop.f32.mrb[0].mxu0
    %v376 = vadd.f32 0.0, %v375
    %377 = vdwg.mxu0
    %v380 = vcombine.low %v374, %v376
    %v382 = vunpack.c.l.s4 1966171168
    %v383 = vunpack.c.0.s8 %v382
    %v384 = vlaneseq
    %v385 = vshrl.u32 %v384, 7
    %v386 = vsub.s32 %v383, %v385
    %v387 = vrot.slane %v380, %v386
    %v389 = vunpack.c.l.s4 1966171168
    %v390 = vunpack.c.0.s8 %v389
    %v391 = vlaneseq
    %v392 = vshrl.u32 %v391, 7
    %v393 = vsub.s32 %v390, %v392
    %v394 = vrot.slane %v387, %v393
    %v396 = vadd.f32 %v302, %v394
    %v397 = vxor.u32 %v396, 2147483648
    %v398 = vmul.f32 %v397, 1.442695
    %v399 = vpow.pop %v398
    %v400 = vadd.f32 %v399, 1.0
    %v401 = vrcp.pop %v400
    %v402 = vmul.f32 1.0, %v401
    %v403 = vtanh.pop %v396
    %v405 = vlaneseq
    %v406 = vshrl.u32 %v405, 7
    %v407 = vsub.s32 0, %v406
    %v408 = vrot.slane %v403, %v407
    %v409 = vlaneseq
    %v410 = vshrl.u32 %v409, 7
    %v411 = vsub.s32 1, %v410
    %v412 = vrot.slane %v403, %v411
    %v416 = vlaneseq
    %v417 = vshrl.u32 %v416, 7
    %v418 = vsub.s32 0, %v417
    %v419 = vrot.slane %v402, %v418
    %v420 = vlaneseq
    %v421 = vshrl.u32 %v420, 7
    %v422 = vsub.s32 1, %v421
    %v423 = vrot.slane %v402, %v422
    %v426 = vsel %vm300, %v408, %v419
    %v427 = vsel %vm301, %v412, %v423
    %v428 = vmul.f32 %v426, 0.0
    %v429 = vmul.f32 %v426, %v427
    %431 = vrot.lane.b32.xlu0 %v429, 64
    %v432 = vpop.permute.xlu0 %431
    %v434 = vadd.f32 %v428, %v432
    %v435 = vtanh.pop %v434
    %v436 = vmul.f32 %v427, %v435
    %438 = vrot.lane.b32.xlu0 %v436, 64
    %v439 = vpop.permute.xlu0 %438
    %vm441 = vcmask 516096
    %442 = vst.msk [vmem:[#allocation5] sm:$0x1] %vm441, %v439
    %s443 = scalar_lea.vmem [#allocation2], 1
    %v444 = vld [vmem:[%s443] ss:$8 sm:$0x3]
    %v445 = vsel %vm303, %v439, 0
    %447 = vmatprep.subr.mxu0 %v278
    %448 = vmatpush1.msra.mxu0 %v277
    %449 = vmatprep.subr.mxu0 %v280
    %450 = vmatpush1.msra.mxu0 %v279
    %451 = vmatprep.subr.mxu0 %v282
    %452 = vmatpush1.msra.mxu0 %v281
    %453 = vmatprep.subr.mxu0 %v284
    %454 = vmatpush1.msra.mxu0 %v283
    %455 = vmatprep.subr.mxu0 %v286
    %456 = vmatpush1.msra.mxu0 %v285
    %457 = vmatprep.subr.mxu0 %v288
    %458 = vmatpush1.msra.mxu0 %v287
    %459 = vmatprep.subr.mxu0 %v290
    %460 = vmatpush1.msra.mxu0 %v289
    %461 = vmatprep.subr.mxu0 %v292
    %462 = vmatpush1.msra.mxu0 %v291
    %463 = vmatprep.subr.mxu0 0.0
    %464 = vmatpush1.msra.mxu0 0.0
    %465 = vmatprep.subr.mxu0 0.0
    %466 = vmatpush1.msra.mxu0 0.0
    %467 = vmatprep.subr.mxu0 0.0
    %468 = vmatpush1.msra.mxu0 0.0
    %469 = vmatprep.subr.mxu0 0.0
    %470 = vmatpush1.msra.mxu0 0.0
    %471 = vmatprep.subr.mxu0 0.0
    %472 = vmatpush1.msra.mxu0 0.0
    %473 = vmatprep.subr.mxu0 0.0
    %474 = vmatpush1.msra.mxu0 0.0
    %475 = vmatprep.subr.mxu0 0.0
    %476 = vmatpush1.msra.mxu0 0.0
    %477 = vmatprep.subr.mxu0 0.0
    %478 = vmatpush1.msra.mxu0 0.0
    %479 = vmatprep.subr.mxu0 0.0
    %480 = vmatpush1.msra.mxu0 0.0
    %481 = vmatprep.subr.mxu0 0.0
    %482 = vmatpush1.msra.mxu0 0.0
    %483 = vmatprep.subr.mxu0 0.0
    %484 = vmatpush1.msra.mxu0 0.0
    %485 = vmatprep.subr.mxu0 0.0
    %486 = vmatpush1.msra.mxu0 0.0
    %487 = vmatprep.subr.mxu0 0.0
    %488 = vmatpush1.msra.mxu0 0.0
    %489 = vmatprep.subr.mxu0 0.0
    %490 = vmatpush1.msra.mxu0 0.0
    %491 = vmatprep.subr.mxu0 0.0
    %492 = vmatpush1.msra.mxu0 0.0
    %493 = vmatprep.subr.mxu0 0.0
    %494 = vmatpush1.msra.mxu0 0.0
    %495 = vmatprep.subr.mxu0 0.0
    %496 = vmatpush1.msra.mxu0 0.0
    %497 = vmatprep.subr.mxu0 0.0
    %498 = vmatpush1.msra.mxu0 0.0
    %499 = vmatprep.subr.mxu0 0.0
    %500 = vmatpush1.msra.mxu0 0.0
    %501 = vmatprep.subr.mxu0 0.0
    %502 = vmatpush1.msra.mxu0 0.0
    %503 = vmatprep.subr.mxu0 0.0
    %504 = vmatpush1.msra.mxu0 0.0
    %505 = vmatprep.subr.mxu0 0.0
    %506 = vmatpush1.msra.mxu0 0.0
    %507 = vmatprep.subr.mxu0 0.0
    %508 = vmatpush1.msra.mxu0 0.0
    %509 = vmatprep.subr.mxu0 0.0
    %510 = vmatpush1.msra.mxu0 0.0
    %511 = vmatprep.mubr.f32.mxu0 0.0
    %512 = vmatmul.mubr.f32.gmra.mrb[0].mxu0 %v445
    %v513 = vpop.f32.mrb[0].mxu0
    %v514 = vadd.f32 0.0, %v513
    %v515 = vpop.f32.mrb[0].mxu0
    %v516 = vadd.f32 0.0, %v515
    %517 = vdwg.mxu0
    %v520 = vcombine.low %v514, %v516
    %v522 = vunpack.c.l.s4 1966171168
    %v523 = vunpack.c.0.s8 %v522
    %v524 = vlaneseq
    %v525 = vshrl.u32 %v524, 7
    %v526 = vsub.s32 %v523, %v525
    %v527 = vrot.slane %v520, %v526
    %v529 = vunpack.c.l.s4 1966171168
    %v530 = vunpack.c.0.s8 %v529
    %v531 = vlaneseq
    %v532 = vshrl.u32 %v531, 7
    %v533 = vsub.s32 %v530, %v532
    %v534 = vrot.slane %v527, %v533
    %v536 = vadd.f32 %v444, %v534
    %v537 = vxor.u32 %v536, 2147483648
    %v538 = vmul.f32 %v537, 1.442695
    %v539 = vpow.pop %v538
    %v540 = vadd.f32 %v539, 1.0
    %v541 = vrcp.pop %v540
    %v542 = vmul.f32 1.0, %v541
    %v543 = vtanh.pop %v536
    %v545 = vlaneseq
    %v546 = vshrl.u32 %v545, 7
    %v547 = vsub.s32 0, %v546
    %v548 = vrot.slane %v543, %v547
    %v549 = vlaneseq
    %v550 = vshrl.u32 %v549, 7
    %v551 = vsub.s32 1, %v550
    %v552 = vrot.slane %v543, %v551
    %v556 = vlaneseq
    %v557 = vshrl.u32 %v556, 7
    %v558 = vsub.s32 0, %v557
    %v559 = vrot.slane %v542, %v558
    %v560 = vlaneseq
    %v561 = vshrl.u32 %v560, 7
    %v562 = vsub.s32 1, %v561
    %v563 = vrot.slane %v542, %v562
    %v566 = vsel %vm300, %v548, %v559
    %v567 = vsel %vm301, %v552, %v563
    %v568 = vmul.f32 %v566, %v434
    %v569 = vmul.f32 %v566, %v567
    %571 = vrot.lane.b32.xlu0 %v569, 64
    %v572 = vpop.permute.xlu0 %571
    %v574 = vadd.f32 %v568, %v572
    %v575 = vtanh.pop %v574
    %v576 = vmul.f32 %v567, %v575
    %578 = vrot.lane.b32.xlu0 %v576, 64
    %v579 = vpop.permute.xlu0 %578
    %581 = vst.msk [vmem:[#allocation5 + $0x1] sm:$0x1] %vm441, %v579
    %s582 = scalar_lea.vmem [#allocation2], 2
    %v583 = vld [vmem:[%s582] ss:$8 sm:$0x3]
    %v584 = vsel %vm303, %v579, 0
    %586 = vmatprep.subr.mxu0 %v278
    %587 = vmatpush1.msra.mxu0 %v277
    %588 = vmatprep.subr.mxu0 %v280
    %589 = vmatpush1.msra.mxu0 %v279
    %590 = vmatprep.subr.mxu0 %v282
    %591 = vmatpush1.msra.mxu0 %v281
    %592 = vmatprep.subr.mxu0 %v284
    %593 = vmatpush1.msra.mxu0 %v283
    %594 = vmatprep.subr.mxu0 %v286
    %595 = vmatpush1.msra.mxu0 %v285
    %596 = vmatprep.subr.mxu0 %v288
    %597 = vmatpush1.msra.mxu0 %v287
    %598 = vmatprep.subr.mxu0 %v290
    %599 = vmatpush1.msra.mxu0 %v289
    %600 = vmatprep.subr.mxu0 %v292
    %601 = vmatpush1.msra.mxu0 %v291
    %602 = vmatprep.subr.mxu0 0.0
    %603 = vmatpush1.msra.mxu0 0.0
    %604 = vmatprep.subr.mxu0 0.0
    %605 = vmatpush1.msra.mxu0 0.0
    %606 = vmatprep.subr.mxu0 0.0
    %607 = vmatpush1.msra.mxu0 0.0
    %608 = vmatprep.subr.mxu0 0.0
    %609 = vmatpush1.msra.mxu0 0.0
    %610 = vmatprep.subr.mxu0 0.0
    %611 = vmatpush1.msra.mxu0 0.0
    %612 = vmatprep.subr.mxu0 0.0
    %613 = vmatpush1.msra.mxu0 0.0
    %614 = vmatprep.subr.mxu0 0.0
    %615 = vmatpush1.msra.mxu0 0.0
    %616 = vmatprep.subr.mxu0 0.0
    %617 = vmatpush1.msra.mxu0 0.0
    %618 = vmatprep.subr.mxu0 0.0
    %619 = vmatpush1.msra.mxu0 0.0
    %620 = vmatprep.subr.mxu0 0.0
    %621 = vmatpush1.msra.mxu0 0.0
    %622 = vmatprep.subr.mxu0 0.0
    %623 = vmatpush1.msra.mxu0 0.0
    %624 = vmatprep.subr.mxu0 0.0
    %625 = vmatpush1.msra.mxu0 0.0
    %626 = vmatprep.subr.mxu0 0.0
    %627 = vmatpush1.msra.mxu0 0.0
    %628 = vmatprep.subr.mxu0 0.0
    %629 = vmatpush1.msra.mxu0 0.0
    %630 = vmatprep.subr.mxu0 0.0
    %631 = vmatpush1.msra.mxu0 0.0
    %632 = vmatprep.subr.mxu0 0.0
    %633 = vmatpush1.msra.mxu0 0.0
    %634 = vmatprep.subr.mxu0 0.0
    %635 = vmatpush1.msra.mxu0 0.0
    %636 = vmatprep.subr.mxu0 0.0
    %637 = vmatpush1.msra.mxu0 0.0
    %638 = vmatprep.subr.mxu0 0.0
    %639 = vmatpush1.msra.mxu0 0.0
    %640 = vmatprep.subr.mxu0 0.0
    %641 = vmatpush1.msra.mxu0 0.0
    %642 = vmatprep.subr.mxu0 0.0
    %643 = vmatpush1.msra.mxu0 0.0
    %644 = vmatprep.subr.mxu0 0.0
    %645 = vmatpush1.msra.mxu0 0.0
    %646 = vmatprep.subr.mxu0 0.0
    %647 = vmatpush1.msra.mxu0 0.0
    %648 = vmatprep.subr.mxu0 0.0
    %649 = vmatpush1.msra.mxu0 0.0
    %650 = vmatprep.mubr.f32.mxu0 0.0
    %651 = vmatmul.mubr.f32.gmra.mrb[0].mxu0 %v584
    %v652 = vpop.f32.mrb[0].mxu0
    %v653 = vadd.f32 0.0, %v652
    %v654 = vpop.f32.mrb[0].mxu0
    %v655 = vadd.f32 0.0, %v654
    %656 = vdwg.mxu0
    %v659 = vcombine.low %v653, %v655
    %v661 = vunpack.c.l.s4 1966171168
    %v662 = vunpack.c.0.s8 %v661
    %v663 = vlaneseq
    %v664 = vshrl.u32 %v663, 7
    %v665 = vsub.s32 %v662, %v664
    %v666 = vrot.slane %v659, %v665
    %v668 = vunpack.c.l.s4 1966171168
    %v669 = vunpack.c.0.s8 %v668
    %v670 = vlaneseq
    %v671 = vshrl.u32 %v670, 7
    %v672 = vsub.s32 %v669, %v671
    %v673 = vrot.slane %v666, %v672
    %v675 = vadd.f32 %v583, %v673
    %v676 = vxor.u32 %v675, 2147483648
    %v677 = vmul.f32 %v676, 1.442695
    %v678 = vpow.pop %v677
    %v679 = vadd.f32 %v678, 1.0
    %v680 = vrcp.pop %v679
    %v681 = vmul.f32 1.0, %v680
    %v682 = vtanh.pop %v675
    %v684 = vlaneseq
    %v685 = vshrl.u32 %v684, 7
    %v686 = vsub.s32 0, %v685
    %v687 = vrot.slane %v682, %v686
    %v688 = vlaneseq
    %v689 = vshrl.u32 %v688, 7
    %v690 = vsub.s32 1, %v689
    %v691 = vrot.slane %v682, %v690
    %v695 = vlaneseq
    %v696 = vshrl.u32 %v695, 7
    %v697 = vsub.s32 0, %v696
    %v698 = vrot.slane %v681, %v697
    %v699 = vlaneseq
    %v700 = vshrl.u32 %v699, 7
    %v701 = vsub.s32 1, %v700
    %v702 = vrot.slane %v681, %v701
    %v705 = vsel %vm300, %v687, %v698
    %v706 = vsel %vm301, %v691, %v702
    %v707 = vmul.f32 %v705, %v574
    %v708 = vmul.f32 %v705, %v706
    %710 = vrot.lane.b32.xlu0 %v708, 64
    %v711 = vpop.permute.xlu0 %710
    %v713 = vadd.f32 %v707, %v711
    %v714 = vtanh.pop %v713
    %v715 = vmul.f32 %v706, %v714
    %717 = vrot.lane.b32.xlu0 %v715, 64
    %v718 = vpop.permute.xlu0 %717
    %720 = vst.msk [vmem:[#allocation5 + $0x2] sm:$0x1] %vm441, %v718
    %s721 = scalar_lea.vmem [#allocation2], 3
    %v722 = vld [vmem:[%s721] ss:$8 sm:$0x3]
    %v723 = vsel %vm303, %v718, 0
    %725 = vmatprep.subr.mxu0 %v278
    %726 = vmatpush1.msra.mxu0 %v277
    %727 = vmatprep.subr.mxu0 %v280
    %728 = vmatpush1.msra.mxu0 %v279
    %729 = vmatprep.subr.mxu0 %v282
    %730 = vmatpush1.msra.mxu0 %v281
    %731 = vmatprep.subr.mxu0 %v284
    %732 = vmatpush1.msra.mxu0 %v283
    %733 = vmatprep.subr.mxu0 %v286
    %734 = vmatpush1.msra.mxu0 %v285
    %735 = vmatprep.subr.mxu0 %v288
    %736 = vmatpush1.msra.mxu0 %v287
    %737 = vmatprep.subr.mxu0 %v290
    %738 = vmatpush1.msra.mxu0 %v289
    %739 = vmatprep.subr.mxu0 %v292
    %740 = vmatpush1.msra.mxu0 %v291
    %741 = vmatprep.subr.mxu0 0.0
    %742 = vmatpush1.msra.mxu0 0.0
    %743 = vmatprep.subr.mxu0 0.0
    %744 = vmatpush1.msra.mxu0 0.0
    %745 = vmatprep.subr.mxu0 0.0
    %746 = vmatpush1.msra.mxu0 0.0
    %747 = vmatprep.subr.mxu0 0.0
    %748 = vmatpush1.msra.mxu0 0.0
    %749 = vmatprep.subr.mxu0 0.0
    %750 = vmatpush1.msra.mxu0 0.0
    %751 = vmatprep.subr.mxu0 0.0
    %752 = vmatpush1.msra.mxu0 0.0
    %753 = vmatprep.subr.mxu0 0.0
    %754 = vmatpush1.msra.mxu0 0.0
    %755 = vmatprep.subr.mxu0 0.0
    %756 = vmatpush1.msra.mxu0 0.0
    %757 = vmatprep.subr.mxu0 0.0
    %758 = vmatpush1.msra.mxu0 0.0
    %759 = vmatprep.subr.mxu0 0.0
    %760 = vmatpush1.msra.mxu0 0.0
    %761 = vmatprep.subr.mxu0 0.0
    %762 = vmatpush1.msra.mxu0 0.0
    %763 = vmatprep.subr.mxu0 0.0
    %764 = vmatpush1.msra.mxu0 0.0
    %765 = vmatprep.subr.mxu0 0.0
    %766 = vmatpush1.msra.mxu0 0.0
    %767 = vmatprep.subr.mxu0 0.0
    %768 = vmatpush1.msra.mxu0 0.0
    %769 = vmatprep.subr.mxu0 0.0
    %770 = vmatpush1.msra.mxu0 0.0
    %771 = vmatprep.subr.mxu0 0.0
    %772 = vmatpush1.msra.mxu0 0.0
    %773 = vmatprep.subr.mxu0 0.0
    %774 = vmatpush1.msra.mxu0 0.0
    %775 = vmatprep.subr.mxu0 0.0
    %776 = vmatpush1.msra.mxu0 0.0
    %777 = vmatprep.subr.mxu0 0.0
    %778 = vmatpush1.msra.mxu0 0.0
    %779 = vmatprep.subr.mxu0 0.0
    %780 = vmatpush1.msra.mxu0 0.0
    %781 = vmatprep.subr.mxu0 0.0
    %782 = vmatpush1.msra.mxu0 0.0
    %783 = vmatprep.subr.mxu0 0.0
    %784 = vmatpush1.msra.mxu0 0.0
    %785 = vmatprep.subr.mxu0 0.0
    %786 = vmatpush1.msra.mxu0 0.0
    %787 = vmatprep.subr.mxu0 0.0
    %788 = vmatpush1.msra.mxu0 0.0
    %789 = vmatprep.mubr.f32.mxu0 0.0
    %790 = vmatmul.mubr.f32.gmra.mrb[0].mxu0 %v723
    %v791 = vpop.f32.mrb[0].mxu0
    %v792 = vadd.f32 0.0, %v791
    %v793 = vpop.f32.mrb[0].mxu0
    %v794 = vadd.f32 0.0, %v793
    %795 = vdwg.mxu0
    %v798 = vcombine.low %v792, %v794
    %v800 = vunpack.c.l.s4 1966171168
    %v801 = vunpack.c.0.s8 %v800
    %v802 = vlaneseq
    %v803 = vshrl.u32 %v802, 7
    %v804 = vsub.s32 %v801, %v803
    %v805 = vrot.slane %v798, %v804
    %v807 = vunpack.c.l.s4 1966171168
    %v808 = vunpack.c.0.s8 %v807
    %v809 = vlaneseq
    %v810 = vshrl.u32 %v809, 7
    %v811 = vsub.s32 %v808, %v810
    %v812 = vrot.slane %v805, %v811
    %v814 = vadd.f32 %v722, %v812
    %v815 = vxor.u32 %v814, 2147483648
    %v816 = vmul.f32 %v815, 1.442695
    %v817 = vpow.pop %v816
    %v818 = vadd.f32 %v817, 1.0
    %v819 = vrcp.pop %v818
    %v820 = vmul.f32 1.0, %v819
    %v821 = vtanh.pop %v814
    %v823 = vlaneseq
    %v824 = vshrl.u32 %v823, 7
    %v825 = vsub.s32 0, %v824
    %v826 = vrot.slane %v821, %v825
    %v827 = vlaneseq
    %v828 = vshrl.u32 %v827, 7
    %v829 = vsub.s32 1, %v828
    %v830 = vrot.slane %v821, %v829
    %v834 = vlaneseq
    %v835 = vshrl.u32 %v834, 7
    %v836 = vsub.s32 0, %v835
    %v837 = vrot.slane %v820, %v836
    %v838 = vlaneseq
    %v839 = vshrl.u32 %v838, 7
    %v840 = vsub.s32 1, %v839
    %v841 = vrot.slane %v820, %v840
    %v844 = vsel %vm300, %v826, %v837
    %v845 = vsel %vm301, %v830, %v841
    %v846 = vmul.f32 %v844, %v713
    %v847 = vmul.f32 %v844, %v845
    %849 = vrot.lane.b32.xlu0 %v847, 64
    %v850 = vpop.permute.xlu0 %849
    %v852 = vadd.f32 %v846, %v850
    %v853 = vtanh.pop %v852
    %v854 = vmul.f32 %v845, %v853
    %856 = vrot.lane.b32.xlu0 %v854, 64
    %v857 = vpop.permute.xlu0 %856
    %859 = vst.msk [vmem:[#allocation5 + $0x3] sm:$0x1] %vm441, %v857
    %s860 = scalar_lea.vmem [#allocation2], 4
    %v861 = vld [vmem:[%s860] ss:$8 sm:$0x3]
    %v862 = vsel %vm303, %v857, 0
    %864 = vmatprep.subr.mxu0 %v278
    %865 = vmatpush1.msra.mxu0 %v277
    %866 = vmatprep.subr.mxu0 %v280
    %867 = vmatpush1.msra.mxu0 %v279
    %868 = vmatprep.subr.mxu0 %v282
    %869 = vmatpush1.msra.mxu0 %v281
    %870 = vmatprep.subr.mxu0 %v284
    %871 = vmatpush1.msra.mxu0 %v283
    %872 = vmatprep.subr.mxu0 %v286
    %873 = vmatpush1.msra.mxu0 %v285
    %874 = vmatprep.subr.mxu0 %v288
    %875 = vmatpush1.msra.mxu0 %v287
    %876 = vmatprep.subr.mxu0 %v290
    %877 = vmatpush1.msra.mxu0 %v289
    %878 = vmatprep.subr.mxu0 %v292
    %879 = vmatpush1.msra.mxu0 %v291
    %880 = vmatprep.subr.mxu0 0.0
    %881 = vmatpush1.msra.mxu0 0.0
    %882 = vmatprep.subr.mxu0 0.0
    %883 = vmatpush1.msra.mxu0 0.0
    %884 = vmatprep.subr.mxu0 0.0
    %885 = vmatpush1.msra.mxu0 0.0
    %886 = vmatprep.subr.mxu0 0.0
    %887 = vmatpush1.msra.mxu0 0.0
    %888 = vmatprep.subr.mxu0 0.0
    %889 = vmatpush1.msra.mxu0 0.0
    %890 = vmatprep.subr.mxu0 0.0
    %891 = vmatpush1.msra.mxu0 0.0
    %892 = vmatprep.subr.mxu0 0.0
    %893 = vmatpush1.msra.mxu0 0.0
    %894 = vmatprep.subr.mxu0 0.0
    %895 = vmatpush1.msra.mxu0 0.0
    %896 = vmatprep.subr.mxu0 0.0
    %897 = vmatpush1.msra.mxu0 0.0
    %898 = vmatprep.subr.mxu0 0.0
    %899 = vmatpush1.msra.mxu0 0.0
    %900 = vmatprep.subr.mxu0 0.0
    %901 = vmatpush1.msra.mxu0 0.0
    %902 = vmatprep.subr.mxu0 0.0
    %903 = vmatpush1.msra.mxu0 0.0
    %904 = vmatprep.subr.mxu0 0.0
    %905 = vmatpush1.msra.mxu0 0.0
    %906 = vmatprep.subr.mxu0 0.0
    %907 = vmatpush1.msra.mxu0 0.0
    %908 = vmatprep.subr.mxu0 0.0
    %909 = vmatpush1.msra.mxu0 0.0
    %910 = vmatprep.subr.mxu0 0.0
    %911 = vmatpush1.msra.mxu0 0.0
    %912 = vmatprep.subr.mxu0 0.0
    %913 = vmatpush1.msra.mxu0 0.0
    %914 = vmatprep.subr.mxu0 0.0
    %915 = vmatpush1.msra.mxu0 0.0
    %916 = vmatprep.subr.mxu0 0.0
    %917 = vmatpush1.msra.mxu0 0.0
    %918 = vmatprep.subr.mxu0 0.0
    %919 = vmatpush1.msra.mxu0 0.0
    %920 = vmatprep.subr.mxu0 0.0
    %921 = vmatpush1.msra.mxu0 0.0
    %922 = vmatprep.subr.mxu0 0.0
    %923 = vmatpush1.msra.mxu0 0.0
    %924 = vmatprep.subr.mxu0 0.0
    %925 = vmatpush1.msra.mxu0 0.0
    %926 = vmatprep.subr.mxu0 0.0
    %927 = vmatpush1.msra.mxu0 0.0
    %928 = vmatprep.mubr.f32.mxu0 0.0
    %929 = vmatmul.mubr.f32.gmra.mrb[0].mxu0 %v862
    %v930 = vpop.f32.mrb[0].mxu0
    %v931 = vadd.f32 0.0, %v930
    %v932 = vpop.f32.mrb[0].mxu0
    %v933 = vadd.f32 0.0, %v932
    %934 = vdwg.mxu0
    %v937 = vcombine.low %v931, %v933
    %v939 = vunpack.c.l.s4 1966171168
    %v940 = vunpack.c.0.s8 %v939
    %v941 = vlaneseq
    %v942 = vshrl.u32 %v941, 7
    %v943 = vsub.s32 %v940, %v942
    %v944 = vrot.slane %v937, %v943
    %v946 = vunpack.c.l.s4 1966171168
    %v947 = vunpack.c.0.s8 %v946
    %v948 = vlaneseq
    %v949 = vshrl.u32 %v948, 7
    %v950 = vsub.s32 %v947, %v949
    %v951 = vrot.slane %v944, %v950
    %v953 = vadd.f32 %v861, %v951
    %v954 = vxor.u32 %v953, 2147483648
    %v955 = vmul.f32 %v954, 1.442695
    %v956 = vpow.pop %v955
    %v957 = vadd.f32 %v956, 1.0
    %v958 = vrcp.pop %v957
    %v959 = vmul.f32 1.0, %v958
    %v960 = vtanh.pop %v953
    %v962 = vlaneseq
    %v963 = vshrl.u32 %v962, 7
    %v964 = vsub.s32 0, %v963
    %v965 = vrot.slane %v960, %v964
    %v966 = vlaneseq
    %v967 = vshrl.u32 %v966, 7
    %v968 = vsub.s32 1, %v967
    %v969 = vrot.slane %v960, %v968
    %v973 = vlaneseq
    %v974 = vshrl.u32 %v973, 7
    %v975 = vsub.s32 0, %v974
    %v976 = vrot.slane %v959, %v975
    %v977 = vlaneseq
    %v978 = vshrl.u32 %v977, 7
    %v979 = vsub.s32 1, %v978
    %v980 = vrot.slane %v959, %v979
    %v983 = vsel %vm300, %v965, %v976
    %v984 = vsel %vm301, %v969, %v980
    %v985 = vmul.f32 %v983, %v852
    %v986 = vmul.f32 %v983, %v984
    %988 = vrot.lane.b32.xlu0 %v986, 64
    %v989 = vpop.permute.xlu0 %988
    %v991 = vadd.f32 %v985, %v989
    %v992 = vtanh.pop %v991
    %v993 = vmul.f32 %v984, %v992
    %995 = vrot.lane.b32.xlu0 %v993, 64
    %v996 = vpop.permute.xlu0 %995
    %998 = vst.msk [vmem:[#allocation5 + $0x4] sm:$0x1] %vm441, %v996
    %s999 = scalar_lea.vmem [#allocation2], 5
    %v1000 = vld [vmem:[%s999] ss:$8 sm:$0x3]
    %v1001 = vsel %vm303, %v996, 0
    %1003 = vmatprep.subr.mxu0 %v278
    %1004 = vmatpush1.msra.mxu0 %v277
    %1005 = vmatprep.subr.mxu0 %v280
    %1006 = vmatpush1.msra.mxu0 %v279
    %1007 = vmatprep.subr.mxu0 %v282
    %1008 = vmatpush1.msra.mxu0 %v281
    %1009 = vmatprep.subr.mxu0 %v284
    %1010 = vmatpush1.msra.mxu0 %v283
    %1011 = vmatprep.subr.mxu0 %v286
    %1012 = vmatpush1.msra.mxu0 %v285
    %1013 = vmatprep.subr.mxu0 %v288
    %1014 = vmatpush1.msra.mxu0 %v287
    %1015 = vmatprep.subr.mxu0 %v290
    %1016 = vmatpush1.msra.mxu0 %v289
    %1017 = vmatprep.subr.mxu0 %v292
    %1018 = vmatpush1.msra.mxu0 %v291
    %1019 = vmatprep.subr.mxu0 0.0
    %1020 = vmatpush1.msra.mxu0 0.0
    %1021 = vmatprep.subr.mxu0 0.0
    %1022 = vmatpush1.msra.mxu0 0.0
    %1023 = vmatprep.subr.mxu0 0.0
    %1024 = vmatpush1.msra.mxu0 0.0
    %1025 = vmatprep.subr.mxu0 0.0
    %1026 = vmatpush1.msra.mxu0 0.0
    %1027 = vmatprep.subr.mxu0 0.0
    %1028 = vmatpush1.msra.mxu0 0.0
    %1029 = vmatprep.subr.mxu0 0.0
    %1030 = vmatpush1.msra.mxu0 0.0
    %1031 = vmatprep.subr.mxu0 0.0
    %1032 = vmatpush1.msra.mxu0 0.0
    %1033 = vmatprep.subr.mxu0 0.0
    %1034 = vmatpush1.msra.mxu0 0.0
    %1035 = vmatprep.subr.mxu0 0.0
    %1036 = vmatpush1.msra.mxu0 0.0
    %1037 = vmatprep.subr.mxu0 0.0
    %1038 = vmatpush1.msra.mxu0 0.0
    %1039 = vmatprep.subr.mxu0 0.0
    %1040 = vmatpush1.msra.mxu0 0.0
    %1041 = vmatprep.subr.mxu0 0.0
    %1042 = vmatpush1.msra.mxu0 0.0
    %1043 = vmatprep.subr.mxu0 0.0
    %1044 = vmatpush1.msra.mxu0 0.0
    %1045 = vmatprep.subr.mxu0 0.0
    %1046 = vmatpush1.msra.mxu0 0.0
    %1047 = vmatprep.subr.mxu0 0.0
    %1048 = vmatpush1.msra.mxu0 0.0
    %1049 = vmatprep.subr.mxu0 0.0
    %1050 = vmatpush1.msra.mxu0 0.0
    %1051 = vmatprep.subr.mxu0 0.0
    %1052 = vmatpush1.msra.mxu0 0.0
    %1053 = vmatprep.subr.mxu0 0.0
    %1054 = vmatpush1.msra.mxu0 0.0
    %1055 = vmatprep.subr.mxu0 0.0
    %1056 = vmatpush1.msra.mxu0 0.0
    %1057 = vmatprep.subr.mxu0 0.0
    %1058 = vmatpush1.msra.mxu0 0.0
    %1059 = vmatprep.subr.mxu0 0.0
    %1060 = vmatpush1.msra.mxu0 0.0
    %1061 = vmatprep.subr.mxu0 0.0
    %1062 = vmatpush1.msra.mxu0 0.0
    %1063 = vmatprep.subr.mxu0 0.0
    %1064 = vmatpush1.msra.mxu0 0.0
    %1065 = vmatprep.subr.mxu0 0.0
    %1066 = vmatpush1.msra.mxu0 0.0
    %1067 = vmatprep.mubr.f32.mxu0 0.0
    %1068 = vmatmul.mubr.f32.gmra.mrb[0].mxu0 %v1001
    %v1069 = vpop.f32.mrb[0].mxu0
    %v1070 = vadd.f32 0.0, %v1069
    %v1071 = vpop.f32.mrb[0].mxu0
    %v1072 = vadd.f32 0.0, %v1071
    %1073 = vdwg.mxu0
    %v1076 = vcombine.low %v1070, %v1072
    %v1078 = vunpack.c.l.s4 1966171168
    %v1079 = vunpack.c.0.s8 %v1078
    %v1080 = vlaneseq
    %v1081 = vshrl.u32 %v1080, 7
    %v1082 = vsub.s32 %v1079, %v1081
    %v1083 = vrot.slane %v1076, %v1082
    %v1085 = vunpack.c.l.s4 1966171168
    %v1086 = vunpack.c.0.s8 %v1085
    %v1087 = vlaneseq
    %v1088 = vshrl.u32 %v1087, 7
    %v1089 = vsub.s32 %v1086, %v1088
    %v1090 = vrot.slane %v1083, %v1089
    %v1092 = vadd.f32 %v1000, %v1090
    %v1093 = vxor.u32 %v1092, 2147483648
    %v1094 = vmul.f32 %v1093, 1.442695
    %v1095 = vpow.pop %v1094
    %v1096 = vadd.f32 %v1095, 1.0
    %v1097 = vrcp.pop %v1096
    %v1098 = vmul.f32 1.0, %v1097
    %v1099 = vtanh.pop %v1092
    %v1101 = vlaneseq
    %v1102 = vshrl.u32 %v1101, 7
    %v1103 = vsub.s32 0, %v1102
    %v1104 = vrot.slane %v1099, %v1103
    %v1105 = vlaneseq
    %v1106 = vshrl.u32 %v1105, 7
    %v1107 = vsub.s32 1, %v1106
    %v1108 = vrot.slane %v1099, %v1107
    %v1112 = vlaneseq
    %v1113 = vshrl.u32 %v1112, 7
    %v1114 = vsub.s32 0, %v1113
    %v1115 = vrot.slane %v1098, %v1114
    %v1116 = vlaneseq
    %v1117 = vshrl.u32 %v1116, 7
    %v1118 = vsub.s32 1, %v1117
    %v1119 = vrot.slane %v1098, %v1118
    %v1122 = vsel %vm300, %v1104, %v1115
    %v1123 = vsel %vm301, %v1108, %v1119
    %v1124 = vmul.f32 %v1122, %v991
    %v1125 = vmul.f32 %v1122, %v1123
    %1127 = vrot.lane.b32.xlu0 %v1125, 64
    %v1128 = vpop.permute.xlu0 %1127
    %v1130 = vadd.f32 %v1124, %v1128
    %v1131 = vtanh.pop %v1130
    %v1132 = vmul.f32 %v1123, %v1131
    %1134 = vrot.lane.b32.xlu0 %v1132, 64
    %v1135 = vpop.permute.xlu0 %1134
    %1137 = vst.msk [vmem:[#allocation5 + $0x5] sm:$0x1] %vm441, %v1135
    %s1138 = scalar_lea.vmem [#allocation2], 6
    %v1139 = vld [vmem:[%s1138] ss:$8 sm:$0x3]
    %v1140 = vsel %vm303, %v1135, 0
    %1142 = vmatprep.subr.mxu0 %v278
    %1143 = vmatpush1.msra.mxu0 %v277
    %1144 = vmatprep.subr.mxu0 %v280
    %1145 = vmatpush1.msra.mxu0 %v279
    %1146 = vmatprep.subr.mxu0 %v282
    %1147 = vmatpush1.msra.mxu0 %v281
    %1148 = vmatprep.subr.mxu0 %v284
    %1149 = vmatpush1.msra.mxu0 %v283
    %1150 = vmatprep.subr.mxu0 %v286
    %1151 = vmatpush1.msra.mxu0 %v285
    %1152 = vmatprep.subr.mxu0 %v288
    %1153 = vmatpush1.msra.mxu0 %v287
    %1154 = vmatprep.subr.mxu0 %v290
    %1155 = vmatpush1.msra.mxu0 %v289
    %1156 = vmatprep.subr.mxu0 %v292
    %1157 = vmatpush1.msra.mxu0 %v291
    %1158 = vmatprep.subr.mxu0 0.0
    %1159 = vmatpush1.msra.mxu0 0.0
    %1160 = vmatprep.subr.mxu0 0.0
    %1161 = vmatpush1.msra.mxu0 0.0
    %1162 = vmatprep.subr.mxu0 0.0
    %1163 = vmatpush1.msra.mxu0 0.0
    %1164 = vmatprep.subr.mxu0 0.0
    %1165 = vmatpush1.msra.mxu0 0.0
    %1166 = vmatprep.subr.mxu0 0.0
    %1167 = vmatpush1.msra.mxu0 0.0
    %1168 = vmatprep.subr.mxu0 0.0
    %1169 = vmatpush1.msra.mxu0 0.0
    %1170 = vmatprep.subr.mxu0 0.0
    %1171 = vmatpush1.msra.mxu0 0.0
    %1172 = vmatprep.subr.mxu0 0.0
    %1173 = vmatpush1.msra.mxu0 0.0
    %1174 = vmatprep.subr.mxu0 0.0
    %1175 = vmatpush1.msra.mxu0 0.0
    %1176 = vmatprep.subr.mxu0 0.0
    %1177 = vmatpush1.msra.mxu0 0.0
    %1178 = vmatprep.subr.mxu0 0.0
    %1179 = vmatpush1.msra.mxu0 0.0
    %1180 = vmatprep.subr.mxu0 0.0
    %1181 = vmatpush1.msra.mxu0 0.0
    %1182 = vmatprep.subr.mxu0 0.0
    %1183 = vmatpush1.msra.mxu0 0.0
    %1184 = vmatprep.subr.mxu0 0.0
    %1185 = vmatpush1.msra.mxu0 0.0
    %1186 = vmatprep.subr.mxu0 0.0
    %1187 = vmatpush1.msra.mxu0 0.0
    %1188 = vmatprep.subr.mxu0 0.0
    %1189 = vmatpush1.msra.mxu0 0.0
    %1190 = vmatprep.subr.mxu0 0.0
    %1191 = vmatpush1.msra.mxu0 0.0
    %1192 = vmatprep.subr.mxu0 0.0
    %1193 = vmatpush1.msra.mxu0 0.0
    %1194 = vmatprep.subr.mxu0 0.0
    %1195 = vmatpush1.msra.mxu0 0.0
    %1196 = vmatprep.subr.mxu0 0.0
    %1197 = vmatpush1.msra.mxu0 0.0
    %1198 = vmatprep.subr.mxu0 0.0
    %1199 = vmatpush1.msra.mxu0 0.0
    %1200 = vmatprep.subr.mxu0 0.0
    %1201 = vmatpush1.msra.mxu0 0.0
    %1202 = vmatprep.subr.mxu0 0.0
    %1203 = vmatpush1.msra.mxu0 0.0
    %1204 = vmatprep.subr.mxu0 0.0
    %1205 = vmatpush1.msra.mxu0 0.0
    %1206 = vmatprep.mubr.f32.mxu0 0.0
    %1207 = vmatmul.mubr.f32.gmra.mrb[0].mxu0 %v1140
    %v1208 = vpop.f32.mrb[0].mxu0
    %v1209 = vadd.f32 0.0, %v1208
    %v1210 = vpop.f32.mrb[0].mxu0
    %v1211 = vadd.f32 0.0, %v1210
    %1212 = vdwg.mxu0
    %v1215 = vcombine.low %v1209, %v1211
    %v1217 = vunpack.c.l.s4 1966171168
    %v1218 = vunpack.c.0.s8 %v1217
    %v1219 = vlaneseq
    %v1220 = vshrl.u32 %v1219, 7
    %v1221 = vsub.s32 %v1218, %v1220
    %v1222 = vrot.slane %v1215, %v1221
    %v1224 = vunpack.c.l.s4 1966171168
    %v1225 = vunpack.c.0.s8 %v1224
    %v1226 = vlaneseq
    %v1227 = vshrl.u32 %v1226, 7
    %v1228 = vsub.s32 %v1225, %v1227
    %v1229 = vrot.slane %v1222, %v1228
    %v1231 = vadd.f32 %v1139, %v1229
    %v1232 = vxor.u32 %v1231, 2147483648
    %v1233 = vmul.f32 %v1232, 1.442695
    %v1234 = vpow.pop %v1233
    %v1235 = vadd.f32 %v1234, 1.0
    %v1236 = vrcp.pop %v1235
    %v1237 = vmul.f32 1.0, %v1236
    %v1238 = vtanh.pop %v1231
    %v1240 = vlaneseq
    %v1241 = vshrl.u32 %v1240, 7
    %v1242 = vsub.s32 0, %v1241
    %v1243 = vrot.slane %v1238, %v1242
    %v1244 = vlaneseq
    %v1245 = vshrl.u32 %v1244, 7
    %v1246 = vsub.s32 1, %v1245
    %v1247 = vrot.slane %v1238, %v1246
    %v1251 = vlaneseq
    %v1252 = vshrl.u32 %v1251, 7
    %v1253 = vsub.s32 0, %v1252
    %v1254 = vrot.slane %v1237, %v1253
    %v1255 = vlaneseq
    %v1256 = vshrl.u32 %v1255, 7
    %v1257 = vsub.s32 1, %v1256
    %v1258 = vrot.slane %v1237, %v1257
    %v1261 = vsel %vm300, %v1243, %v1254
    %v1262 = vsel %vm301, %v1247, %v1258
    %v1263 = vmul.f32 %v1261, %v1130
    %v1264 = vmul.f32 %v1261, %v1262
    %1266 = vrot.lane.b32.xlu0 %v1264, 64
    %v1267 = vpop.permute.xlu0 %1266
    %v1269 = vadd.f32 %v1263, %v1267
    %v1270 = vtanh.pop %v1269
    %v1271 = vmul.f32 %v1262, %v1270
    %1273 = vrot.lane.b32.xlu0 %v1271, 64
    %v1274 = vpop.permute.xlu0 %1273
    %1276 = vst.msk [vmem:[#allocation5 + $0x6] sm:$0x1] %vm441, %v1274
    %s1277 = scalar_lea.vmem [#allocation2], 7
    %v1278 = vld [vmem:[%s1277] ss:$8 sm:$0x3]
    %v1279 = vsel %vm303, %v1274, 0
    %1281 = vmatprep.subr.mxu0 %v278
    %1282 = vmatpush1.msra.mxu0 %v277
    %1283 = vmatprep.subr.mxu0 %v280
    %1284 = vmatpush1.msra.mxu0 %v279
    %1285 = vmatprep.subr.mxu0 %v282
    %1286 = vmatpush1.msra.mxu0 %v281
    %1287 = vmatprep.subr.mxu0 %v284
    %1288 = vmatpush1.msra.mxu0 %v283
    %1289 = vmatprep.subr.mxu0 %v286
    %1290 = vmatpush1.msra.mxu0 %v285
    %1291 = vmatprep.subr.mxu0 %v288
    %1292 = vmatpush1.msra.mxu0 %v287
    %1293 = vmatprep.subr.mxu0 %v290
    %1294 = vmatpush1.msra.mxu0 %v289
    %1295 = vmatprep.subr.mxu0 %v292
    %1296 = vmatpush1.msra.mxu0 %v291
    %1297 = vmatprep.subr.mxu0 0.0
    %1298 = vmatpush1.msra.mxu0 0.0
    %1299 = vmatprep.subr.mxu0 0.0
    %1300 = vmatpush1.msra.mxu0 0.0
    %1301 = vmatprep.subr.mxu0 0.0
    %1302 = vmatpush1.msra.mxu0 0.0
    %1303 = vmatprep.subr.mxu0 0.0
    %1304 = vmatpush1.msra.mxu0 0.0
    %1305 = vmatprep.subr.mxu0 0.0
    %1306 = vmatpush1.msra.mxu0 0.0
    %1307 = vmatprep.subr.mxu0 0.0
    %1308 = vmatpush1.msra.mxu0 0.0
    %1309 = vmatprep.subr.mxu0 0.0
    %1310 = vmatpush1.msra.mxu0 0.0
    %1311 = vmatprep.subr.mxu0 0.0
    %1312 = vmatpush1.msra.mxu0 0.0
    %1313 = vmatprep.subr.mxu0 0.0
    %1314 = vmatpush1.msra.mxu0 0.0
    %1315 = vmatprep.subr.mxu0 0.0
    %1316 = vmatpush1.msra.mxu0 0.0
    %1317 = vmatprep.subr.mxu0 0.0
    %1318 = vmatpush1.msra.mxu0 0.0
    %1319 = vmatprep.subr.mxu0 0.0
    %1320 = vmatpush1.msra.mxu0 0.0
    %1321 = vmatprep.subr.mxu0 0.0
    %1322 = vmatpush1.msra.mxu0 0.0
    %1323 = vmatprep.subr.mxu0 0.0
    %1324 = vmatpush1.msra.mxu0 0.0
    %1325 = vmatprep.subr.mxu0 0.0
    %1326 = vmatpush1.msra.mxu0 0.0
    %1327 = vmatprep.subr.mxu0 0.0
    %1328 = vmatpush1.msra.mxu0 0.0
    %1329 = vmatprep.subr.mxu0 0.0
    %1330 = vmatpush1.msra.mxu0 0.0
    %1331 = vmatprep.subr.mxu0 0.0
    %1332 = vmatpush1.msra.mxu0 0.0
    %1333 = vmatprep.subr.mxu0 0.0
    %1334 = vmatpush1.msra.mxu0 0.0
    %1335 = vmatprep.subr.mxu0 0.0
    %1336 = vmatpush1.msra.mxu0 0.0
    %1337 = vmatprep.subr.mxu0 0.0
    %1338 = vmatpush1.msra.mxu0 0.0
    %1339 = vmatprep.subr.mxu0 0.0
    %1340 = vmatpush1.msra.mxu0 0.0
    %1341 = vmatprep.subr.mxu0 0.0
    %1342 = vmatpush1.msra.mxu0 0.0
    %1343 = vmatprep.subr.mxu0 0.0
    %1344 = vmatpush1.msra.mxu0 0.0
    %1345 = vmatprep.mubr.f32.mxu0 0.0
    %1346 = vmatmul.mubr.f32.gmra.mrb[0].mxu0 %v1279
    %v1347 = vpop.f32.mrb[0].mxu0
    %v1348 = vadd.f32 0.0, %v1347
    %v1349 = vpop.f32.mrb[0].mxu0
    %v1350 = vadd.f32 0.0, %v1349
    %1351 = vdwg.mxu0
    %v1354 = vcombine.low %v1348, %v1350
    %v1356 = vunpack.c.l.s4 1966171168
    %v1357 = vunpack.c.0.s8 %v1356
    %v1358 = vlaneseq
    %v1359 = vshrl.u32 %v1358, 7
    %v1360 = vsub.s32 %v1357, %v1359
    %v1361 = vrot.slane %v1354, %v1360
    %v1363 = vunpack.c.l.s4 1966171168
    %v1364 = vunpack.c.0.s8 %v1363
    %v1365 = vlaneseq
    %v1366 = vshrl.u32 %v1365, 7
    %v1367 = vsub.s32 %v1364, %v1366
    %v1368 = vrot.slane %v1361, %v1367
    %v1370 = vadd.f32 %v1278, %v1368
    %v1371 = vxor.u32 %v1370, 2147483648
    %v1372 = vmul.f32 %v1371, 1.442695
    %v1373 = vpow.pop %v1372
    %v1374 = vadd.f32 %v1373, 1.0
    %v1375 = vrcp.pop %v1374
    %v1376 = vmul.f32 1.0, %v1375
    %v1377 = vtanh.pop %v1370
    %v1379 = vlaneseq
    %v1380 = vshrl.u32 %v1379, 7
    %v1381 = vsub.s32 0, %v1380
    %v1382 = vrot.slane %v1377, %v1381
    %v1383 = vlaneseq
    %v1384 = vshrl.u32 %v1383, 7
    %v1385 = vsub.s32 1, %v1384
    %v1386 = vrot.slane %v1377, %v1385
    %v1390 = vlaneseq
    %v1391 = vshrl.u32 %v1390, 7
    %v1392 = vsub.s32 0, %v1391
    %v1393 = vrot.slane %v1376, %v1392
    %v1394 = vlaneseq
    %v1395 = vshrl.u32 %v1394, 7
    %v1396 = vsub.s32 1, %v1395
    %v1397 = vrot.slane %v1376, %v1396
    %v1400 = vsel %vm300, %v1382, %v1393
    %v1401 = vsel %vm301, %v1386, %v1397
    %v1402 = vmul.f32 %v1400, %v1269
    %v1403 = vmul.f32 %v1400, %v1401
    %1405 = vrot.lane.b32.xlu0 %v1403, 64
    %v1406 = vpop.permute.xlu0 %1405
    %v1408 = vadd.f32 %v1402, %v1406
    %v1409 = vtanh.pop %v1408
    %v1410 = vmul.f32 %v1401, %v1409
    %1412 = vrot.lane.b32.xlu0 %v1410, 64
    %v1413 = vpop.permute.xlu0 %1412
    %1415 = vst.msk [vmem:[#allocation5 + $0x7] sm:$0x1] %vm441, %v1413
    %v1416 = vld [vmem:[#allocation5] sm:$0xff]
    %v1417 = vld [vmem:[%s4] sm:$0xff]
    %v1418 = vld [vmem:[%s4 + $0x8] sm:$0xff]
    %v1419 = vld [vmem:[%s4 + $0x10] sm:$0xff]
    %v1420 = vld [vmem:[%s4 + $0x18] sm:$0xff]
    %v1421 = vld [vmem:[%s4 + $0x20] sm:$0xff]
    %v1422 = vld [vmem:[%s4 + $0x28] sm:$0xff]
    %v1423 = vld [vmem:[%s4 + $0x30] sm:$0xff]
    %v1424 = vld [vmem:[%s4 + $0x38] sm:$0xff]
    %v1425 = vld [vmem:[%s6] sm:$0x1]
    %v1427 = vlaneseq
    %v1428 = vshrl.u32 %v1427, 7
    %v1429 = vsub.s32 0, %v1428
    %v1430 = vrot.slane %v1425, %v1429
    %v1433 = vsel %vm303, %v1416, 0
    %1435 = vmatprep.subr.mxu0 0.0
    %1436 = vmatpush1.msra.mxu0 %v1417
    %1437 = vmatprep.subr.mxu0 0.0
    %1438 = vmatpush1.msra.mxu0 %v1418
    %1439 = vmatprep.subr.mxu0 0.0
    %1440 = vmatpush1.msra.mxu0 %v1419
    %1441 = vmatprep.subr.mxu0 0.0
    %1442 = vmatpush1.msra.mxu0 %v1420
    %1443 = vmatprep.subr.mxu0 0.0
    %1444 = vmatpush1.msra.mxu0 %v1421
    %1445 = vmatprep.subr.mxu0 0.0
    %1446 = vmatpush1.msra.mxu0 %v1422
    %1447 = vmatprep.subr.mxu0 0.0
    %1448 = vmatpush1.msra.mxu0 %v1423
    %1449 = vmatprep.subr.mxu0 0.0
    %1450 = vmatpush1.msra.mxu0 %v1424
    %1451 = vmatprep.subr.mxu0 0.0
    %1452 = vmatpush1.msra.mxu0 0.0
    %1453 = vmatprep.subr.mxu0 0.0
    %1454 = vmatpush1.msra.mxu0 0.0
    %1455 = vmatprep.subr.mxu0 0.0
    %1456 = vmatpush1.msra.mxu0 0.0
    %1457 = vmatprep.subr.mxu0 0.0
    %1458 = vmatpush1.msra.mxu0 0.0
    %1459 = vmatprep.subr.mxu0 0.0
    %1460 = vmatpush1.msra.mxu0 0.0
    %1461 = vmatprep.subr.mxu0 0.0
    %1462 = vmatpush1.msra.mxu0 0.0
    %1463 = vmatprep.subr.mxu0 0.0
    %1464 = vmatpush1.msra.mxu0 0.0
    %1465 = vmatprep.subr.mxu0 0.0
    %1466 = vmatpush1.msra.mxu0 0.0
    %1467 = vmatprep.subr.mxu0 0.0
    %1468 = vmatpush1.msra.mxu0 0.0
    %1469 = vmatprep.subr.mxu0 0.0
    %1470 = vmatpush1.msra.mxu0 0.0
    %1471 = vmatprep.subr.mxu0 0.0
    %1472 = vmatpush1.msra.mxu0 0.0
    %1473 = vmatprep.subr.mxu0 0.0
    %1474 = vmatpush1.msra.mxu0 0.0
    %1475 = vmatprep.subr.mxu0 0.0
    %1476 = vmatpush1.msra.mxu0 0.0
    %1477 = vmatprep.subr.mxu0 0.0
    %1478 = vmatpush1.msra.mxu0 0.0
    %1479 = vmatprep.subr.mxu0 0.0
    %1480 = vmatpush1.msra.mxu0 0.0
    %1481 = vmatprep.subr.mxu0 0.0
    %1482 = vmatpush1.msra.mxu0 0.0
    %1483 = vmatprep.subr.mxu0 0.0
    %1484 = vmatpush1.msra.mxu0 0.0
    %1485 = vmatprep.subr.mxu0 0.0
    %1486 = vmatpush1.msra.mxu0 0.0
    %1487 = vmatprep.subr.mxu0 0.0
    %1488 = vmatpush1.msra.mxu0 0.0
    %1489 = vmatprep.subr.mxu0 0.0
    %1490 = vmatpush1.msra.mxu0 0.0
    %1491 = vmatprep.subr.mxu0 0.0
    %1492 = vmatpush1.msra.mxu0 0.0
    %1493 = vmatprep.subr.mxu0 0.0
    %1494 = vmatpush1.msra.mxu0 0.0
    %1495 = vmatprep.subr.mxu0 0.0
    %1496 = vmatpush1.msra.mxu0 0.0
    %1497 = vmatprep.subr.mxu0 0.0
    %1498 = vmatpush1.msra.mxu0 0.0
    %1499 = vmatprep.mubr.f32.mxu0 0.0
    %1500 = vmatmul.mubr.f32.gmra.mrb[0].mxu0 %v1433
    %v1501 = vpop.f32.mrb[0].mxu0
    %v1502 = vadd.f32 %v1430, %v1501
    %v1503 = vpop.f32.mrb[0].mxu0
    %1504 = vdwg.mxu0
    %1505 = vst [vmem:[#allocation3] sm:$0xff] %v1502
    %v1506 = vld [vmem:[#allocation12] sm:$0xff]
    %v1507 = vld [vmem:[#allocation12 + $0x8] sm:$0xff]
    %v1508 = vld [vmem:[#allocation12 + $0x10] sm:$0xff]
    %v1509 = vld [vmem:[#allocation12 + $0x18] sm:$0xff]
    %vm1510 = vcmp.ge.s32.totalorder %v294, 64
    %vm1511 = vcmp.lt.s32.totalorder %v294, 96
    %vm1512 = vmand %vm1510, %vm1511
    %v1513 = vld [vmem:[#allocation3] sm:$0x1]
    %vm1514 = vcmask 261120
    %v1515 = vsel %vm1514, 0.0, 0
    %1517 = vmatprep.subr.mxu0 0.0
    %1518 = vmatpush1.msra.mxu0 %v1506
    %1519 = vmatprep.subr.mxu0 0.0
    %1520 = vmatpush1.msra.mxu0 %v1507
    %1521 = vmatprep.subr.mxu0 0.0
    %1522 = vmatpush1.msra.mxu0 %v1508
    %1523 = vmatprep.subr.mxu0 0.0
    %1524 = vmatpush1.msra.mxu0 %v1509
    %1525 = vmatprep.subr.mxu0 0.0
    %1526 = vmatpush1.msra.mxu0 0.0
    %1527 = vmatprep.subr.mxu0 0.0
    %1528 = vmatpush1.msra.mxu0 0.0
    %1529 = vmatprep.subr.mxu0 0.0
    %1530 = vmatpush1.msra.mxu0 0.0
    %1531 = vmatprep.subr.mxu0 0.0
    %1532 = vmatpush1.msra.mxu0 0.0
    %1533 = vmatprep.subr.mxu0 0.0
    %1534 = vmatpush1.msra.mxu0 0.0
    %1535 = vmatprep.subr.mxu0 0.0
    %1536 = vmatpush1.msra.mxu0 0.0
    %1537 = vmatprep.subr.mxu0 0.0
    %1538 = vmatpush1.msra.mxu0 0.0
    %1539 = vmatprep.subr.mxu0 0.0
    %1540 = vmatpush1.msra.mxu0 0.0
    %1541 = vmatprep.subr.mxu0 0.0
    %1542 = vmatpush1.msra.mxu0 0.0
    %1543 = vmatprep.subr.mxu0 0.0
    %1544 = vmatpush1.msra.mxu0 0.0
    %1545 = vmatprep.subr.mxu0 0.0
    %1546 = vmatpush1.msra.mxu0 0.0
    %1547 = vmatprep.subr.mxu0 0.0
    %1548 = vmatpush1.msra.mxu0 0.0
    %1549 = vmatprep.subr.mxu0 0.0
    %1550 = vmatpush1.msra.mxu0 0.0
    %1551 = vmatprep.subr.mxu0 0.0
    %1552 = vmatpush1.msra.mxu0 0.0
    %1553 = vmatprep.subr.mxu0 0.0
    %1554 = vmatpush1.msra.mxu0 0.0
    %1555 = vmatprep.subr.mxu0 0.0
    %1556 = vmatpush1.msra.mxu0 0.0
    %1557 = vmatprep.subr.mxu0 0.0
    %1558 = vmatpush1.msra.mxu0 0.0
    %1559 = vmatprep.subr.mxu0 0.0
    %1560 = vmatpush1.msra.mxu0 0.0
    %1561 = vmatprep.subr.mxu0 0.0
    %1562 = vmatpush1.msra.mxu0 0.0
    %1563 = vmatprep.subr.mxu0 0.0
    %1564 = vmatpush1.msra.mxu0 0.0
    %1565 = vmatprep.subr.mxu0 0.0
    %1566 = vmatpush1.msra.mxu0 0.0
    %1567 = vmatprep.subr.mxu0 0.0
    %1568 = vmatpush1.msra.mxu0 0.0
    %1569 = vmatprep.subr.mxu0 0.0
    %1570 = vmatpush1.msra.mxu0 0.0
    %1571 = vmatprep.subr.mxu0 0.0
    %1572 = vmatpush1.msra.mxu0 0.0
    %1573 = vmatprep.subr.mxu0 0.0
    %1574 = vmatpush1.msra.mxu0 0.0
    %1575 = vmatprep.subr.mxu0 0.0
    %1576 = vmatpush1.msra.mxu0 0.0
    %1577 = vmatprep.subr.mxu0 0.0
    %1578 = vmatpush1.msra.mxu0 0.0
    %1579 = vmatprep.subr.mxu0 0.0
    %1580 = vmatpush1.msra.mxu0 0.0
    %1581 = vmatprep.mubr.f32.mxu0 0.0
    %1582 = vmatmul.mubr.f32.gmra.mrb[0].mxu0 %v1515
    %v1583 = vpop.f32.mrb[0].mxu0
    %v1584 = vadd.f32 0.0, %v1583
    %v1585 = vpop.f32.mrb[0].mxu0
    %1586 = vdwg.mxu0
    %v1587 = vadd.f32 %v1513, %v1584
    %v1588 = vxor.u32 %v1587, 2147483648
    %v1589 = vmul.f32 %v1588, 1.442695
    %v1590 = vpow.pop %v1589
    %v1591 = vadd.f32 %v1590, 1.0
    %v1592 = vrcp.pop %v1591
    %v1593 = vmul.f32 1.0, %v1592
    %v1594 = vtanh.pop %v1587
    %v1595 = vsel %vm1512, %v1594, %v1593
    %v1596 = vmul.f32 %v1595, 0.0
    %1598 = vrot.lane.b32.xlu0 %v1595, 64
    %v1599 = vpop.permute.xlu0 %1598
    %v1601 = vmul.f32 %v1595, %v1599
    %1603 = vrot.lane.b32.xlu0 %v1601, 32
    %v1604 = vpop.permute.xlu0 %1603
    %v1606 = vadd.f32 %v1596, %v1604
    %v1607 = vtanh.pop %v1606
    %1609 = vrot.lane.b32.xlu0 %v1607, 64
    %v1610 = vpop.permute.xlu0 %1609
    %v1612 = vmul.f32 %v1595, %v1610
    %v1613 = vld [vmem:[#allocation3 + $0x1] sm:$0x1]
    %1615 = vrot.lane.b32.xlu0 %v1612, 32
    %v1616 = vpop.permute.xlu0 %1615
    %v1617 = vsel %vm1514, %v1616, 0
    %1619 = vmatprep.subr.mxu0 0.0
    %1620 = vmatpush1.msra.mxu0 %v1506
    %1621 = vmatprep.subr.mxu0 0.0
    %1622 = vmatpush1.msra.mxu0 %v1507
    %1623 = vmatprep.subr.mxu0 0.0
    %1624 = vmatpush1.msra.mxu0 %v1508
    %1625 = vmatprep.subr.mxu0 0.0
    %1626 = vmatpush1.msra.mxu0 %v1509
    %1627 = vmatprep.subr.mxu0 0.0
    %1628 = vmatpush1.msra.mxu0 0.0
    %1629 = vmatprep.subr.mxu0 0.0
    %1630 = vmatpush1.msra.mxu0 0.0
    %1631 = vmatprep.subr.mxu0 0.0
    %1632 = vmatpush1.msra.mxu0 0.0
    %1633 = vmatprep.subr.mxu0 0.0
    %1634 = vmatpush1.msra.mxu0 0.0
    %1635 = vmatprep.subr.mxu0 0.0
    %1636 = vmatpush1.msra.mxu0 0.0
    %1637 = vmatprep.subr.mxu0 0.0
    %1638 = vmatpush1.msra.mxu0 0.0
    %1639 = vmatprep.subr.mxu0 0.0
    %1640 = vmatpush1.msra.mxu0 0.0
    %1641 = vmatprep.subr.mxu0 0.0
    %1642 = vmatpush1.msra.mxu0 0.0
    %1643 = vmatprep.subr.mxu0 0.0
    %1644 = vmatpush1.msra.mxu0 0.0
    %1645 = vmatprep.subr.mxu0 0.0
    %1646 = vmatpush1.msra.mxu0 0.0
    %1647 = vmatprep.subr.mxu0 0.0
    %1648 = vmatpush1.msra.mxu0 0.0
    %1649 = vmatprep.subr.mxu0 0.0
    %1650 = vmatpush1.msra.mxu0 0.0
    %1651 = vmatprep.subr.mxu0 0.0
    %1652 = vmatpush1.msra.mxu0 0.0
    %1653 = vmatprep.subr.mxu0 0.0
    %1654 = vmatpush1.msra.mxu0 0.0
    %1655 = vmatprep.subr.mxu0 0.0
    %1656 = vmatpush1.msra.mxu0 0.0
    %1657 = vmatprep.subr.mxu0 0.0
    %1658 = vmatpush1.msra.mxu0 0.0
    %1659 = vmatprep.subr.mxu0 0.0
    %1660 = vmatpush1.msra.mxu0 0.0
    %1661 = vmatprep.subr.mxu0 0.0
    %1662 = vmatpush1.msra.mxu0 0.0
    %1663 = vmatprep.subr.mxu0 0.0
    %1664 = vmatpush1.msra.mxu0 0.0
    %1665 = vmatprep.subr.mxu0 0.0
    %1666 = vmatpush1.msra.mxu0 0.0
    %1667 = vmatprep.subr.mxu0 0.0
    %1668 = vmatpush1.msra.mxu0 0.0
    %1669 = vmatprep.subr.mxu0 0.0
    %1670 = vmatpush1.msra.mxu0 0.0
    %1671 = vmatprep.subr.mxu0 0.0
    %1672 = vmatpush1.msra.mxu0 0.0
    %1673 = vmatprep.subr.mxu0 0.0
    %1674 = vmatpush1.msra.mxu0 0.0
    %1675 = vmatprep.subr.mxu0 0.0
    %1676 = vmatpush1.msra.mxu0 0.0
    %1677 = vmatprep.subr.mxu0 0.0
    %1678 = vmatpush1.msra.mxu0 0.0
    %1679 = vmatprep.subr.mxu0 0.0
    %1680 = vmatpush1.msra.mxu0 0.0
    %1681 = vmatprep.subr.mxu0 0.0
    %1682 = vmatpush1.msra.mxu0 0.0
    %1683 = vmatprep.mubr.f32.mxu0 0.0
    %1684 = vmatmul.mubr.f32.gmra.mrb[0].mxu0 %v1617
    %v1685 = vpop.f32.mrb[0].mxu0
    %v1686 = vadd.f32 0.0, %v1685
    %v1687 = vpop.f32.mrb[0].mxu0
    %1688 = vdwg.mxu0
    %v1689 = vadd.f32 %v1613, %v1686
    %v1690 = vxor.u32 %v1689, 2147483648
    %v1691 = vmul.f32 %v1690, 1.442695
    %v1692 = vpow.pop %v1691
    %v1693 = vadd.f32 %v1692, 1.0
    %v1694 = vrcp.pop %v1693
    %v1695 = vmul.f32 1.0, %v1694
    %v1696 = vtanh.pop %v1689
    %v1697 = vsel %vm1512, %v1696, %v1695
    %v1698 = vmul.f32 %v1697, %v1606
    %1700 = vrot.lane.b32.xlu0 %v1697, 64
    %v1701 = vpop.permute.xlu0 %1700
    %v1703 = vmul.f32 %v1697, %v1701
    %1705 = vrot.lane.b32.xlu0 %v1703, 32
    %v1706 = vpop.permute.xlu0 %1705
    %v1708 = vadd.f32 %v1698, %v1706
    %v1709 = vtanh.pop %v1708
    %1711 = vrot.lane.b32.xlu0 %v1709, 64
    %v1712 = vpop.permute.xlu0 %1711
    %v1714 = vmul.f32 %v1697, %v1712
    %v1715 = vld [vmem:[#allocation3 + $0x2] sm:$0x1]
    %1717 = vrot.lane.b32.xlu0 %v1714, 32
    %v1718 = vpop.permute.xlu0 %1717
    %v1719 = vsel %vm1514, %v1718, 0
    %1721 = vmatprep.subr.mxu0 0.0
    %1722 = vmatpush1.msra.mxu0 %v1506
    %1723 = vmatprep.subr.mxu0 0.0
    %1724 = vmatpush1.msra.mxu0 %v1507
    %1725 = vmatprep.subr.mxu0 0.0
    %1726 = vmatpush1.msra.mxu0 %v1508
    %1727 = vmatprep.subr.mxu0 0.0
    %1728 = vmatpush1.msra.mxu0 %v1509
    %1729 = vmatprep.subr.mxu0 0.0
    %1730 = vmatpush1.msra.mxu0 0.0
    %1731 = vmatprep.subr.mxu0 0.0
    %1732 = vmatpush1.msra.mxu0 0.0
    %1733 = vmatprep.subr.mxu0 0.0
    %1734 = vmatpush1.msra.mxu0 0.0
    %1735 = vmatprep.subr.mxu0 0.0
    %1736 = vmatpush1.msra.mxu0 0.0
    %1737 = vmatprep.subr.mxu0 0.0
    %1738 = vmatpush1.msra.mxu0 0.0
    %1739 = vmatprep.subr.mxu0 0.0
    %1740 = vmatpush1.msra.mxu0 0.0
    %1741 = vmatprep.subr.mxu0 0.0
    %1742 = vmatpush1.msra.mxu0 0.0
    %1743 = vmatprep.subr.mxu0 0.0
    %1744 = vmatpush1.msra.mxu0 0.0
    %1745 = vmatprep.subr.mxu0 0.0
    %1746 = vmatpush1.msra.mxu0 0.0
    %1747 = vmatprep.subr.mxu0 0.0
    %1748 = vmatpush1.msra.mxu0 0.0
    %1749 = vmatprep.subr.mxu0 0.0
    %1750 = vmatpush1.msra.mxu0 0.0
    %1751 = vmatprep.subr.mxu0 0.0
    %1752 = vmatpush1.msra.mxu0 0.0
    %1753 = vmatprep.subr.mxu0 0.0
    %1754 = vmatpush1.msra.mxu0 0.0
    %1755 = vmatprep.subr.mxu0 0.0
    %1756 = vmatpush1.msra.mxu0 0.0
    %1757 = vmatprep.subr.mxu0 0.0
    %1758 = vmatpush1.msra.mxu0 0.0
    %1759 = vmatprep.subr.mxu0 0.0
    %1760 = vmatpush1.msra.mxu0 0.0
    %1761 = vmatprep.subr.mxu0 0.0
    %1762 = vmatpush1.msra.mxu0 0.0
    %1763 = vmatprep.subr.mxu0 0.0
    %1764 = vmatpush1.msra.mxu0 0.0
    %1765 = vmatprep.subr.mxu0 0.0
    %1766 = vmatpush1.msra.mxu0 0.0
    %1767 = vmatprep.subr.mxu0 0.0
    %1768 = vmatpush1.msra.mxu0 0.0
    %1769 = vmatprep.subr.mxu0 0.0
    %1770 = vmatpush1.msra.mxu0 0.0
    %1771 = vmatprep.subr.mxu0 0.0
    %1772 = vmatpush1.msra.mxu0 0.0
    %1773 = vmatprep.subr.mxu0 0.0
    %1774 = vmatpush1.msra.mxu0 0.0
    %1775 = vmatprep.subr.mxu0 0.0
    %1776 = vmatpush1.msra.mxu0 0.0
    %1777 = vmatprep.subr.mxu0 0.0
    %1778 = vmatpush1.msra.mxu0 0.0
    %1779 = vmatprep.subr.mxu0 0.0
    %1780 = vmatpush1.msra.mxu0 0.0
    %1781 = vmatprep.subr.mxu0 0.0
    %1782 = vmatpush1.msra.mxu0 0.0
    %1783 = vmatprep.subr.mxu0 0.0
    %1784 = vmatpush1.msra.mxu0 0.0
    %1785 = vmatprep.mubr.f32.mxu0 0.0
    %1786 = vmatmul.mubr.f32.gmra.mrb[0].mxu0 %v1719
    %v1787 = vpop.f32.mrb[0].mxu0
    %v1788 = vadd.f32 0.0, %v1787
    %v1789 = vpop.f32.mrb[0].mxu0
    %1790 = vdwg.mxu0
    %v1791 = vadd.f32 %v1715, %v1788
    %v1792 = vxor.u32 %v1791, 2147483648
    %v1793 = vmul.f32 %v1792, 1.442695
    %v1794 = vpow.pop %v1793
    %v1795 = vadd.f32 %v1794, 1.0
    %v1796 = vrcp.pop %v1795
    %v1797 = vmul.f32 1.0, %v1796
    %v1798 = vtanh.pop %v1791
    %v1799 = vsel %vm1512, %v1798, %v1797
    %v1800 = vmul.f32 %v1799, %v1708
    %1802 = vrot.lane.b32.xlu0 %v1799, 64
    %v1803 = vpop.permute.xlu0 %1802
    %v1805 = vmul.f32 %v1799, %v1803
    %1807 = vrot.lane.b32.xlu0 %v1805, 32
    %v1808 = vpop.permute.xlu0 %1807
    %v1810 = vadd.f32 %v1800, %v1808
    %v1811 = vtanh.pop %v1810
    %1813 = vrot.lane.b32.xlu0 %v1811, 64
    %v1814 = vpop.permute.xlu0 %1813
    %v1816 = vmul.f32 %v1799, %v1814
    %v1817 = vld [vmem:[#allocation3 + $0x3] sm:$0x1]
    %1819 = vrot.lane.b32.xlu0 %v1816, 32
    %v1820 = vpop.permute.xlu0 %1819
    %v1821 = vsel %vm1514, %v1820, 0
    %1823 = vmatprep.subr.mxu0 0.0
    %1824 = vmatpush1.msra.mxu0 %v1506
    %1825 = vmatprep.subr.mxu0 0.0
    %1826 = vmatpush1.msra.mxu0 %v1507
    %1827 = vmatprep.subr.mxu0 0.0
    %1828 = vmatpush1.msra.mxu0 %v1508
    %1829 = vmatprep.subr.mxu0 0.0
    %1830 = vmatpush1.msra.mxu0 %v1509
    %1831 = vmatprep.subr.mxu0 0.0
    %1832 = vmatpush1.msra.mxu0 0.0
    %1833 = vmatprep.subr.mxu0 0.0
    %1834 = vmatpush1.msra.mxu0 0.0
    %1835 = vmatprep.subr.mxu0 0.0
    %1836 = vmatpush1.msra.mxu0 0.0
    %1837 = vmatprep.subr.mxu0 0.0
    %1838 = vmatpush1.msra.mxu0 0.0
    %1839 = vmatprep.subr.mxu0 0.0
    %1840 = vmatpush1.msra.mxu0 0.0
    %1841 = vmatprep.subr.mxu0 0.0
    %1842 = vmatpush1.msra.mxu0 0.0
    %1843 = vmatprep.subr.mxu0 0.0
    %1844 = vmatpush1.msra.mxu0 0.0
    %1845 = vmatprep.subr.mxu0 0.0
    %1846 = vmatpush1.msra.mxu0 0.0
    %1847 = vmatprep.subr.mxu0 0.0
    %1848 = vmatpush1.msra.mxu0 0.0
    %1849 = vmatprep.subr.mxu0 0.0
    %1850 = vmatpush1.msra.mxu0 0.0
    %1851 = vmatprep.subr.mxu0 0.0
    %1852 = vmatpush1.msra.mxu0 0.0
    %1853 = vmatprep.subr.mxu0 0.0
    %1854 = vmatpush1.msra.mxu0 0.0
    %1855 = vmatprep.subr.mxu0 0.0
    %1856 = vmatpush1.msra.mxu0 0.0
    %1857 = vmatprep.subr.mxu0 0.0
    %1858 = vmatpush1.msra.mxu0 0.0
    %1859 = vmatprep.subr.mxu0 0.0
    %1860 = vmatpush1.msra.mxu0 0.0
    %1861 = vmatprep.subr.mxu0 0.0
    %1862 = vmatpush1.msra.mxu0 0.0
    %1863 = vmatprep.subr.mxu0 0.0
    %1864 = vmatpush1.msra.mxu0 0.0
    %1865 = vmatprep.subr.mxu0 0.0
    %1866 = vmatpush1.msra.mxu0 0.0
    %1867 = vmatprep.subr.mxu0 0.0
    %1868 = vmatpush1.msra.mxu0 0.0
    %1869 = vmatprep.subr.mxu0 0.0
    %1870 = vmatpush1.msra.mxu0 0.0
    %1871 = vmatprep.subr.mxu0 0.0
    %1872 = vmatpush1.msra.mxu0 0.0
    %1873 = vmatprep.subr.mxu0 0.0
    %1874 = vmatpush1.msra.mxu0 0.0
    %1875 = vmatprep.subr.mxu0 0.0
    %1876 = vmatpush1.msra.mxu0 0.0
    %1877 = vmatprep.subr.mxu0 0.0
    %1878 = vmatpush1.msra.mxu0 0.0
    %1879 = vmatprep.subr.mxu0 0.0
    %1880 = vmatpush1.msra.mxu0 0.0
    %1881 = vmatprep.subr.mxu0 0.0
    %1882 = vmatpush1.msra.mxu0 0.0
    %1883 = vmatprep.subr.mxu0 0.0
    %1884 = vmatpush1.msra.mxu0 0.0
    %1885 = vmatprep.subr.mxu0 0.0
    %1886 = vmatpush1.msra.mxu0 0.0
    %1887 = vmatprep.mubr.f32.mxu0 0.0
    %1888 = vmatmul.mubr.f32.gmra.mrb[0].mxu0 %v1821
    %v1889 = vpop.f32.mrb[0].mxu0
    %v1890 = vadd.f32 0.0, %v1889
    %v1891 = vpop.f32.mrb[0].mxu0
    %1892 = vdwg.mxu0
    %v1893 = vadd.f32 %v1817, %v1890
    %v1894 = vxor.u32 %v1893, 2147483648
    %v1895 = vmul.f32 %v1894, 1.442695
    %v1896 = vpow.pop %v1895
    %v1897 = vadd.f32 %v1896, 1.0
    %v1898 = vrcp.pop %v1897
    %v1899 = vmul.f32 1.0, %v1898
    %v1900 = vtanh.pop %v1893
    %v1901 = vsel %vm1512, %v1900, %v1899
    %v1902 = vmul.f32 %v1901, %v1810
    %1904 = vrot.lane.b32.xlu0 %v1901, 64
    %v1905 = vpop.permute.xlu0 %1904
    %v1907 = vmul.f32 %v1901, %v1905
    %1909 = vrot.lane.b32.xlu0 %v1907, 32
    %v1910 = vpop.permute.xlu0 %1909
    %v1912 = vadd.f32 %v1902, %v1910
    %v1913 = vtanh.pop %v1912
    %1915 = vrot.lane.b32.xlu0 %v1913, 64
    %v1916 = vpop.permute.xlu0 %1915
    %v1918 = vmul.f32 %v1901, %v1916
    %v1919 = vld [vmem:[#allocation3 + $0x4] sm:$0x1]
    %1921 = vrot.lane.b32.xlu0 %v1918, 32
    %v1922 = vpop.permute.xlu0 %1921
    %v1923 = vsel %vm1514, %v1922, 0
    %1925 = vmatprep.subr.mxu0 0.0
    %1926 = vmatpush1.msra.mxu0 %v1506
    %1927 = vmatprep.subr.mxu0 0.0
    %1928 = vmatpush1.msra.mxu0 %v1507
    %1929 = vmatprep.subr.mxu0 0.0
    %1930 = vmatpush1.msra.mxu0 %v1508
    %1931 = vmatprep.subr.mxu0 0.0
    %1932 = vmatpush1.msra.mxu0 %v1509
    %1933 = vmatprep.subr.mxu0 0.0
    %1934 = vmatpush1.msra.mxu0 0.0
    %1935 = vmatprep.subr.mxu0 0.0
    %1936 = vmatpush1.msra.mxu0 0.0
    %1937 = vmatprep.subr.mxu0 0.0
    %1938 = vmatpush1.msra.mxu0 0.0
    %1939 = vmatprep.subr.mxu0 0.0
    %1940 = vmatpush1.msra.mxu0 0.0
    %1941 = vmatprep.subr.mxu0 0.0
    %1942 = vmatpush1.msra.mxu0 0.0
    %1943 = vmatprep.subr.mxu0 0.0
    %1944 = vmatpush1.msra.mxu0 0.0
    %1945 = vmatprep.subr.mxu0 0.0
    %1946 = vmatpush1.msra.mxu0 0.0
    %1947 = vmatprep.subr.mxu0 0.0
    %1948 = vmatpush1.msra.mxu0 0.0
    %1949 = vmatprep.subr.mxu0 0.0
    %1950 = vmatpush1.msra.mxu0 0.0
    %1951 = vmatprep.subr.mxu0 0.0
    %1952 = vmatpush1.msra.mxu0 0.0
    %1953 = vmatprep.subr.mxu0 0.0
    %1954 = vmatpush1.msra.mxu0 0.0
    %1955 = vmatprep.subr.mxu0 0.0
    %1956 = vmatpush1.msra.mxu0 0.0
    %1957 = vmatprep.subr.mxu0 0.0
    %1958 = vmatpush1.msra.mxu0 0.0
    %1959 = vmatprep.subr.mxu0 0.0
    %1960 = vmatpush1.msra.mxu0 0.0
    %1961 = vmatprep.subr.mxu0 0.0
    %1962 = vmatpush1.msra.mxu0 0.0
    %1963 = vmatprep.subr.mxu0 0.0
    %1964 = vmatpush1.msra.mxu0 0.0
    %1965 = vmatprep.subr.mxu0 0.0
    %1966 = vmatpush1.msra.mxu0 0.0
    %1967 = vmatprep.subr.mxu0 0.0
    %1968 = vmatpush1.msra.mxu0 0.0
    %1969 = vmatprep.subr.mxu0 0.0
    %1970 = vmatpush1.msra.mxu0 0.0
    %1971 = vmatprep.subr.mxu0 0.0
    %1972 = vmatpush1.msra.mxu0 0.0
    %1973 = vmatprep.subr.mxu0 0.0
    %1974 = vmatpush1.msra.mxu0 0.0
    %1975 = vmatprep.subr.mxu0 0.0
    %1976 = vmatpush1.msra.mxu0 0.0
    %1977 = vmatprep.subr.mxu0 0.0
    %1978 = vmatpush1.msra.mxu0 0.0
    %1979 = vmatprep.subr.mxu0 0.0
    %1980 = vmatpush1.msra.mxu0 0.0
    %1981 = vmatprep.subr.mxu0 0.0
    %1982 = vmatpush1.msra.mxu0 0.0
    %1983 = vmatprep.subr.mxu0 0.0
    %1984 = vmatpush1.msra.mxu0 0.0
    %1985 = vmatprep.subr.mxu0 0.0
    %1986 = vmatpush1.msra.mxu0 0.0
    %1987 = vmatprep.subr.mxu0 0.0
    %1988 = vmatpush1.msra.mxu0 0.0
    %1989 = vmatprep.mubr.f32.mxu0 0.0
    %1990 = vmatmul.mubr.f32.gmra.mrb[0].mxu0 %v1923
    %v1991 = vpop.f32.mrb[0].mxu0
    %v1992 = vadd.f32 0.0, %v1991
    %v1993 = vpop.f32.mrb[0].mxu0
    %1994 = vdwg.mxu0
    %v1995 = vadd.f32 %v1919, %v1992
    %v1996 = vxor.u32 %v1995, 2147483648
    %v1997 = vmul.f32 %v1996, 1.442695
    %v1998 = vpow.pop %v1997
    %v1999 = vadd.f32 %v1998, 1.0
    %v2000 = vrcp.pop %v1999
    %v2001 = vmul.f32 1.0, %v2000
    %v2002 = vtanh.pop %v1995
    %v2003 = vsel %vm1512, %v2002, %v2001
    %v2004 = vmul.f32 %v2003, %v1912
    %2006 = vrot.lane.b32.xlu0 %v2003, 64
    %v2007 = vpop.permute.xlu0 %2006
    %v2009 = vmul.f32 %v2003, %v2007
    %2011 = vrot.lane.b32.xlu0 %v2009, 32
    %v2012 = vpop.permute.xlu0 %2011
    %v2014 = vadd.f32 %v2004, %v2012
    %v2015 = vtanh.pop %v2014
    %2017 = vrot.lane.b32.xlu0 %v2015, 64
    %v2018 = vpop.permute.xlu0 %2017
    %v2020 = vmul.f32 %v2003, %v2018
    %v2021 = vld [vmem:[#allocation3 + $0x5] sm:$0x1]
    %2023 = vrot.lane.b32.xlu0 %v2020, 32
    %v2024 = vpop.permute.xlu0 %2023
    %v2025 = vsel %vm1514, %v2024, 0
    %2027 = vmatprep.subr.mxu0 0.0
    %2028 = vmatpush1.msra.mxu0 %v1506
    %2029 = vmatprep.subr.mxu0 0.0
    %2030 = vmatpush1.msra.mxu0 %v1507
    %2031 = vmatprep.subr.mxu0 0.0
    %2032 = vmatpush1.msra.mxu0 %v1508
    %2033 = vmatprep.subr.mxu0 0.0
    %2034 = vmatpush1.msra.mxu0 %v1509
    %2035 = vmatprep.subr.mxu0 0.0
    %2036 = vmatpush1.msra.mxu0 0.0
    %2037 = vmatprep.subr.mxu0 0.0
    %2038 = vmatpush1.msra.mxu0 0.0
    %2039 = vmatprep.subr.mxu0 0.0
    %2040 = vmatpush1.msra.mxu0 0.0
    %2041 = vmatprep.subr.mxu0 0.0
    %2042 = vmatpush1.msra.mxu0 0.0
    %2043 = vmatprep.subr.mxu0 0.0
    %2044 = vmatpush1.msra.mxu0 0.0
    %2045 = vmatprep.subr.mxu0 0.0
    %2046 = vmatpush1.msra.mxu0 0.0
    %2047 = vmatprep.subr.mxu0 0.0
    %2048 = vmatpush1.msra.mxu0 0.0
    %2049 = vmatprep.subr.mxu0 0.0
    %2050 = vmatpush1.msra.mxu0 0.0
    %2051 = vmatprep.subr.mxu0 0.0
    %2052 = vmatpush1.msra.mxu0 0.0
    %2053 = vmatprep.subr.mxu0 0.0
    %2054 = vmatpush1.msra.mxu0 0.0
    %2055 = vmatprep.subr.mxu0 0.0
    %2056 = vmatpush1.msra.mxu0 0.0
    %2057 = vmatprep.subr.mxu0 0.0
    %2058 = vmatpush1.msra.mxu0 0.0
    %2059 = vmatprep.subr.mxu0 0.0
    %2060 = vmatpush1.msra.mxu0 0.0
    %2061 = vmatprep.subr.mxu0 0.0
    %2062 = vmatpush1.msra.mxu0 0.0
    %2063 = vmatprep.subr.mxu0 0.0
    %2064 = vmatpush1.msra.mxu0 0.0
    %2065 = vmatprep.subr.mxu0 0.0
    %2066 = vmatpush1.msra.mxu0 0.0
    %2067 = vmatprep.subr.mxu0 0.0
    %2068 = vmatpush1.msra.mxu0 0.0
    %2069 = vmatprep.subr.mxu0 0.0
    %2070 = vmatpush1.msra.mxu0 0.0
    %2071 = vmatprep.subr.mxu0 0.0
    %2072 = vmatpush1.msra.mxu0 0.0
    %2073 = vmatprep.subr.mxu0 0.0
    %2074 = vmatpush1.msra.mxu0 0.0
    %2075 = vmatprep.subr.mxu0 0.0
    %2076 = vmatpush1.msra.mxu0 0.0
    %2077 = vmatprep.subr.mxu0 0.0
    %2078 = vmatpush1.msra.mxu0 0.0
    %2079 = vmatprep.subr.mxu0 0.0
    %2080 = vmatpush1.msra.mxu0 0.0
    %2081 = vmatprep.subr.mxu0 0.0
    %2082 = vmatpush1.msra.mxu0 0.0
    %2083 = vmatprep.subr.mxu0 0.0
    %2084 = vmatpush1.msra.mxu0 0.0
    %2085 = vmatprep.subr.mxu0 0.0
    %2086 = vmatpush1.msra.mxu0 0.0
    %2087 = vmatprep.subr.mxu0 0.0
    %2088 = vmatpush1.msra.mxu0 0.0
    %2089 = vmatprep.subr.mxu0 0.0
    %2090 = vmatpush1.msra.mxu0 0.0
    %2091 = vmatprep.mubr.f32.mxu0 0.0
    %2092 = vmatmul.mubr.f32.gmra.mrb[0].mxu0 %v2025
    %v2093 = vpop.f32.mrb[0].mxu0
    %v2094 = vadd.f32 0.0, %v2093
    %v2095 = vpop.f32.mrb[0].mxu0
    %2096 = vdwg.mxu0
    %v2097 = vadd.f32 %v2021, %v2094
    %v2098 = vxor.u32 %v2097, 2147483648
    %v2099 = vmul.f32 %v2098, 1.442695
    %v2100 = vpow.pop %v2099
    %v2101 = vadd.f32 %v2100, 1.0
    %v2102 = vrcp.pop %v2101
    %v2103 = vmul.f32 1.0, %v2102
    %v2104 = vtanh.pop %v2097
    %v2105 = vsel %vm1512, %v2104, %v2103
    %v2106 = vmul.f32 %v2105, %v2014
    %2108 = vrot.lane.b32.xlu0 %v2105, 64
    %v2109 = vpop.permute.xlu0 %2108
    %v2111 = vmul.f32 %v2105, %v2109
    %2113 = vrot.lane.b32.xlu0 %v2111, 32
    %v2114 = vpop.permute.xlu0 %2113
    %v2116 = vadd.f32 %v2106, %v2114
    %v2117 = vtanh.pop %v2116
    %2119 = vrot.lane.b32.xlu0 %v2117, 64
    %v2120 = vpop.permute.xlu0 %2119
    %v2122 = vmul.f32 %v2105, %v2120
    %v2123 = vld [vmem:[#allocation3 + $0x6] sm:$0x1]
    %2125 = vrot.lane.b32.xlu0 %v2122, 32
    %v2126 = vpop.permute.xlu0 %2125
    %v2127 = vsel %vm1514, %v2126, 0
    %2129 = vmatprep.subr.mxu0 0.0
    %2130 = vmatpush1.msra.mxu0 %v1506
    %2131 = vmatprep.subr.mxu0 0.0
    %2132 = vmatpush1.msra.mxu0 %v1507
    %2133 = vmatprep.subr.mxu0 0.0
    %2134 = vmatpush1.msra.mxu0 %v1508
    %2135 = vmatprep.subr.mxu0 0.0
    %2136 = vmatpush1.msra.mxu0 %v1509
    %2137 = vmatprep.subr.mxu0 0.0
    %2138 = vmatpush1.msra.mxu0 0.0
    %2139 = vmatprep.subr.mxu0 0.0
    %2140 = vmatpush1.msra.mxu0 0.0
    %2141 = vmatprep.subr.mxu0 0.0
    %2142 = vmatpush1.msra.mxu0 0.0
    %2143 = vmatprep.subr.mxu0 0.0
    %2144 = vmatpush1.msra.mxu0 0.0
    %2145 = vmatprep.subr.mxu0 0.0
    %2146 = vmatpush1.msra.mxu0 0.0
    %2147 = vmatprep.subr.mxu0 0.0
    %2148 = vmatpush1.msra.mxu0 0.0
    %2149 = vmatprep.subr.mxu0 0.0
    %2150 = vmatpush1.msra.mxu0 0.0
    %2151 = vmatprep.subr.mxu0 0.0
    %2152 = vmatpush1.msra.mxu0 0.0
    %2153 = vmatprep.subr.mxu0 0.0
    %2154 = vmatpush1.msra.mxu0 0.0
    %2155 = vmatprep.subr.mxu0 0.0
    %2156 = vmatpush1.msra.mxu0 0.0
    %2157 = vmatprep.subr.mxu0 0.0
    %2158 = vmatpush1.msra.mxu0 0.0
    %2159 = vmatprep.subr.mxu0 0.0
    %2160 = vmatpush1.msra.mxu0 0.0
    %2161 = vmatprep.subr.mxu0 0.0
    %2162 = vmatpush1.msra.mxu0 0.0
    %2163 = vmatprep.subr.mxu0 0.0
    %2164 = vmatpush1.msra.mxu0 0.0
    %2165 = vmatprep.subr.mxu0 0.0
    %2166 = vmatpush1.msra.mxu0 0.0
    %2167 = vmatprep.subr.mxu0 0.0
    %2168 = vmatpush1.msra.mxu0 0.0
    %2169 = vmatprep.subr.mxu0 0.0
    %2170 = vmatpush1.msra.mxu0 0.0
    %2171 = vmatprep.subr.mxu0 0.0
    %2172 = vmatpush1.msra.mxu0 0.0
    %2173 = vmatprep.subr.mxu0 0.0
    %2174 = vmatpush1.msra.mxu0 0.0
    %2175 = vmatprep.subr.mxu0 0.0
    %2176 = vmatpush1.msra.mxu0 0.0
    %2177 = vmatprep.subr.mxu0 0.0
    %2178 = vmatpush1.msra.mxu0 0.0
    %2179 = vmatprep.subr.mxu0 0.0
    %2180 = vmatpush1.msra.mxu0 0.0
    %2181 = vmatprep.subr.mxu0 0.0
    %2182 = vmatpush1.msra.mxu0 0.0
    %2183 = vmatprep.subr.mxu0 0.0
    %2184 = vmatpush1.msra.mxu0 0.0
    %2185 = vmatprep.subr.mxu0 0.0
    %2186 = vmatpush1.msra.mxu0 0.0
    %2187 = vmatprep.subr.mxu0 0.0
    %2188 = vmatpush1.msra.mxu0 0.0
    %2189 = vmatprep.subr.mxu0 0.0
    %2190 = vmatpush1.msra.mxu0 0.0
    %2191 = vmatprep.subr.mxu0 0.0
    %2192 = vmatpush1.msra.mxu0 0.0
    %2193 = vmatprep.mubr.f32.mxu0 0.0
    %2194 = vmatmul.mubr.f32.gmra.mrb[0].mxu0 %v2127
    %v2195 = vpop.f32.mrb[0].mxu0
    %v2196 = vadd.f32 0.0, %v2195
    %v2197 = vpop.f32.mrb[0].mxu0
    %2198 = vdwg.mxu0
    %v2199 = vadd.f32 %v2123, %v2196
    %v2200 = vxor.u32 %v2199, 2147483648
    %v2201 = vmul.f32 %v2200, 1.442695
    %v2202 = vpow.pop %v2201
    %v2203 = vadd.f32 %v2202, 1.0
    %v2204 = vrcp.pop %v2203
    %v2205 = vmul.f32 1.0, %v2204
    %v2206 = vtanh.pop %v2199
    %v2207 = vsel %vm1512, %v2206, %v2205
    %v2208 = vmul.f32 %v2207, %v2116
    %2210 = vrot.lane.b32.xlu0 %v2207, 64
    %v2211 = vpop.permute.xlu0 %2210
    %v2213 = vmul.f32 %v2207, %v2211
    %2215 = vrot.lane.b32.xlu0 %v2213, 32
    %v2216 = vpop.permute.xlu0 %2215
    %v2218 = vadd.f32 %v2208, %v2216
    %v2219 = vtanh.pop %v2218
    %2221 = vrot.lane.b32.xlu0 %v2219, 64
    %v2222 = vpop.permute.xlu0 %2221
    %v2224 = vmul.f32 %v2207, %v2222
    %v2225 = vld [vmem:[#allocation3 + $0x7] sm:$0x1]
    %2227 = vrot.lane.b32.xlu0 %v2224, 32
    %v2228 = vpop.permute.xlu0 %2227
    %v2229 = vsel %vm1514, %v2228, 0
    %2231 = vmatprep.subr.mxu0 0.0
    %2232 = vmatpush1.msra.mxu0 %v1506
    %2233 = vmatprep.subr.mxu0 0.0
    %2234 = vmatpush1.msra.mxu0 %v1507
    %2235 = vmatprep.subr.mxu0 0.0
    %2236 = vmatpush1.msra.mxu0 %v1508
    %2237 = vmatprep.subr.mxu0 0.0
    %2238 = vmatpush1.msra.mxu0 %v1509
    %2239 = vmatprep.subr.mxu0 0.0
    %2240 = vmatpush1.msra.mxu0 0.0
    %2241 = vmatprep.subr.mxu0 0.0
    %2242 = vmatpush1.msra.mxu0 0.0
    %2243 = vmatprep.subr.mxu0 0.0
    %2244 = vmatpush1.msra.mxu0 0.0
    %2245 = vmatprep.subr.mxu0 0.0
    %2246 = vmatpush1.msra.mxu0 0.0
    %2247 = vmatprep.subr.mxu0 0.0
    %2248 = vmatpush1.msra.mxu0 0.0
    %2249 = vmatprep.subr.mxu0 0.0
    %2250 = vmatpush1.msra.mxu0 0.0
    %2251 = vmatprep.subr.mxu0 0.0
    %2252 = vmatpush1.msra.mxu0 0.0
    %2253 = vmatprep.subr.mxu0 0.0
    %2254 = vmatpush1.msra.mxu0 0.0
    %2255 = vmatprep.subr.mxu0 0.0
    %2256 = vmatpush1.msra.mxu0 0.0
    %2257 = vmatprep.subr.mxu0 0.0
    %2258 = vmatpush1.msra.mxu0 0.0
    %2259 = vmatprep.subr.mxu0 0.0
    %2260 = vmatpush1.msra.mxu0 0.0
    %2261 = vmatprep.subr.mxu0 0.0
    %2262 = vmatpush1.msra.mxu0 0.0
    %2263 = vmatprep.subr.mxu0 0.0
    %2264 = vmatpush1.msra.mxu0 0.0
    %2265 = vmatprep.subr.mxu0 0.0
    %2266 = vmatpush1.msra.mxu0 0.0
    %2267 = vmatprep.subr.mxu0 0.0
    %2268 = vmatpush1.msra.mxu0 0.0
    %2269 = vmatprep.subr.mxu0 0.0
    %2270 = vmatpush1.msra.mxu0 0.0
    %2271 = vmatprep.subr.mxu0 0.0
    %2272 = vmatpush1.msra.mxu0 0.0
    %2273 = vmatprep.subr.mxu0 0.0
    %2274 = vmatpush1.msra.mxu0 0.0
    %2275 = vmatprep.subr.mxu0 0.0
    %2276 = vmatpush1.msra.mxu0 0.0
    %2277 = vmatprep.subr.mxu0 0.0
    %2278 = vmatpush1.msra.mxu0 0.0
    %2279 = vmatprep.subr.mxu0 0.0
    %2280 = vmatpush1.msra.mxu0 0.0
    %2281 = vmatprep.subr.mxu0 0.0
    %2282 = vmatpush1.msra.mxu0 0.0
    %2283 = vmatprep.subr.mxu0 0.0
    %2284 = vmatpush1.msra.mxu0 0.0
    %2285 = vmatprep.subr.mxu0 0.0
    %2286 = vmatpush1.msra.mxu0 0.0
    %2287 = vmatprep.subr.mxu0 0.0
    %2288 = vmatpush1.msra.mxu0 0.0
    %2289 = vmatprep.subr.mxu0 0.0
    %2290 = vmatpush1.msra.mxu0 0.0
    %2291 = vmatprep.subr.mxu0 0.0
    %2292 = vmatpush1.msra.mxu0 0.0
    %2293 = vmatprep.subr.mxu0 0.0
    %2294 = vmatpush1.msra.mxu0 0.0
    %2295 = vmatprep.mubr.f32.mxu0 0.0
    %2296 = vmatmul.mubr.f32.gmra.mrb[0].mxu0 %v2229
    %v2297 = vpop.f32.mrb[0].mxu0
    %v2298 = vadd.f32 0.0, %v2297
    %v2299 = vpop.f32.mrb[0].mxu0
    %2300 = vdwg.mxu0
    %v2301 = vadd.f32 %v2225, %v2298
    %v2302 = vxor.u32 %v2301, 2147483648
    %v2303 = vmul.f32 %v2302, 1.442695
    %v2304 = vpow.pop %v2303
    %v2305 = vadd.f32 %v2304, 1.0
    %v2306 = vrcp.pop %v2305
    %v2307 = vmul.f32 1.0, %v2306
    %v2308 = vtanh.pop %v2301
    %v2309 = vsel %vm1512, %v2308, %v2307
    %v2310 = vmul.f32 %v2309, %v2218
    %2312 = vrot.lane.b32.xlu0 %v2309, 64
    %v2313 = vpop.permute.xlu0 %2312
    %v2315 = vmul.f32 %v2309, %v2313
    %2317 = vrot.lane.b32.xlu0 %v2315, 32
    %v2318 = vpop.permute.xlu0 %2317
    %v2320 = vadd.f32 %v2310, %v2318
    %v2321 = vtanh.pop %v2320
    %2323 = vrot.lane.b32.xlu0 %v2321, 64
    %v2324 = vpop.permute.xlu0 %2323
    %v2326 = vmul.f32 %v2309, %v2324
    %v2327 = vld [vmem:[#allocation13] sm:$0xff]
    %v2328 = vld [vmem:[#allocation13 + $0x8] sm:$0xff]
    %v2329 = vld [vmem:[#allocation13 + $0x10] sm:$0xff]
    %v2330 = vld [vmem:[#allocation13 + $0x18] sm:$0xff]
    %v2331 = vld [vmem:[%s9] sm:$0x1]
    %2333 = vrot.lane.b32.xlu0 %v2326, 32
    %v2334 = vpop.permute.xlu0 %2333
    %v2335 = vsel %vm1514, %v2334, 0
    %2337 = vmatprep.subr.mxu0 0.0
    %2338 = vmatpush1.msra.mxu0 %v2327
    %2339 = vmatprep.subr.mxu0 0.0
    %2340 = vmatpush1.msra.mxu0 %v2328
    %2341 = vmatprep.subr.mxu0 0.0
    %2342 = vmatpush1.msra.mxu0 %v2329
    %2343 = vmatprep.subr.mxu0 0.0
    %2344 = vmatpush1.msra.mxu0 %v2330
    %2345 = vmatprep.subr.mxu0 0.0
    %2346 = vmatpush1.msra.mxu0 0.0
    %2347 = vmatprep.subr.mxu0 0.0
    %2348 = vmatpush1.msra.mxu0 0.0
    %2349 = vmatprep.subr.mxu0 0.0
    %2350 = vmatpush1.msra.mxu0 0.0
    %2351 = vmatprep.subr.mxu0 0.0
    %2352 = vmatpush1.msra.mxu0 0.0
    %2353 = vmatprep.subr.mxu0 0.0
    %2354 = vmatpush1.msra.mxu0 0.0
    %2355 = vmatprep.subr.mxu0 0.0
    %2356 = vmatpush1.msra.mxu0 0.0
    %2357 = vmatprep.subr.mxu0 0.0
    %2358 = vmatpush1.msra.mxu0 0.0
    %2359 = vmatprep.subr.mxu0 0.0
    %2360 = vmatpush1.msra.mxu0 0.0
    %2361 = vmatprep.subr.mxu0 0.0
    %2362 = vmatpush1.msra.mxu0 0.0
    %2363 = vmatprep.subr.mxu0 0.0
    %2364 = vmatpush1.msra.mxu0 0.0
    %2365 = vmatprep.subr.mxu0 0.0
    %2366 = vmatpush1.msra.mxu0 0.0
    %2367 = vmatprep.subr.mxu0 0.0
    %2368 = vmatpush1.msra.mxu0 0.0
    %2369 = vmatprep.subr.mxu0 0.0
    %2370 = vmatpush1.msra.mxu0 0.0
    %2371 = vmatprep.subr.mxu0 0.0
    %2372 = vmatpush1.msra.mxu0 0.0
    %2373 = vmatprep.subr.mxu0 0.0
    %2374 = vmatpush1.msra.mxu0 0.0
    %2375 = vmatprep.subr.mxu0 0.0
    %2376 = vmatpush1.msra.mxu0 0.0
    %2377 = vmatprep.subr.mxu0 0.0
    %2378 = vmatpush1.msra.mxu0 0.0
    %2379 = vmatprep.subr.mxu0 0.0
    %2380 = vmatpush1.msra.mxu0 0.0
    %2381 = vmatprep.subr.mxu0 0.0
    %2382 = vmatpush1.msra.mxu0 0.0
    %2383 = vmatprep.subr.mxu0 0.0
    %2384 = vmatpush1.msra.mxu0 0.0
    %2385 = vmatprep.subr.mxu0 0.0
    %2386 = vmatpush1.msra.mxu0 0.0
    %2387 = vmatprep.subr.mxu0 0.0
    %2388 = vmatpush1.msra.mxu0 0.0
    %2389 = vmatprep.subr.mxu0 0.0
    %2390 = vmatpush1.msra.mxu0 0.0
    %2391 = vmatprep.subr.mxu0 0.0
    %2392 = vmatpush1.msra.mxu0 0.0
    %2393 = vmatprep.subr.mxu0 0.0
    %2394 = vmatpush1.msra.mxu0 0.0
    %2395 = vmatprep.subr.mxu0 0.0
    %2396 = vmatpush1.msra.mxu0 0.0
    %2397 = vmatprep.subr.mxu0 0.0
    %2398 = vmatpush1.msra.mxu0 0.0
    %2399 = vmatprep.subr.mxu0 0.0
    %2400 = vmatpush1.msra.mxu0 0.0
    %2401 = vmatprep.mubr.f32.mxu0 0.0
    %2402 = vmatmul.mubr.f32.gmra.mrb[0].mxu0 %v2335
    %v2403 = vpop.f32.mrb[0].mxu0
    %v2404 = vadd.f32 %v2331, %v2403
    %v2405 = vpop.f32.mrb[0].mxu0
    %2406 = vdwg.mxu0
    %v2407 = vld [vmem:[#allocation15] sm:$0xff]
    %v2408 = vld [vmem:[#allocation15 + $0x8] sm:$0xff]
    %v2409 = vld [vmem:[#allocation15 + $0x10] sm:$0xff]
    %v2410 = vld [vmem:[#allocation15 + $0x18] sm:$0xff]
    %2411 = vmatprep.subr.mxu0 0.0
    %2412 = vmatpush1.msra.mxu0 %v2407
    %2413 = vmatprep.subr.mxu0 0.0
    %2414 = vmatpush1.msra.mxu0 %v2408
    %2415 = vmatprep.subr.mxu0 0.0
    %2416 = vmatpush1.msra.mxu0 %v2409
    %2417 = vmatprep.subr.mxu0 0.0
    %2418 = vmatpush1.msra.mxu0 %v2410
    %2419 = vmatprep.subr.mxu0 0.0
    %2420 = vmatpush1.msra.mxu0 0.0
    %2421 = vmatprep.subr.mxu0 0.0
    %2422 = vmatpush1.msra.mxu0 0.0
    %2423 = vmatprep.subr.mxu0 0.0
    %2424 = vmatpush1.msra.mxu0 0.0
    %2425 = vmatprep.subr.mxu0 0.0
    %2426 = vmatpush1.msra.mxu0 0.0
    %2427 = vmatprep.subr.mxu0 0.0
    %2428 = vmatpush1.msra.mxu0 0.0
    %2429 = vmatprep.subr.mxu0 0.0
    %2430 = vmatpush1.msra.mxu0 0.0
    %2431 = vmatprep.subr.mxu0 0.0
    %2432 = vmatpush1.msra.mxu0 0.0
    %2433 = vmatprep.subr.mxu0 0.0
    %2434 = vmatpush1.msra.mxu0 0.0
    %2435 = vmatprep.subr.mxu0 0.0
    %2436 = vmatpush1.msra.mxu0 0.0
    %2437 = vmatprep.subr.mxu0 0.0
    %2438 = vmatpush1.msra.mxu0 0.0
    %2439 = vmatprep.subr.mxu0 0.0
    %2440 = vmatpush1.msra.mxu0 0.0
    %2441 = vmatprep.subr.mxu0 0.0
    %2442 = vmatpush1.msra.mxu0 0.0
    %2443 = vmatprep.subr.mxu0 0.0
    %2444 = vmatpush1.msra.mxu0 0.0
    %2445 = vmatprep.subr.mxu0 0.0
    %2446 = vmatpush1.msra.mxu0 0.0
    %2447 = vmatprep.subr.mxu0 0.0
    %2448 = vmatpush1.msra.mxu0 0.0
    %2449 = vmatprep.subr.mxu0 0.0
    %2450 = vmatpush1.msra.mxu0 0.0
    %2451 = vmatprep.subr.mxu0 0.0
    %2452 = vmatpush1.msra.mxu0 0.0
    %2453 = vmatprep.subr.mxu0 0.0
    %2454 = vmatpush1.msra.mxu0 0.0
    %2455 = vmatprep.subr.mxu0 0.0
    %2456 = vmatpush1.msra.mxu0 0.0
    %2457 = vmatprep.subr.mxu0 0.0
    %2458 = vmatpush1.msra.mxu0 0.0
    %2459 = vmatprep.subr.mxu0 0.0
    %2460 = vmatpush1.msra.mxu0 0.0
    %2461 = vmatprep.subr.mxu0 0.0
    %2462 = vmatpush1.msra.mxu0 0.0
    %2463 = vmatprep.subr.mxu0 0.0
    %2464 = vmatpush1.msra.mxu0 0.0
    %2465 = vmatprep.subr.mxu0 0.0
    %2466 = vmatpush1.msra.mxu0 0.0
    %2467 = vmatprep.subr.mxu0 0.0
    %2468 = vmatpush1.msra.mxu0 0.0
    %2469 = vmatprep.subr.mxu0 0.0
    %2470 = vmatpush1.msra.mxu0 0.0
    %2471 = vmatprep.subr.mxu0 0.0
    %2472 = vmatpush1.msra.mxu0 0.0
    %2473 = vmatprep.subr.mxu0 0.0
    %2474 = vmatpush1.msra.mxu0 0.0
    %2475 = vmatprep.mubr.f32.mxu0 0.0
    %2476 = vmatmul.mubr.f32.gmra.mrb[0].mxu0 %v1515
    %v2477 = vpop.f32.mrb[0].mxu0
    %v2478 = vadd.f32 0.0, %v2477
    %v2479 = vpop.f32.mrb[0].mxu0
    %2480 = vdwg.mxu0
    %v2481 = vadd.f32 %v2404, %v2478
    %v2482 = vxor.u32 %v2481, 2147483648
    %v2483 = vmul.f32 %v2482, 1.442695
    %v2484 = vpow.pop %v2483
    %v2485 = vadd.f32 %v2484, 1.0
    %v2486 = vrcp.pop %v2485
    %v2487 = vmul.f32 1.0, %v2486
    %v2488 = vtanh.pop %v2481
    %v2489 = vsel %vm1512, %v2488, %v2487
    %v2490 = vmul.f32 %v2489, 0.0
    %2492 = vrot.lane.b32.xlu0 %v2489, 64
    %v2493 = vpop.permute.xlu0 %2492
    %v2495 = vmul.f32 %v2489, %v2493
    %2497 = vrot.lane.b32.xlu0 %v2495, 32
    %v2498 = vpop.permute.xlu0 %2497
    %v2500 = vadd.f32 %v2490, %v2498
    %v2501 = vtanh.pop %v2500
    %2503 = vrot.lane.b32.xlu0 %v2501, 64
    %v2504 = vpop.permute.xlu0 %2503
    %v2506 = vmul.f32 %v2489, %v2504
    %2508 = vrot.lane.b32.xlu0 %v2506, 32
    %v2509 = vpop.permute.xlu0 %2508
    %vm2511 = vcmask 253952
    %2512 = vst.msk [vmem:[#allocation6] sm:$0x1] %vm2511, %v2509
    %v2513 = vsel %vm1514, %v2509, 0
    %2515 = vmatprep.subr.mxu0 0.0
    %2516 = vmatpush1.msra.mxu0 %v2407
    %2517 = vmatprep.subr.mxu0 0.0
    %2518 = vmatpush1.msra.mxu0 %v2408
    %2519 = vmatprep.subr.mxu0 0.0
    %2520 = vmatpush1.msra.mxu0 %v2409
    %2521 = vmatprep.subr.mxu0 0.0
    %2522 = vmatpush1.msra.mxu0 %v2410
    %2523 = vmatprep.subr.mxu0 0.0
    %2524 = vmatpush1.msra.mxu0 0.0
    %2525 = vmatprep.subr.mxu0 0.0
    %2526 = vmatpush1.msra.mxu0 0.0
    %2527 = vmatprep.subr.mxu0 0.0
    %2528 = vmatpush1.msra.mxu0 0.0
    %2529 = vmatprep.subr.mxu0 0.0
    %2530 = vmatpush1.msra.mxu0 0.0
    %2531 = vmatprep.subr.mxu0 0.0
    %2532 = vmatpush1.msra.mxu0 0.0
    %2533 = vmatprep.subr.mxu0 0.0
    %2534 = vmatpush1.msra.mxu0 0.0
    %2535 = vmatprep.subr.mxu0 0.0
    %2536 = vmatpush1.msra.mxu0 0.0
    %2537 = vmatprep.subr.mxu0 0.0
    %2538 = vmatpush1.msra.mxu0 0.0
    %2539 = vmatprep.subr.mxu0 0.0
    %2540 = vmatpush1.msra.mxu0 0.0
    %2541 = vmatprep.subr.mxu0 0.0
    %2542 = vmatpush1.msra.mxu0 0.0
    %2543 = vmatprep.subr.mxu0 0.0
    %2544 = vmatpush1.msra.mxu0 0.0
    %2545 = vmatprep.subr.mxu0 0.0
    %2546 = vmatpush1.msra.mxu0 0.0
    %2547 = vmatprep.subr.mxu0 0.0
    %2548 = vmatpush1.msra.mxu0 0.0
    %2549 = vmatprep.subr.mxu0 0.0
    %2550 = vmatpush1.msra.mxu0 0.0
    %2551 = vmatprep.subr.mxu0 0.0
    %2552 = vmatpush1.msra.mxu0 0.0
    %2553 = vmatprep.subr.mxu0 0.0
    %2554 = vmatpush1.msra.mxu0 0.0
    %2555 = vmatprep.subr.mxu0 0.0
    %2556 = vmatpush1.msra.mxu0 0.0
    %2557 = vmatprep.subr.mxu0 0.0
    %2558 = vmatpush1.msra.mxu0 0.0
    %2559 = vmatprep.subr.mxu0 0.0
    %2560 = vmatpush1.msra.mxu0 0.0
    %2561 = vmatprep.subr.mxu0 0.0
    %2562 = vmatpush1.msra.mxu0 0.0
    %2563 = vmatprep.subr.mxu0 0.0
    %2564 = vmatpush1.msra.mxu0 0.0
    %2565 = vmatprep.subr.mxu0 0.0
    %2566 = vmatpush1.msra.mxu0 0.0
    %2567 = vmatprep.subr.mxu0 0.0
    %2568 = vmatpush1.msra.mxu0 0.0
    %2569 = vmatprep.subr.mxu0 0.0
    %2570 = vmatpush1.msra.mxu0 0.0
    %2571 = vmatprep.subr.mxu0 0.0
    %2572 = vmatpush1.msra.mxu0 0.0
    %2573 = vmatprep.subr.mxu0 0.0
    %2574 = vmatpush1.msra.mxu0 0.0
    %2575 = vmatprep.subr.mxu0 0.0
    %2576 = vmatpush1.msra.mxu0 0.0
    %2577 = vmatprep.subr.mxu0 0.0
    %2578 = vmatpush1.msra.mxu0 0.0
    %2579 = vmatprep.mubr.f32.mxu0 0.0
    %2580 = vmatmul.mubr.f32.gmra.mrb[0].mxu0 %v2513
    %v2581 = vpop.f32.mrb[0].mxu0
    %v2582 = vadd.f32 0.0, %v2581
    %v2583 = vpop.f32.mrb[0].mxu0
    %2584 = vdwg.mxu0
    %v2585 = vadd.f32 %v2404, %v2582
    %v2586 = vxor.u32 %v2585, 2147483648
    %v2587 = vmul.f32 %v2586, 1.442695
    %v2588 = vpow.pop %v2587
    %v2589 = vadd.f32 %v2588, 1.0
    %v2590 = vrcp.pop %v2589
    %v2591 = vmul.f32 1.0, %v2590
    %v2592 = vtanh.pop %v2585
    %v2593 = vsel %vm1512, %v2592, %v2591
    %v2594 = vmul.f32 %v2593, %v2500
    %2596 = vrot.lane.b32.xlu0 %v2593, 64
    %v2597 = vpop.permute.xlu0 %2596
    %v2599 = vmul.f32 %v2593, %v2597
    %2601 = vrot.lane.b32.xlu0 %v2599, 32
    %v2602 = vpop.permute.xlu0 %2601
    %v2604 = vadd.f32 %v2594, %v2602
    %v2605 = vtanh.pop %v2604
    %2607 = vrot.lane.b32.xlu0 %v2605, 64
    %v2608 = vpop.permute.xlu0 %2607
    %v2610 = vmul.f32 %v2593, %v2608
    %2612 = vrot.lane.b32.xlu0 %v2610, 32
    %v2613 = vpop.permute.xlu0 %2612
    %2615 = vst.msk [vmem:[#allocation6 + $0x1] sm:$0x1] %vm2511, %v2613
    %v2616 = vsel %vm1514, %v2613, 0
    %2618 = vmatprep.subr.mxu0 0.0
    %2619 = vmatpush1.msra.mxu0 %v2407
    %2620 = vmatprep.subr.mxu0 0.0
    %2621 = vmatpush1.msra.mxu0 %v2408
    %2622 = vmatprep.subr.mxu0 0.0
    %2623 = vmatpush1.msra.mxu0 %v2409
    %2624 = vmatprep.subr.mxu0 0.0
    %2625 = vmatpush1.msra.mxu0 %v2410
    %2626 = vmatprep.subr.mxu0 0.0
    %2627 = vmatpush1.msra.mxu0 0.0
    %2628 = vmatprep.subr.mxu0 0.0
    %2629 = vmatpush1.msra.mxu0 0.0
    %2630 = vmatprep.subr.mxu0 0.0
    %2631 = vmatpush1.msra.mxu0 0.0
    %2632 = vmatprep.subr.mxu0 0.0
    %2633 = vmatpush1.msra.mxu0 0.0
    %2634 = vmatprep.subr.mxu0 0.0
    %2635 = vmatpush1.msra.mxu0 0.0
    %2636 = vmatprep.subr.mxu0 0.0
    %2637 = vmatpush1.msra.mxu0 0.0
    %2638 = vmatprep.subr.mxu0 0.0
    %2639 = vmatpush1.msra.mxu0 0.0
    %2640 = vmatprep.subr.mxu0 0.0
    %2641 = vmatpush1.msra.mxu0 0.0
    %2642 = vmatprep.subr.mxu0 0.0
    %2643 = vmatpush1.msra.mxu0 0.0
    %2644 = vmatprep.subr.mxu0 0.0
    %2645 = vmatpush1.msra.mxu0 0.0
    %2646 = vmatprep.subr.mxu0 0.0
    %2647 = vmatpush1.msra.mxu0 0.0
    %2648 = vmatprep.subr.mxu0 0.0
    %2649 = vmatpush1.msra.mxu0 0.0
    %2650 = vmatprep.subr.mxu0 0.0
    %2651 = vmatpush1.msra.mxu0 0.0
    %2652 = vmatprep.subr.mxu0 0.0
    %2653 = vmatpush1.msra.mxu0 0.0
    %2654 = vmatprep.subr.mxu0 0.0
    %2655 = vmatpush1.msra.mxu0 0.0
    %2656 = vmatprep.subr.mxu0 0.0
    %2657 = vmatpush1.msra.mxu0 0.0
    %2658 = vmatprep.subr.mxu0 0.0
    %2659 = vmatpush1.msra.mxu0 0.0
    %2660 = vmatprep.subr.mxu0 0.0
    %2661 = vmatpush1.msra.mxu0 0.0
    %2662 = vmatprep.subr.mxu0 0.0
    %2663 = vmatpush1.msra.mxu0 0.0
    %2664 = vmatprep.subr.mxu0 0.0
    %2665 = vmatpush1.msra.mxu0 0.0
    %2666 = vmatprep.subr.mxu0 0.0
    %2667 = vmatpush1.msra.mxu0 0.0
    %2668 = vmatprep.subr.mxu0 0.0
    %2669 = vmatpush1.msra.mxu0 0.0
    %2670 = vmatprep.subr.mxu0 0.0
    %2671 = vmatpush1.msra.mxu0 0.0
    %2672 = vmatprep.subr.mxu0 0.0
    %2673 = vmatpush1.msra.mxu0 0.0
    %2674 = vmatprep.subr.mxu0 0.0
    %2675 = vmatpush1.msra.mxu0 0.0
    %2676 = vmatprep.subr.mxu0 0.0
    %2677 = vmatpush1.msra.mxu0 0.0
    %2678 = vmatprep.subr.mxu0 0.0
    %2679 = vmatpush1.msra.mxu0 0.0
    %2680 = vmatprep.subr.mxu0 0.0
    %2681 = vmatpush1.msra.mxu0 0.0
    %2682 = vmatprep.mubr.f32.mxu0 0.0
    %2683 = vmatmul.mubr.f32.gmra.mrb[0].mxu0 %v2616
    %v2684 = vpop.f32.mrb[0].mxu0
    %v2685 = vadd.f32 0.0, %v2684
    %v2686 = vpop.f32.mrb[0].mxu0
    %2687 = vdwg.mxu0
    %v2688 = vadd.f32 %v2404, %v2685
    %v2689 = vxor.u32 %v2688, 2147483648
    %v2690 = vmul.f32 %v2689, 1.442695
    %v2691 = vpow.pop %v2690
    %v2692 = vadd.f32 %v2691, 1.0
    %v2693 = vrcp.pop %v2692
    %v2694 = vmul.f32 1.0, %v2693
    %v2695 = vtanh.pop %v2688
    %v2696 = vsel %vm1512, %v2695, %v2694
    %v2697 = vmul.f32 %v2696, %v2604
    %2699 = vrot.lane.b32.xlu0 %v2696, 64
    %v2700 = vpop.permute.xlu0 %2699
    %v2702 = vmul.f32 %v2696, %v2700
    %2704 = vrot.lane.b32.xlu0 %v2702, 32
    %v2705 = vpop.permute.xlu0 %2704
    %v2707 = vadd.f32 %v2697, %v2705
    %v2708 = vtanh.pop %v2707
    %2710 = vrot.lane.b32.xlu0 %v2708, 64
    %v2711 = vpop.permute.xlu0 %2710
    %v2713 = vmul.f32 %v2696, %v2711
    %2715 = vrot.lane.b32.xlu0 %v2713, 32
    %v2716 = vpop.permute.xlu0 %2715
    %2718 = vst.msk [vmem:[#allocation6 + $0x2] sm:$0x1] %vm2511, %v2716
    %v2719 = vsel %vm1514, %v2716, 0
    %2721 = vmatprep.subr.mxu0 0.0
    %2722 = vmatpush1.msra.mxu0 %v2407
    %2723 = vmatprep.subr.mxu0 0.0
    %2724 = vmatpush1.msra.mxu0 %v2408
    %2725 = vmatprep.subr.mxu0 0.0
    %2726 = vmatpush1.msra.mxu0 %v2409
    %2727 = vmatprep.subr.mxu0 0.0
    %2728 = vmatpush1.msra.mxu0 %v2410
    %2729 = vmatprep.subr.mxu0 0.0
    %2730 = vmatpush1.msra.mxu0 0.0
    %2731 = vmatprep.subr.mxu0 0.0
    %2732 = vmatpush1.msra.mxu0 0.0
    %2733 = vmatprep.subr.mxu0 0.0
    %2734 = vmatpush1.msra.mxu0 0.0
    %2735 = vmatprep.subr.mxu0 0.0
    %2736 = vmatpush1.msra.mxu0 0.0
    %2737 = vmatprep.subr.mxu0 0.0
    %2738 = vmatpush1.msra.mxu0 0.0
    %2739 = vmatprep.subr.mxu0 0.0
    %2740 = vmatpush1.msra.mxu0 0.0
    %2741 = vmatprep.subr.mxu0 0.0
    %2742 = vmatpush1.msra.mxu0 0.0
    %2743 = vmatprep.subr.mxu0 0.0
    %2744 = vmatpush1.msra.mxu0 0.0
    %2745 = vmatprep.subr.mxu0 0.0
    %2746 = vmatpush1.msra.mxu0 0.0
    %2747 = vmatprep.subr.mxu0 0.0
    %2748 = vmatpush1.msra.mxu0 0.0
    %2749 = vmatprep.subr.mxu0 0.0
    %2750 = vmatpush1.msra.mxu0 0.0
    %2751 = vmatprep.subr.mxu0 0.0
    %2752 = vmatpush1.msra.mxu0 0.0
    %2753 = vmatprep.subr.mxu0 0.0
    %2754 = vmatpush1.msra.mxu0 0.0
    %2755 = vmatprep.subr.mxu0 0.0
    %2756 = vmatpush1.msra.mxu0 0.0
    %2757 = vmatprep.subr.mxu0 0.0
    %2758 = vmatpush1.msra.mxu0 0.0
    %2759 = vmatprep.subr.mxu0 0.0
    %2760 = vmatpush1.msra.mxu0 0.0
    %2761 = vmatprep.subr.mxu0 0.0
    %2762 = vmatpush1.msra.mxu0 0.0
    %2763 = vmatprep.subr.mxu0 0.0
    %2764 = vmatpush1.msra.mxu0 0.0
    %2765 = vmatprep.subr.mxu0 0.0
    %2766 = vmatpush1.msra.mxu0 0.0
    %2767 = vmatprep.subr.mxu0 0.0
    %2768 = vmatpush1.msra.mxu0 0.0
    %2769 = vmatprep.subr.mxu0 0.0
    %2770 = vmatpush1.msra.mxu0 0.0
    %2771 = vmatprep.subr.mxu0 0.0
    %2772 = vmatpush1.msra.mxu0 0.0
    %2773 = vmatprep.subr.mxu0 0.0
    %2774 = vmatpush1.msra.mxu0 0.0
    %2775 = vmatprep.subr.mxu0 0.0
    %2776 = vmatpush1.msra.mxu0 0.0
    %2777 = vmatprep.subr.mxu0 0.0
    %2778 = vmatpush1.msra.mxu0 0.0
    %2779 = vmatprep.subr.mxu0 0.0
    %2780 = vmatpush1.msra.mxu0 0.0
    %2781 = vmatprep.subr.mxu0 0.0
    %2782 = vmatpush1.msra.mxu0 0.0
    %2783 = vmatprep.subr.mxu0 0.0
    %2784 = vmatpush1.msra.mxu0 0.0
    %2785 = vmatprep.mubr.f32.mxu0 0.0
    %2786 = vmatmul.mubr.f32.gmra.mrb[0].mxu0 %v2719
    %v2787 = vpop.f32.mrb[0].mxu0
    %v2788 = vadd.f32 0.0, %v2787
    %v2789 = vpop.f32.mrb[0].mxu0
    %2790 = vdwg.mxu0
    %v2791 = vadd.f32 %v2404, %v2788
    %v2792 = vxor.u32 %v2791, 2147483648
    %v2793 = vmul.f32 %v2792, 1.442695
    %v2794 = vpow.pop %v2793
    %v2795 = vadd.f32 %v2794, 1.0
    %v2796 = vrcp.pop %v2795
    %v2797 = vmul.f32 1.0, %v2796
    %v2798 = vtanh.pop %v2791
    %v2799 = vsel %vm1512, %v2798, %v2797
    %v2800 = vmul.f32 %v2799, %v2707
    %2802 = vrot.lane.b32.xlu0 %v2799, 64
    %v2803 = vpop.permute.xlu0 %2802
    %v2805 = vmul.f32 %v2799, %v2803
    %2807 = vrot.lane.b32.xlu0 %v2805, 32
    %v2808 = vpop.permute.xlu0 %2807
    %v2810 = vadd.f32 %v2800, %v2808
    %v2811 = vtanh.pop %v2810
    %2813 = vrot.lane.b32.xlu0 %v2811, 64
    %v2814 = vpop.permute.xlu0 %2813
    %v2816 = vmul.f32 %v2799, %v2814
    %2818 = vrot.lane.b32.xlu0 %v2816, 32
    %v2819 = vpop.permute.xlu0 %2818
    %2821 = vst.msk [vmem:[#allocation6 + $0x3] sm:$0x1] %vm2511, %v2819
    %v2822 = vsel %vm1514, %v2819, 0
    %2824 = vmatprep.subr.mxu0 0.0
    %2825 = vmatpush1.msra.mxu0 %v2407
    %2826 = vmatprep.subr.mxu0 0.0
    %2827 = vmatpush1.msra.mxu0 %v2408
    %2828 = vmatprep.subr.mxu0 0.0
    %2829 = vmatpush1.msra.mxu0 %v2409
    %2830 = vmatprep.subr.mxu0 0.0
    %2831 = vmatpush1.msra.mxu0 %v2410
    %2832 = vmatprep.subr.mxu0 0.0
    %2833 = vmatpush1.msra.mxu0 0.0
    %2834 = vmatprep.subr.mxu0 0.0
    %2835 = vmatpush1.msra.mxu0 0.0
    %2836 = vmatprep.subr.mxu0 0.0
    %2837 = vmatpush1.msra.mxu0 0.0
    %2838 = vmatprep.subr.mxu0 0.0
    %2839 = vmatpush1.msra.mxu0 0.0
    %2840 = vmatprep.subr.mxu0 0.0
    %2841 = vmatpush1.msra.mxu0 0.0
    %2842 = vmatprep.subr.mxu0 0.0
    %2843 = vmatpush1.msra.mxu0 0.0
    %2844 = vmatprep.subr.mxu0 0.0
    %2845 = vmatpush1.msra.mxu0 0.0
    %2846 = vmatprep.subr.mxu0 0.0
    %2847 = vmatpush1.msra.mxu0 0.0
    %2848 = vmatprep.subr.mxu0 0.0
    %2849 = vmatpush1.msra.mxu0 0.0
    %2850 = vmatprep.subr.mxu0 0.0
    %2851 = vmatpush1.msra.mxu0 0.0
    %2852 = vmatprep.subr.mxu0 0.0
    %2853 = vmatpush1.msra.mxu0 0.0
    %2854 = vmatprep.subr.mxu0 0.0
    %2855 = vmatpush1.msra.mxu0 0.0
    %2856 = vmatprep.subr.mxu0 0.0
    %2857 = vmatpush1.msra.mxu0 0.0
    %2858 = vmatprep.subr.mxu0 0.0
    %2859 = vmatpush1.msra.mxu0 0.0
    %2860 = vmatprep.subr.mxu0 0.0
    %2861 = vmatpush1.msra.mxu0 0.0
    %2862 = vmatprep.subr.mxu0 0.0
    %2863 = vmatpush1.msra.mxu0 0.0
    %2864 = vmatprep.subr.mxu0 0.0
    %2865 = vmatpush1.msra.mxu0 0.0
    %2866 = vmatprep.subr.mxu0 0.0
    %2867 = vmatpush1.msra.mxu0 0.0
    %2868 = vmatprep.subr.mxu0 0.0
    %2869 = vmatpush1.msra.mxu0 0.0
    %2870 = vmatprep.subr.mxu0 0.0
    %2871 = vmatpush1.msra.mxu0 0.0
    %2872 = vmatprep.subr.mxu0 0.0
    %2873 = vmatpush1.msra.mxu0 0.0
    %2874 = vmatprep.subr.mxu0 0.0
    %2875 = vmatpush1.msra.mxu0 0.0
    %2876 = vmatprep.subr.mxu0 0.0
    %2877 = vmatpush1.msra.mxu0 0.0
    %2878 = vmatprep.subr.mxu0 0.0
    %2879 = vmatpush1.msra.mxu0 0.0
    %2880 = vmatprep.subr.mxu0 0.0
    %2881 = vmatpush1.msra.mxu0 0.0
    %2882 = vmatprep.subr.mxu0 0.0
    %2883 = vmatpush1.msra.mxu0 0.0
    %2884 = vmatprep.subr.mxu0 0.0
    %2885 = vmatpush1.msra.mxu0 0.0
    %2886 = vmatprep.subr.mxu0 0.0
    %2887 = vmatpush1.msra.mxu0 0.0
    %2888 = vmatprep.mubr.f32.mxu0 0.0
    %2889 = vmatmul.mubr.f32.gmra.mrb[0].mxu0 %v2822
    %v2890 = vpop.f32.mrb[0].mxu0
    %v2891 = vadd.f32 0.0, %v2890
    %v2892 = vpop.f32.mrb[0].mxu0
    %2893 = vdwg.mxu0
    %v2894 = vadd.f32 %v2404, %v2891
    %v2895 = vxor.u32 %v2894, 2147483648
    %v2896 = vmul.f32 %v2895, 1.442695
    %v2897 = vpow.pop %v2896
    %v2898 = vadd.f32 %v2897, 1.0
    %v2899 = vrcp.pop %v2898
    %v2900 = vmul.f32 1.0, %v2899
    %v2901 = vtanh.pop %v2894
    %v2902 = vsel %vm1512, %v2901, %v2900
    %v2903 = vmul.f32 %v2902, %v2810
    %2905 = vrot.lane.b32.xlu0 %v2902, 64
    %v2906 = vpop.permute.xlu0 %2905
    %v2908 = vmul.f32 %v2902, %v2906
    %2910 = vrot.lane.b32.xlu0 %v2908, 32
    %v2911 = vpop.permute.xlu0 %2910
    %v2913 = vadd.f32 %v2903, %v2911
    %v2914 = vtanh.pop %v2913
    %2916 = vrot.lane.b32.xlu0 %v2914, 64
    %v2917 = vpop.permute.xlu0 %2916
    %v2919 = vmul.f32 %v2902, %v2917
    %2921 = vrot.lane.b32.xlu0 %v2919, 32
    %v2922 = vpop.permute.xlu0 %2921
    %2924 = vst.msk [vmem:[#allocation6 + $0x4] sm:$0x1] %vm2511, %v2922
    %v2925 = vsel %vm1514, %v2922, 0
    %2927 = vmatprep.subr.mxu0 0.0
    %2928 = vmatpush1.msra.mxu0 %v2407
    %2929 = vmatprep.subr.mxu0 0.0
    %2930 = vmatpush1.msra.mxu0 %v2408
    %2931 = vmatprep.subr.mxu0 0.0
    %2932 = vmatpush1.msra.mxu0 %v2409
    %2933 = vmatprep.subr.mxu0 0.0
    %2934 = vmatpush1.msra.mxu0 %v2410
    %2935 = vmatprep.subr.mxu0 0.0
    %2936 = vmatpush1.msra.mxu0 0.0
    %2937 = vmatprep.subr.mxu0 0.0
    %2938 = vmatpush1.msra.mxu0 0.0
    %2939 = vmatprep.subr.mxu0 0.0
    %2940 = vmatpush1.msra.mxu0 0.0
    %2941 = vmatprep.subr.mxu0 0.0
    %2942 = vmatpush1.msra.mxu0 0.0
    %2943 = vmatprep.subr.mxu0 0.0
    %2944 = vmatpush1.msra.mxu0 0.0
    %2945 = vmatprep.subr.mxu0 0.0
    %2946 = vmatpush1.msra.mxu0 0.0
    %2947 = vmatprep.subr.mxu0 0.0
    %2948 = vmatpush1.msra.mxu0 0.0
    %2949 = vmatprep.subr.mxu0 0.0
    %2950 = vmatpush1.msra.mxu0 0.0
    %2951 = vmatprep.subr.mxu0 0.0
    %2952 = vmatpush1.msra.mxu0 0.0
    %2953 = vmatprep.subr.mxu0 0.0
    %2954 = vmatpush1.msra.mxu0 0.0
    %2955 = vmatprep.subr.mxu0 0.0
    %2956 = vmatpush1.msra.mxu0 0.0
    %2957 = vmatprep.subr.mxu0 0.0
    %2958 = vmatpush1.msra.mxu0 0.0
    %2959 = vmatprep.subr.mxu0 0.0
    %2960 = vmatpush1.msra.mxu0 0.0
    %2961 = vmatprep.subr.mxu0 0.0
    %2962 = vmatpush1.msra.mxu0 0.0
    %2963 = vmatprep.subr.mxu0 0.0
    %2964 = vmatpush1.msra.mxu0 0.0
    %2965 = vmatprep.subr.mxu0 0.0
    %2966 = vmatpush1.msra.mxu0 0.0
    %2967 = vmatprep.subr.mxu0 0.0
    %2968 = vmatpush1.msra.mxu0 0.0
    %2969 = vmatprep.subr.mxu0 0.0
    %2970 = vmatpush1.msra.mxu0 0.0
    %2971 = vmatprep.subr.mxu0 0.0
    %2972 = vmatpush1.msra.mxu0 0.0
    %2973 = vmatprep.subr.mxu0 0.0
    %2974 = vmatpush1.msra.mxu0 0.0
    %2975 = vmatprep.subr.mxu0 0.0
    %2976 = vmatpush1.msra.mxu0 0.0
    %2977 = vmatprep.subr.mxu0 0.0
    %2978 = vmatpush1.msra.mxu0 0.0
    %2979 = vmatprep.subr.mxu0 0.0
    %2980 = vmatpush1.msra.mxu0 0.0
    %2981 = vmatprep.subr.mxu0 0.0
    %2982 = vmatpush1.msra.mxu0 0.0
    %2983 = vmatprep.subr.mxu0 0.0
    %2984 = vmatpush1.msra.mxu0 0.0
    %2985 = vmatprep.subr.mxu0 0.0
    %2986 = vmatpush1.msra.mxu0 0.0
    %2987 = vmatprep.subr.mxu0 0.0
    %2988 = vmatpush1.msra.mxu0 0.0
    %2989 = vmatprep.subr.mxu0 0.0
    %2990 = vmatpush1.msra.mxu0 0.0
    %2991 = vmatprep.mubr.f32.mxu0 0.0
    %2992 = vmatmul.mubr.f32.gmra.mrb[0].mxu0 %v2925
    %v2993 = vpop.f32.mrb[0].mxu0
    %v2994 = vadd.f32 0.0, %v2993
    %v2995 = vpop.f32.mrb[0].mxu0
    %2996 = vdwg.mxu0
    %v2997 = vadd.f32 %v2404, %v2994
    %v2998 = vxor.u32 %v2997, 2147483648
    %v2999 = vmul.f32 %v2998, 1.442695
    %v3000 = vpow.pop %v2999
    %v3001 = vadd.f32 %v3000, 1.0
    %v3002 = vrcp.pop %v3001
    %v3003 = vmul.f32 1.0, %v3002
    %v3004 = vtanh.pop %v2997
    %v3005 = vsel %vm1512, %v3004, %v3003
    %v3006 = vmul.f32 %v3005, %v2913
    %3008 = vrot.lane.b32.xlu0 %v3005, 64
    %v3009 = vpop.permute.xlu0 %3008
    %v3011 = vmul.f32 %v3005, %v3009
    %3013 = vrot.lane.b32.xlu0 %v3011, 32
    %v3014 = vpop.permute.xlu0 %3013
    %v3016 = vadd.f32 %v3006, %v3014
    %v3017 = vtanh.pop %v3016
    %3019 = vrot.lane.b32.xlu0 %v3017, 64
    %v3020 = vpop.permute.xlu0 %3019
    %v3022 = vmul.f32 %v3005, %v3020
    %3024 = vrot.lane.b32.xlu0 %v3022, 32
    %v3025 = vpop.permute.xlu0 %3024
    %3027 = vst.msk [vmem:[#allocation6 + $0x5] sm:$0x1] %vm2511, %v3025
    %v3028 = vsel %vm1514, %v3025, 0
    %3030 = vmatprep.subr.mxu0 0.0
    %3031 = vmatpush1.msra.mxu0 %v2407
    %3032 = vmatprep.subr.mxu0 0.0
    %3033 = vmatpush1.msra.mxu0 %v2408
    %3034 = vmatprep.subr.mxu0 0.0
    %3035 = vmatpush1.msra.mxu0 %v2409
    %3036 = vmatprep.subr.mxu0 0.0
    %3037 = vmatpush1.msra.mxu0 %v2410
    %3038 = vmatprep.subr.mxu0 0.0
    %3039 = vmatpush1.msra.mxu0 0.0
    %3040 = vmatprep.subr.mxu0 0.0
    %3041 = vmatpush1.msra.mxu0 0.0
    %3042 = vmatprep.subr.mxu0 0.0
    %3043 = vmatpush1.msra.mxu0 0.0
    %3044 = vmatprep.subr.mxu0 0.0
    %3045 = vmatpush1.msra.mxu0 0.0
    %3046 = vmatprep.subr.mxu0 0.0
    %3047 = vmatpush1.msra.mxu0 0.0
    %3048 = vmatprep.subr.mxu0 0.0
    %3049 = vmatpush1.msra.mxu0 0.0
    %3050 = vmatprep.subr.mxu0 0.0
    %3051 = vmatpush1.msra.mxu0 0.0
    %3052 = vmatprep.subr.mxu0 0.0
    %3053 = vmatpush1.msra.mxu0 0.0
    %3054 = vmatprep.subr.mxu0 0.0
    %3055 = vmatpush1.msra.mxu0 0.0
    %3056 = vmatprep.subr.mxu0 0.0
    %3057 = vmatpush1.msra.mxu0 0.0
    %3058 = vmatprep.subr.mxu0 0.0
    %3059 = vmatpush1.msra.mxu0 0.0
    %3060 = vmatprep.subr.mxu0 0.0
    %3061 = vmatpush1.msra.mxu0 0.0
    %3062 = vmatprep.subr.mxu0 0.0
    %3063 = vmatpush1.msra.mxu0 0.0
    %3064 = vmatprep.subr.mxu0 0.0
    %3065 = vmatpush1.msra.mxu0 0.0
    %3066 = vmatprep.subr.mxu0 0.0
    %3067 = vmatpush1.msra.mxu0 0.0
    %3068 = vmatprep.subr.mxu0 0.0
    %3069 = vmatpush1.msra.mxu0 0.0
    %3070 = vmatprep.subr.mxu0 0.0
    %3071 = vmatpush1.msra.mxu0 0.0
    %3072 = vmatprep.subr.mxu0 0.0
    %3073 = vmatpush1.msra.mxu0 0.0
    %3074 = vmatprep.subr.mxu0 0.0
    %3075 = vmatpush1.msra.mxu0 0.0
    %3076 = vmatprep.subr.mxu0 0.0
    %3077 = vmatpush1.msra.mxu0 0.0
    %3078 = vmatprep.subr.mxu0 0.0
    %3079 = vmatpush1.msra.mxu0 0.0
    %3080 = vmatprep.subr.mxu0 0.0
    %3081 = vmatpush1.msra.mxu0 0.0
    %3082 = vmatprep.subr.mxu0 0.0
    %3083 = vmatpush1.msra.mxu0 0.0
    %3084 = vmatprep.subr.mxu0 0.0
    %3085 = vmatpush1.msra.mxu0 0.0
    %3086 = vmatprep.subr.mxu0 0.0
    %3087 = vmatpush1.msra.mxu0 0.0
    %3088 = vmatprep.subr.mxu0 0.0
    %3089 = vmatpush1.msra.mxu0 0.0
    %3090 = vmatprep.subr.mxu0 0.0
    %3091 = vmatpush1.msra.mxu0 0.0
    %3092 = vmatprep.subr.mxu0 0.0
    %3093 = vmatpush1.msra.mxu0 0.0
    %3094 = vmatprep.mubr.f32.mxu0 0.0
    %3095 = vmatmul.mubr.f32.gmra.mrb[0].mxu0 %v3028
    %v3096 = vpop.f32.mrb[0].mxu0
    %v3097 = vadd.f32 0.0, %v3096
    %v3098 = vpop.f32.mrb[0].mxu0
    %3099 = vdwg.mxu0
    %v3100 = vadd.f32 %v2404, %v3097
    %v3101 = vxor.u32 %v3100, 2147483648
    %v3102 = vmul.f32 %v3101, 1.442695
    %v3103 = vpow.pop %v3102
    %v3104 = vadd.f32 %v3103, 1.0
    %v3105 = vrcp.pop %v3104
    %v3106 = vmul.f32 1.0, %v3105
    %v3107 = vtanh.pop %v3100
    %v3108 = vsel %vm1512, %v3107, %v3106
    %v3109 = vmul.f32 %v3108, %v3016
    %3111 = vrot.lane.b32.xlu0 %v3108, 64
    %v3112 = vpop.permute.xlu0 %3111
    %v3114 = vmul.f32 %v3108, %v3112
    %3116 = vrot.lane.b32.xlu0 %v3114, 32
    %v3117 = vpop.permute.xlu0 %3116
    %v3119 = vadd.f32 %v3109, %v3117
    %v3120 = vtanh.pop %v3119
    %3122 = vrot.lane.b32.xlu0 %v3120, 64
    %v3123 = vpop.permute.xlu0 %3122
    %v3125 = vmul.f32 %v3108, %v3123
    %3127 = vrot.lane.b32.xlu0 %v3125, 32
    %v3128 = vpop.permute.xlu0 %3127
    %3130 = vst.msk [vmem:[#allocation6 + $0x6] sm:$0x1] %vm2511, %v3128
    %v3131 = vsel %vm1514, %v3128, 0
    %3133 = vmatprep.subr.mxu0 0.0
    %3134 = vmatpush1.msra.mxu0 %v2407
    %3135 = vmatprep.subr.mxu0 0.0
    %3136 = vmatpush1.msra.mxu0 %v2408
    %3137 = vmatprep.subr.mxu0 0.0
    %3138 = vmatpush1.msra.mxu0 %v2409
    %3139 = vmatprep.subr.mxu0 0.0
    %3140 = vmatpush1.msra.mxu0 %v2410
    %3141 = vmatprep.subr.mxu0 0.0
    %3142 = vmatpush1.msra.mxu0 0.0
    %3143 = vmatprep.subr.mxu0 0.0
    %3144 = vmatpush1.msra.mxu0 0.0
    %3145 = vmatprep.subr.mxu0 0.0
    %3146 = vmatpush1.msra.mxu0 0.0
    %3147 = vmatprep.subr.mxu0 0.0
    %3148 = vmatpush1.msra.mxu0 0.0
    %3149 = vmatprep.subr.mxu0 0.0
    %3150 = vmatpush1.msra.mxu0 0.0
    %3151 = vmatprep.subr.mxu0 0.0
    %3152 = vmatpush1.msra.mxu0 0.0
    %3153 = vmatprep.subr.mxu0 0.0
    %3154 = vmatpush1.msra.mxu0 0.0
    %3155 = vmatprep.subr.mxu0 0.0
    %3156 = vmatpush1.msra.mxu0 0.0
    %3157 = vmatprep.subr.mxu0 0.0
    %3158 = vmatpush1.msra.mxu0 0.0
    %3159 = vmatprep.subr.mxu0 0.0
    %3160 = vmatpush1.msra.mxu0 0.0
    %3161 = vmatprep.subr.mxu0 0.0
    %3162 = vmatpush1.msra.mxu0 0.0
    %3163 = vmatprep.subr.mxu0 0.0
    %3164 = vmatpush1.msra.mxu0 0.0
    %3165 = vmatprep.subr.mxu0 0.0
    %3166 = vmatpush1.msra.mxu0 0.0
    %3167 = vmatprep.subr.mxu0 0.0
    %3168 = vmatpush1.msra.mxu0 0.0
    %3169 = vmatprep.subr.mxu0 0.0
    %3170 = vmatpush1.msra.mxu0 0.0
    %3171 = vmatprep.subr.mxu0 0.0
    %3172 = vmatpush1.msra.mxu0 0.0
    %3173 = vmatprep.subr.mxu0 0.0
    %3174 = vmatpush1.msra.mxu0 0.0
    %3175 = vmatprep.subr.mxu0 0.0
    %3176 = vmatpush1.msra.mxu0 0.0
    %3177 = vmatprep.subr.mxu0 0.0
    %3178 = vmatpush1.msra.mxu0 0.0
    %3179 = vmatprep.subr.mxu0 0.0
    %3180 = vmatpush1.msra.mxu0 0.0
    %3181 = vmatprep.subr.mxu0 0.0
    %3182 = vmatpush1.msra.mxu0 0.0
    %3183 = vmatprep.subr.mxu0 0.0
    %3184 = vmatpush1.msra.mxu0 0.0
    %3185 = vmatprep.subr.mxu0 0.0
    %3186 = vmatpush1.msra.mxu0 0.0
    %3187 = vmatprep.subr.mxu0 0.0
    %3188 = vmatpush1.msra.mxu0 0.0
    %3189 = vmatprep.subr.mxu0 0.0
    %3190 = vmatpush1.msra.mxu0 0.0
    %3191 = vmatprep.subr.mxu0 0.0
    %3192 = vmatpush1.msra.mxu0 0.0
    %3193 = vmatprep.subr.mxu0 0.0
    %3194 = vmatpush1.msra.mxu0 0.0
    %3195 = vmatprep.subr.mxu0 0.0
    %3196 = vmatpush1.msra.mxu0 0.0
    %3197 = vmatprep.mubr.f32.mxu0 0.0
    %3198 = vmatmul.mubr.f32.gmra.mrb[0].mxu0 %v3131
    %v3199 = vpop.f32.mrb[0].mxu0
    %v3200 = vadd.f32 0.0, %v3199
    %v3201 = vpop.f32.mrb[0].mxu0
    %3202 = vdwg.mxu0
    %v3203 = vadd.f32 %v2404, %v3200
    %v3204 = vxor.u32 %v3203, 2147483648
    %v3205 = vmul.f32 %v3204, 1.442695
    %v3206 = vpow.pop %v3205
    %v3207 = vadd.f32 %v3206, 1.0
    %v3208 = vrcp.pop %v3207
    %v3209 = vmul.f32 1.0, %v3208
    %v3210 = vtanh.pop %v3203
    %v3211 = vsel %vm1512, %v3210, %v3209
    %v3212 = vmul.f32 %v3211, %v3119
    %3214 = vrot.lane.b32.xlu0 %v3211, 64
    %v3215 = vpop.permute.xlu0 %3214
    %v3217 = vmul.f32 %v3211, %v3215
    %3219 = vrot.lane.b32.xlu0 %v3217, 32
    %v3220 = vpop.permute.xlu0 %3219
    %v3222 = vadd.f32 %v3212, %v3220
    %v3223 = vtanh.pop %v3222
    %3225 = vrot.lane.b32.xlu0 %v3223, 64
    %v3226 = vpop.permute.xlu0 %3225
    %v3228 = vmul.f32 %v3211, %v3226
    %3230 = vrot.lane.b32.xlu0 %v3228, 32
    %v3231 = vpop.permute.xlu0 %3230
    %3233 = vst.msk [vmem:[#allocation6 + $0x7] sm:$0x1] %vm2511, %v3231
    %v3234 = vld [vmem:[#allocation6] sm:$0xff]
    %v3235 = vld [vmem:[#allocation16] sm:$0xff]
    %v3236 = vld [vmem:[#allocation16 + $0x8] sm:$0xff]
    %v3237 = vld [vmem:[#allocation16 + $0x10] sm:$0xff]
    %v3238 = vld [vmem:[#allocation16 + $0x18] sm:$0xff]
    %v3239 = vld [vmem:[#allocation16 + $0x20] sm:$0xff]
    %v3240 = vld [vmem:[#allocation16 + $0x28] sm:$0xff]
    %v3241 = vld [vmem:[#allocation16 + $0x30] sm:$0xff]
    %v3242 = vld [vmem:[#allocation16 + $0x38] sm:$0xff]
    %v3243 = vld [vmem:[%s12] sm:$0x3]
    %v3245 = vlaneseq
    %v3246 = vshrl.u32 %v3245, 7
    %v3247 = vsub.s32 0, %v3246
    %v3248 = vrot.slane %v3243, %v3247
    %v3249 = vlaneseq
    %v3250 = vshrl.u32 %v3249, 7
    %v3251 = vsub.s32 1, %v3250
    %v3252 = vrot.slane %v3243, %v3251
    %v3256 = vsel %vm1514, %v3234, 0
    %3258 = vmatprep.subr.mxu0 %v3236
    %3259 = vmatpush1.msra.mxu0 %v3235
    %3260 = vmatprep.subr.mxu0 %v3238
    %3261 = vmatpush1.msra.mxu0 %v3237
    %3262 = vmatprep.subr.mxu0 %v3240
    %3263 = vmatpush1.msra.mxu0 %v3239
    %3264 = vmatprep.subr.mxu0 %v3242
    %3265 = vmatpush1.msra.mxu0 %v3241
    %3266 = vmatprep.subr.mxu0 0.0
    %3267 = vmatpush1.msra.mxu0 0.0
    %3268 = vmatprep.subr.mxu0 0.0
    %3269 = vmatpush1.msra.mxu0 0.0
    %3270 = vmatprep.subr.mxu0 0.0
    %3271 = vmatpush1.msra.mxu0 0.0
    %3272 = vmatprep.subr.mxu0 0.0
    %3273 = vmatpush1.msra.mxu0 0.0
    %3274 = vmatprep.subr.mxu0 0.0
    %3275 = vmatpush1.msra.mxu0 0.0
    %3276 = vmatprep.subr.mxu0 0.0
    %3277 = vmatpush1.msra.mxu0 0.0
    %3278 = vmatprep.subr.mxu0 0.0
    %3279 = vmatpush1.msra.mxu0 0.0
    %3280 = vmatprep.subr.mxu0 0.0
    %3281 = vmatpush1.msra.mxu0 0.0
    %3282 = vmatprep.subr.mxu0 0.0
    %3283 = vmatpush1.msra.mxu0 0.0
    %3284 = vmatprep.subr.mxu0 0.0
    %3285 = vmatpush1.msra.mxu0 0.0
    %3286 = vmatprep.subr.mxu0 0.0
    %3287 = vmatpush1.msra.mxu0 0.0
    %3288 = vmatprep.subr.mxu0 0.0
    %3289 = vmatpush1.msra.mxu0 0.0
    %3290 = vmatprep.subr.mxu0 0.0
    %3291 = vmatpush1.msra.mxu0 0.0
    %3292 = vmatprep.subr.mxu0 0.0
    %3293 = vmatpush1.msra.mxu0 0.0
    %3294 = vmatprep.subr.mxu0 0.0
    %3295 = vmatpush1.msra.mxu0 0.0
    %3296 = vmatprep.subr.mxu0 0.0
    %3297 = vmatpush1.msra.mxu0 0.0
    %3298 = vmatprep.subr.mxu0 0.0
    %3299 = vmatpush1.msra.mxu0 0.0
    %3300 = vmatprep.subr.mxu0 0.0
    %3301 = vmatpush1.msra.mxu0 0.0
    %3302 = vmatprep.subr.mxu0 0.0
    %3303 = vmatpush1.msra.mxu0 0.0
    %3304 = vmatprep.subr.mxu0 0.0
    %3305 = vmatpush1.msra.mxu0 0.0
    %3306 = vmatprep.subr.mxu0 0.0
    %3307 = vmatpush1.msra.mxu0 0.0
    %3308 = vmatprep.subr.mxu0 0.0
    %3309 = vmatpush1.msra.mxu0 0.0
    %3310 = vmatprep.subr.mxu0 0.0
    %3311 = vmatpush1.msra.mxu0 0.0
    %3312 = vmatprep.subr.mxu0 0.0
    %3313 = vmatpush1.msra.mxu0 0.0
    %3314 = vmatprep.subr.mxu0 0.0
    %3315 = vmatpush1.msra.mxu0 0.0
    %3316 = vmatprep.subr.mxu0 0.0
    %3317 = vmatpush1.msra.mxu0 0.0
    %3318 = vmatprep.subr.mxu0 0.0
    %3319 = vmatpush1.msra.mxu0 0.0
    %3320 = vmatprep.subr.mxu0 0.0
    %3321 = vmatpush1.msra.mxu0 0.0
    %3322 = vmatprep.mubr.f32.mxu0 0.0
    %3323 = vmatmul.mubr.f32.gmra.mrb[0].mxu0 %v3256
    %v3324 = vpop.f32.mrb[0].mxu0
    %v3325 = vadd.f32 %v3248, %v3324
    %v3326 = vpop.f32.mrb[0].mxu0
    %v3327 = vadd.f32 %v3252, %v3326
    %3328 = vdwg.mxu0
    %3329 = vst [vmem:[#allocation4] sm:$0xff] %v3325
    %3330 = vst [vmem:[#allocation4 + $0x8] sm:$0xff] %v3327
    %v3331 = vld [vmem:[#allocation18] sm:$0xff]
    %v3332 = vld [vmem:[#allocation18 + $0x8] sm:$0xff]
    %v3333 = vld [vmem:[#allocation18 + $0x10] sm:$0xff]
    %v3334 = vld [vmem:[#allocation18 + $0x18] sm:$0xff]
    %v3335 = vld [vmem:[#allocation18 + $0x20] sm:$0xff]
    %v3336 = vld [vmem:[#allocation18 + $0x28] sm:$0xff]
    %v3337 = vld [vmem:[#allocation18 + $0x30] sm:$0xff]
    %v3338 = vld [vmem:[#allocation18 + $0x38] sm:$0xff]
    %v3339 = vld [vmem:[#allocation18 + $0x40] sm:$0xff]
    %v3340 = vld [vmem:[#allocation18 + $0x48] sm:$0xff]
    %v3341 = vld [vmem:[#allocation18 + $0x50] sm:$0xff]
    %v3342 = vld [vmem:[#allocation18 + $0x58] sm:$0xff]
    %v3343 = vld [vmem:[#allocation18 + $0x60] sm:$0xff]
    %v3344 = vld [vmem:[#allocation18 + $0x68] sm:$0xff]
    %v3345 = vld [vmem:[#allocation18 + $0x70] sm:$0xff]
    %v3346 = vld [vmem:[#allocation18 + $0x78] sm:$0xff]
    %v3347 = vld [vmem:[#allocation4] ss:$8 sm:$0x3]
    %3348 = vmatprep.subr.mxu0 %v3332
    %3349 = vmatpush1.msra.mxu0 %v3331
    %3350 = vmatprep.subr.mxu0 %v3334
    %3351 = vmatpush1.msra.mxu0 %v3333
    %3352 = vmatprep.subr.mxu0 %v3336
    %3353 = vmatpush1.msra.mxu0 %v3335
    %3354 = vmatprep.subr.mxu0 %v3338
    %3355 = vmatpush1.msra.mxu0 %v3337
    %3356 = vmatprep.subr.mxu0 %v3340
    %3357 = vmatpush1.msra.mxu0 %v3339
    %3358 = vmatprep.subr.mxu0 %v3342
    %3359 = vmatpush1.msra.mxu0 %v3341
    %3360 = vmatprep.subr.mxu0 %v3344
    %3361 = vmatpush1.msra.mxu0 %v3343
    %3362 = vmatprep.subr.mxu0 %v3346
    %3363 = vmatpush1.msra.mxu0 %v3345
    %3364 = vmatprep.subr.mxu0 0.0
    %3365 = vmatpush1.msra.mxu0 0.0
    %3366 = vmatprep.subr.mxu0 0.0
    %3367 = vmatpush1.msra.mxu0 0.0
    %3368 = vmatprep.subr.mxu0 0.0
    %3369 = vmatpush1.msra.mxu0 0.0
    %3370 = vmatprep.subr.mxu0 0.0
    %3371 = vmatpush1.msra.mxu0 0.0
    %3372 = vmatprep.subr.mxu0 0.0
    %3373 = vmatpush1.msra.mxu0 0.0
    %3374 = vmatprep.subr.mxu0 0.0
    %3375 = vmatpush1.msra.mxu0 0.0
    %3376 = vmatprep.subr.mxu0 0.0
    %3377 = vmatpush1.msra.mxu0 0.0
    %3378 = vmatprep.subr.mxu0 0.0
    %3379 = vmatpush1.msra.mxu0 0.0
    %3380 = vmatprep.subr.mxu0 0.0
    %3381 = vmatpush1.msra.mxu0 0.0
    %3382 = vmatprep.subr.mxu0 0.0
    %3383 = vmatpush1.msra.mxu0 0.0
    %3384 = vmatprep.subr.mxu0 0.0
    %3385 = vmatpush1.msra.mxu0 0.0
    %3386 = vmatprep.subr.mxu0 0.0
    %3387 = vmatpush1.msra.mxu0 0.0
    %3388 = vmatprep.subr.mxu0 0.0
    %3389 = vmatpush1.msra.mxu0 0.0
    %3390 = vmatprep.subr.mxu0 0.0
    %3391 = vmatpush1.msra.mxu0 0.0
    %3392 = vmatprep.subr.mxu0 0.0
    %3393 = vmatpush1.msra.mxu0 0.0
    %3394 = vmatprep.subr.mxu0 0.0
    %3395 = vmatpush1.msra.mxu0 0.0
    %3396 = vmatprep.subr.mxu0 0.0
    %3397 = vmatpush1.msra.mxu0 0.0
    %3398 = vmatprep.subr.mxu0 0.0
    %3399 = vmatpush1.msra.mxu0 0.0
    %3400 = vmatprep.subr.mxu0 0.0
    %3401 = vmatpush1.msra.mxu0 0.0
    %3402 = vmatprep.subr.mxu0 0.0
    %3403 = vmatpush1.msra.mxu0 0.0
    %3404 = vmatprep.subr.mxu0 0.0
    %3405 = vmatpush1.msra.mxu0 0.0
    %3406 = vmatprep.subr.mxu0 0.0
    %3407 = vmatpush1.msra.mxu0 0.0
    %3408 = vmatprep.subr.mxu0 0.0
    %3409 = vmatpush1.msra.mxu0 0.0
    %3410 = vmatprep.subr.mxu0 0.0
    %3411 = vmatpush1.msra.mxu0 0.0
    %3412 = vmatprep.mubr.f32.mxu0 0.0
    %3413 = vmatmul.mubr.f32.gmra.mrb[0].mxu0 %v305
    %v3414 = vpop.f32.mrb[0].mxu0
    %v3415 = vadd.f32 0.0, %v3414
    %v3416 = vpop.f32.mrb[0].mxu0
    %v3417 = vadd.f32 0.0, %v3416
    %3418 = vdwg.mxu0
    %v3421 = vcombine.low %v3415, %v3417
    %v3423 = vunpack.c.l.s4 1966171168
    %v3424 = vunpack.c.0.s8 %v3423
    %v3425 = vlaneseq
    %v3426 = vshrl.u32 %v3425, 7
    %v3427 = vsub.s32 %v3424, %v3426
    %v3428 = vrot.slane %v3421, %v3427
    %v3430 = vunpack.c.l.s4 1966171168
    %v3431 = vunpack.c.0.s8 %v3430
    %v3432 = vlaneseq
    %v3433 = vshrl.u32 %v3432, 7
    %v3434 = vsub.s32 %v3431, %v3433
    %v3435 = vrot.slane %v3428, %v3434
    %v3437 = vadd.f32 %v3347, %v3435
    %v3438 = vxor.u32 %v3437, 2147483648
    %v3439 = vmul.f32 %v3438, 1.442695
    %v3440 = vpow.pop %v3439
    %v3441 = vadd.f32 %v3440, 1.0
    %v3442 = vrcp.pop %v3441
    %v3443 = vmul.f32 1.0, %v3442
    %v3444 = vtanh.pop %v3437
    %v3446 = vlaneseq
    %v3447 = vshrl.u32 %v3446, 7
    %v3448 = vsub.s32 0, %v3447
    %v3449 = vrot.slane %v3444, %v3448
    %v3450 = vlaneseq
    %v3451 = vshrl.u32 %v3450, 7
    %v3452 = vsub.s32 1, %v3451
    %v3453 = vrot.slane %v3444, %v3452
    %v3457 = vlaneseq
    %v3458 = vshrl.u32 %v3457, 7
    %v3459 = vsub.s32 0, %v3458
    %v3460 = vrot.slane %v3443, %v3459
    %v3461 = vlaneseq
    %v3462 = vshrl.u32 %v3461, 7
    %v3463 = vsub.s32 1, %v3462
    %v3464 = vrot.slane %v3443, %v3463
    %v3467 = vsel %vm300, %v3449, %v3460
    %v3468 = vsel %vm301, %v3453, %v3464
    %v3469 = vmul.f32 %v3467, 0.0
    %v3470 = vmul.f32 %v3467, %v3468
    %3472 = vrot.lane.b32.xlu0 %v3470, 64
    %v3473 = vpop.permute.xlu0 %3472
    %v3475 = vadd.f32 %v3469, %v3473
    %v3476 = vtanh.pop %v3475
    %v3477 = vmul.f32 %v3468, %v3476
    %3479 = vrot.lane.b32.xlu0 %v3477, 64
    %v3480 = vpop.permute.xlu0 %3479
    %3482 = vst.msk [vmem:[#allocation7] sm:$0x1] %vm441, %v3480
    %s3483 = scalar_lea.vmem [#allocation4], 1
    %v3484 = vld [vmem:[%s3483] ss:$8 sm:$0x3]
    %v3485 = vsel %vm303, %v3480, 0
    %3487 = vmatprep.subr.mxu0 %v3332
    %3488 = vmatpush1.msra.mxu0 %v3331
    %3489 = vmatprep.subr.mxu0 %v3334
    %3490 = vmatpush1.msra.mxu0 %v3333
    %3491 = vmatprep.subr.mxu0 %v3336
    %3492 = vmatpush1.msra.mxu0 %v3335
    %3493 = vmatprep.subr.mxu0 %v3338
    %3494 = vmatpush1.msra.mxu0 %v3337
    %3495 = vmatprep.subr.mxu0 %v3340
    %3496 = vmatpush1.msra.mxu0 %v3339
    %3497 = vmatprep.subr.mxu0 %v3342
    %3498 = vmatpush1.msra.mxu0 %v3341
    %3499 = vmatprep.subr.mxu0 %v3344
    %3500 = vmatpush1.msra.mxu0 %v3343
    %3501 = vmatprep.subr.mxu0 %v3346
    %3502 = vmatpush1.msra.mxu0 %v3345
    %3503 = vmatprep.subr.mxu0 0.0
    %3504 = vmatpush1.msra.mxu0 0.0
    %3505 = vmatprep.subr.mxu0 0.0
    %3506 = vmatpush1.msra.mxu0 0.0
    %3507 = vmatprep.subr.mxu0 0.0
    %3508 = vmatpush1.msra.mxu0 0.0
    %3509 = vmatprep.subr.mxu0 0.0
    %3510 = vmatpush1.msra.mxu0 0.0
    %3511 = vmatprep.subr.mxu0 0.0
    %3512 = vmatpush1.msra.mxu0 0.0
    %3513 = vmatprep.subr.mxu0 0.0
    %3514 = vmatpush1.msra.mxu0 0.0
    %3515 = vmatprep.subr.mxu0 0.0
    %3516 = vmatpush1.msra.mxu0 0.0
    %3517 = vmatprep.subr.mxu0 0.0
    %3518 = vmatpush1.msra.mxu0 0.0
    %3519 = vmatprep.subr.mxu0 0.0
    %3520 = vmatpush1.msra.mxu0 0.0
    %3521 = vmatprep.subr.mxu0 0.0
    %3522 = vmatpush1.msra.mxu0 0.0
    %3523 = vmatprep.subr.mxu0 0.0
    %3524 = vmatpush1.msra.mxu0 0.0
    %3525 = vmatprep.subr.mxu0 0.0
    %3526 = vmatpush1.msra.mxu0 0.0
    %3527 = vmatprep.subr.mxu0 0.0
    %3528 = vmatpush1.msra.mxu0 0.0
    %3529 = vmatprep.subr.mxu0 0.0
    %3530 = vmatpush1.msra.mxu0 0.0
    %3531 = vmatprep.subr.mxu0 0.0
    %3532 = vmatpush1.msra.mxu0 0.0
    %3533 = vmatprep.subr.mxu0 0.0
    %3534 = vmatpush1.msra.mxu0 0.0
    %3535 = vmatprep.subr.mxu0 0.0
    %3536 = vmatpush1.msra.mxu0 0.0
    %3537 = vmatprep.subr.mxu0 0.0
    %3538 = vmatpush1.msra.mxu0 0.0
    %3539 = vmatprep.subr.mxu0 0.0
    %3540 = vmatpush1.msra.mxu0 0.0
    %3541 = vmatprep.subr.mxu0 0.0
    %3542 = vmatpush1.msra.mxu0 0.0
    %3543 = vmatprep.subr.mxu0 0.0
    %3544 = vmatpush1.msra.mxu0 0.0
    %3545 = vmatprep.subr.mxu0 0.0
    %3546 = vmatpush1.msra.mxu0 0.0
    %3547 = vmatprep.subr.mxu0 0.0
    %3548 = vmatpush1.msra.mxu0 0.0
    %3549 = vmatprep.subr.mxu0 0.0
    %3550 = vmatpush1.msra.mxu0 0.0
    %3551 = vmatprep.mubr.f32.mxu0 0.0
    %3552 = vmatmul.mubr.f32.gmra.mrb[0].mxu0 %v3485
    %v3553 = vpop.f32.mrb[0].mxu0
    %v3554 = vadd.f32 0.0, %v3553
    %v3555 = vpop.f32.mrb[0].mxu0
    %v3556 = vadd.f32 0.0, %v3555
    %3557 = vdwg.mxu0
    %v3560 = vcombine.low %v3554, %v3556
    %v3562 = vunpack.c.l.s4 1966171168
    %v3563 = vunpack.c.0.s8 %v3562
    %v3564 = vlaneseq
    %v3565 = vshrl.u32 %v3564, 7
    %v3566 = vsub.s32 %v3563, %v3565
    %v3567 = vrot.slane %v3560, %v3566
    %v3569 = vunpack.c.l.s4 1966171168
    %v3570 = vunpack.c.0.s8 %v3569
    %v3571 = vlaneseq
    %v3572 = vshrl.u32 %v3571, 7
    %v3573 = vsub.s32 %v3570, %v3572
    %v3574 = vrot.slane %v3567, %v3573
    %v3576 = vadd.f32 %v3484, %v3574
    %v3577 = vxor.u32 %v3576, 2147483648
    %v3578 = vmul.f32 %v3577, 1.442695
    %v3579 = vpow.pop %v3578
    %v3580 = vadd.f32 %v3579, 1.0
    %v3581 = vrcp.pop %v3580
    %v3582 = vmul.f32 1.0, %v3581
    %v3583 = vtanh.pop %v3576
    %v3585 = vlaneseq
    %v3586 = vshrl.u32 %v3585, 7
    %v3587 = vsub.s32 0, %v3586
    %v3588 = vrot.slane %v3583, %v3587
    %v3589 = vlaneseq
    %v3590 = vshrl.u32 %v3589, 7
    %v3591 = vsub.s32 1, %v3590
    %v3592 = vrot.slane %v3583, %v3591
    %v3596 = vlaneseq
    %v3597 = vshrl.u32 %v3596, 7
    %v3598 = vsub.s32 0, %v3597
    %v3599 = vrot.slane %v3582, %v3598
    %v3600 = vlaneseq
    %v3601 = vshrl.u32 %v3600, 7
    %v3602 = vsub.s32 1, %v3601
    %v3603 = vrot.slane %v3582, %v3602
    %v3606 = vsel %vm300, %v3588, %v3599
    %v3607 = vsel %vm301, %v3592, %v3603
    %v3608 = vmul.f32 %v3606, %v3475
    %v3609 = vmul.f32 %v3606, %v3607
    %3611 = vrot.lane.b32.xlu0 %v3609, 64
    %v3612 = vpop.permute.xlu0 %3611
    %v3614 = vadd.f32 %v3608, %v3612
    %v3615 = vtanh.pop %v3614
    %v3616 = vmul.f32 %v3607, %v3615
    %3618 = vrot.lane.b32.xlu0 %v3616, 64
    %v3619 = vpop.permute.xlu0 %3618
    %3621 = vst.msk [vmem:[#allocation7 + $0x1] sm:$0x1] %vm441, %v3619
    %s3622 = scalar_lea.vmem [#allocation4], 2
    %v3623 = vld [vmem:[%s3622] ss:$8 sm:$0x3]
    %v3624 = vsel %vm303, %v3619, 0
    %3626 = vmatprep.subr.mxu0 %v3332
    %3627 = vmatpush1.msra.mxu0 %v3331
    %3628 = vmatprep.subr.mxu0 %v3334
    %3629 = vmatpush1.msra.mxu0 %v3333
    %3630 = vmatprep.subr.mxu0 %v3336
    %3631 = vmatpush1.msra.mxu0 %v3335
    %3632 = vmatprep.subr.mxu0 %v3338
    %3633 = vmatpush1.msra.mxu0 %v3337
    %3634 = vmatprep.subr.mxu0 %v3340
    %3635 = vmatpush1.msra.mxu0 %v3339
    %3636 = vmatprep.subr.mxu0 %v3342
    %3637 = vmatpush1.msra.mxu0 %v3341
    %3638 = vmatprep.subr.mxu0 %v3344
    %3639 = vmatpush1.msra.mxu0 %v3343
    %3640 = vmatprep.subr.mxu0 %v3346
    %3641 = vmatpush1.msra.mxu0 %v3345
    %3642 = vmatprep.subr.mxu0 0.0
    %3643 = vmatpush1.msra.mxu0 0.0
    %3644 = vmatprep.subr.mxu0 0.0
    %3645 = vmatpush1.msra.mxu0 0.0
    %3646 = vmatprep.subr.mxu0 0.0
    %3647 = vmatpush1.msra.mxu0 0.0
    %3648 = vmatprep.subr.mxu0 0.0
    %3649 = vmatpush1.msra.mxu0 0.0
    %3650 = vmatprep.subr.mxu0 0.0
    %3651 = vmatpush1.msra.mxu0 0.0
    %3652 = vmatprep.subr.mxu0 0.0
    %3653 = vmatpush1.msra.mxu0 0.0
    %3654 = vmatprep.subr.mxu0 0.0
    %3655 = vmatpush1.msra.mxu0 0.0
    %3656 = vmatprep.subr.mxu0 0.0
    %3657 = vmatpush1.msra.mxu0 0.0
    %3658 = vmatprep.subr.mxu0 0.0
    %3659 = vmatpush1.msra.mxu0 0.0
    %3660 = vmatprep.subr.mxu0 0.0
    %3661 = vmatpush1.msra.mxu0 0.0
    %3662 = vmatprep.subr.mxu0 0.0
    %3663 = vmatpush1.msra.mxu0 0.0
    %3664 = vmatprep.subr.mxu0 0.0
    %3665 = vmatpush1.msra.mxu0 0.0
    %3666 = vmatprep.subr.mxu0 0.0
    %3667 = vmatpush1.msra.mxu0 0.0
    %3668 = vmatprep.subr.mxu0 0.0
    %3669 = vmatpush1.msra.mxu0 0.0
    %3670 = vmatprep.subr.mxu0 0.0
    %3671 = vmatpush1.msra.mxu0 0.0
    %3672 = vmatprep.subr.mxu0 0.0
    %3673 = vmatpush1.msra.mxu0 0.0
    %3674 = vmatprep.subr.mxu0 0.0
    %3675 = vmatpush1.msra.mxu0 0.0
    %3676 = vmatprep.subr.mxu0 0.0
    %3677 = vmatpush1.msra.mxu0 0.0
    %3678 = vmatprep.subr.mxu0 0.0
    %3679 = vmatpush1.msra.mxu0 0.0
    %3680 = vmatprep.subr.mxu0 0.0
    %3681 = vmatpush1.msra.mxu0 0.0
    %3682 = vmatprep.subr.mxu0 0.0
    %3683 = vmatpush1.msra.mxu0 0.0
    %3684 = vmatprep.subr.mxu0 0.0
    %3685 = vmatpush1.msra.mxu0 0.0
    %3686 = vmatprep.subr.mxu0 0.0
    %3687 = vmatpush1.msra.mxu0 0.0
    %3688 = vmatprep.subr.mxu0 0.0
    %3689 = vmatpush1.msra.mxu0 0.0
    %3690 = vmatprep.mubr.f32.mxu0 0.0
    %3691 = vmatmul.mubr.f32.gmra.mrb[0].mxu0 %v3624
    %v3692 = vpop.f32.mrb[0].mxu0
    %v3693 = vadd.f32 0.0, %v3692
    %v3694 = vpop.f32.mrb[0].mxu0
    %v3695 = vadd.f32 0.0, %v3694
    %3696 = vdwg.mxu0
    %v3699 = vcombine.low %v3693, %v3695
    %v3701 = vunpack.c.l.s4 1966171168
    %v3702 = vunpack.c.0.s8 %v3701
    %v3703 = vlaneseq
    %v3704 = vshrl.u32 %v3703, 7
    %v3705 = vsub.s32 %v3702, %v3704
    %v3706 = vrot.slane %v3699, %v3705
    %v3708 = vunpack.c.l.s4 1966171168
    %v3709 = vunpack.c.0.s8 %v3708
    %v3710 = vlaneseq
    %v3711 = vshrl.u32 %v3710, 7
    %v3712 = vsub.s32 %v3709, %v3711
    %v3713 = vrot.slane %v3706, %v3712
    %v3715 = vadd.f32 %v3623, %v3713
    %v3716 = vxor.u32 %v3715, 2147483648
    %v3717 = vmul.f32 %v3716, 1.442695
    %v3718 = vpow.pop %v3717
    %v3719 = vadd.f32 %v3718, 1.0
    %v3720 = vrcp.pop %v3719
    %v3721 = vmul.f32 1.0, %v3720
    %v3722 = vtanh.pop %v3715
    %v3724 = vlaneseq
    %v3725 = vshrl.u32 %v3724, 7
    %v3726 = vsub.s32 0, %v3725
    %v3727 = vrot.slane %v3722, %v3726
    %v3728 = vlaneseq
    %v3729 = vshrl.u32 %v3728, 7
    %v3730 = vsub.s32 1, %v3729
    %v3731 = vrot.slane %v3722, %v3730
    %v3735 = vlaneseq
    %v3736 = vshrl.u32 %v3735, 7
    %v3737 = vsub.s32 0, %v3736
    %v3738 = vrot.slane %v3721, %v3737
    %v3739 = vlaneseq
    %v3740 = vshrl.u32 %v3739, 7
    %v3741 = vsub.s32 1, %v3740
    %v3742 = vrot.slane %v3721, %v3741
    %v3745 = vsel %vm300, %v3727, %v3738
    %v3746 = vsel %vm301, %v3731, %v3742
    %v3747 = vmul.f32 %v3745, %v3614
    %v3748 = vmul.f32 %v3745, %v3746
    %3750 = vrot.lane.b32.xlu0 %v3748, 64
    %v3751 = vpop.permute.xlu0 %3750
    %v3753 = vadd.f32 %v3747, %v3751
    %v3754 = vtanh.pop %v3753
    %v3755 = vmul.f32 %v3746, %v3754
    %3757 = vrot.lane.b32.xlu0 %v3755, 64
    %v3758 = vpop.permute.xlu0 %3757
    %3760 = vst.msk [vmem:[#allocation7 + $0x2] sm:$0x1] %vm441, %v3758
    %s3761 = scalar_lea.vmem [#allocation4], 3
    %v3762 = vld [vmem:[%s3761] ss:$8 sm:$0x3]
    %v3763 = vsel %vm303, %v3758, 0
    %3765 = vmatprep.subr.mxu0 %v3332
    %3766 = vmatpush1.msra.mxu0 %v3331
    %3767 = vmatprep.subr.mxu0 %v3334
    %3768 = vmatpush1.msra.mxu0 %v3333
    %3769 = vmatprep.subr.mxu0 %v3336
    %3770 = vmatpush1.msra.mxu0 %v3335
    %3771 = vmatprep.subr.mxu0 %v3338
    %3772 = vmatpush1.msra.mxu0 %v3337
    %3773 = vmatprep.subr.mxu0 %v3340
    %3774 = vmatpush1.msra.mxu0 %v3339
    %3775 = vmatprep.subr.mxu0 %v3342
    %3776 = vmatpush1.msra.mxu0 %v3341
    %3777 = vmatprep.subr.mxu0 %v3344
    %3778 = vmatpush1.msra.mxu0 %v3343
    %3779 = vmatprep.subr.mxu0 %v3346
    %3780 = vmatpush1.msra.mxu0 %v3345
    %3781 = vmatprep.subr.mxu0 0.0
    %3782 = vmatpush1.msra.mxu0 0.0
    %3783 = vmatprep.subr.mxu0 0.0
    %3784 = vmatpush1.msra.mxu0 0.0
    %3785 = vmatprep.subr.mxu0 0.0
    %3786 = vmatpush1.msra.mxu0 0.0
    %3787 = vmatprep.subr.mxu0 0.0
    %3788 = vmatpush1.msra.mxu0 0.0
    %3789 = vmatprep.subr.mxu0 0.0
    %3790 = vmatpush1.msra.mxu0 0.0
    %3791 = vmatprep.subr.mxu0 0.0
    %3792 = vmatpush1.msra.mxu0 0.0
    %3793 = vmatprep.subr.mxu0 0.0
    %3794 = vmatpush1.msra.mxu0 0.0
    %3795 = vmatprep.subr.mxu0 0.0
    %3796 = vmatpush1.msra.mxu0 0.0
    %3797 = vmatprep.subr.mxu0 0.0
    %3798 = vmatpush1.msra.mxu0 0.0
    %3799 = vmatprep.subr.mxu0 0.0
    %3800 = vmatpush1.msra.mxu0 0.0
    %3801 = vmatprep.subr.mxu0 0.0
    %3802 = vmatpush1.msra.mxu0 0.0
    %3803 = vmatprep.subr.mxu0 0.0
    %3804 = vmatpush1.msra.mxu0 0.0
    %3805 = vmatprep.subr.mxu0 0.0
    %3806 = vmatpush1.msra.mxu0 0.0
    %3807 = vmatprep.subr.mxu0 0.0
    %3808 = vmatpush1.msra.mxu0 0.0
    %3809 = vmatprep.subr.mxu0 0.0
    %3810 = vmatpush1.msra.mxu0 0.0
    %3811 = vmatprep.subr.mxu0 0.0
    %3812 = vmatpush1.msra.mxu0 0.0
    %3813 = vmatprep.subr.mxu0 0.0
    %3814 = vmatpush1.msra.mxu0 0.0
    %3815 = vmatprep.subr.mxu0 0.0
    %3816 = vmatpush1.msra.mxu0 0.0
    %3817 = vmatprep.subr.mxu0 0.0
    %3818 = vmatpush1.msra.mxu0 0.0
    %3819 = vmatprep.subr.mxu0 0.0
    %3820 = vmatpush1.msra.mxu0 0.0
    %3821 = vmatprep.subr.mxu0 0.0
    %3822 = vmatpush1.msra.mxu0 0.0
    %3823 = vmatprep.subr.mxu0 0.0
    %3824 = vmatpush1.msra.mxu0 0.0
    %3825 = vmatprep.subr.mxu0 0.0
    %3826 = vmatpush1.msra.mxu0 0.0
    %3827 = vmatprep.subr.mxu0 0.0
    %3828 = vmatpush1.msra.mxu0 0.0
    %3829 = vmatprep.mubr.f32.mxu0 0.0
    %3830 = vmatmul.mubr.f32.gmra.mrb[0].mxu0 %v3763
    %v3831 = vpop.f32.mrb[0].mxu0
    %v3832 = vadd.f32 0.0, %v3831
    %v3833 = vpop.f32.mrb[0].mxu0
    %v3834 = vadd.f32 0.0, %v3833
    %3835 = vdwg.mxu0
    %v3838 = vcombine.low %v3832, %v3834
    %v3840 = vunpack.c.l.s4 1966171168
    %v3841 = vunpack.c.0.s8 %v3840
    %v3842 = vlaneseq
    %v3843 = vshrl.u32 %v3842, 7
    %v3844 = vsub.s32 %v3841, %v3843
    %v3845 = vrot.slane %v3838, %v3844
    %v3847 = vunpack.c.l.s4 1966171168
    %v3848 = vunpack.c.0.s8 %v3847
    %v3849 = vlaneseq
    %v3850 = vshrl.u32 %v3849, 7
    %v3851 = vsub.s32 %v3848, %v3850
    %v3852 = vrot.slane %v3845, %v3851
    %v3854 = vadd.f32 %v3762, %v3852
    %v3855 = vxor.u32 %v3854, 2147483648
    %v3856 = vmul.f32 %v3855, 1.442695
    %v3857 = vpow.pop %v3856
    %v3858 = vadd.f32 %v3857, 1.0
    %v3859 = vrcp.pop %v3858
    %v3860 = vmul.f32 1.0, %v3859
    %v3861 = vtanh.pop %v3854
    %v3863 = vlaneseq
    %v3864 = vshrl.u32 %v3863, 7
    %v3865 = vsub.s32 0, %v3864
    %v3866 = vrot.slane %v3861, %v3865
    %v3867 = vlaneseq
    %v3868 = vshrl.u32 %v3867, 7
    %v3869 = vsub.s32 1, %v3868
    %v3870 = vrot.slane %v3861, %v3869
    %v3874 = vlaneseq
    %v3875 = vshrl.u32 %v3874, 7
    %v3876 = vsub.s32 0, %v3875
    %v3877 = vrot.slane %v3860, %v3876
    %v3878 = vlaneseq
    %v3879 = vshrl.u32 %v3878, 7
    %v3880 = vsub.s32 1, %v3879
    %v3881 = vrot.slane %v3860, %v3880
    %v3884 = vsel %vm300, %v3866, %v3877
    %v3885 = vsel %vm301, %v3870, %v3881
    %v3886 = vmul.f32 %v3884, %v3753
    %v3887 = vmul.f32 %v3884, %v3885
    %3889 = vrot.lane.b32.xlu0 %v3887, 64
    %v3890 = vpop.permute.xlu0 %3889
    %v3892 = vadd.f32 %v3886, %v3890
    %v3893 = vtanh.pop %v3892
    %v3894 = vmul.f32 %v3885, %v3893
    %3896 = vrot.lane.b32.xlu0 %v3894, 64
    %v3897 = vpop.permute.xlu0 %3896
    %3899 = vst.msk [vmem:[#allocation7 + $0x3] sm:$0x1] %vm441, %v3897
    %s3900 = scalar_lea.vmem [#allocation4], 4
    %v3901 = vld [vmem:[%s3900] ss:$8 sm:$0x3]
    %v3902 = vsel %vm303, %v3897, 0
    %3904 = vmatprep.subr.mxu0 %v3332
    %3905 = vmatpush1.msra.mxu0 %v3331
    %3906 = vmatprep.subr.mxu0 %v3334
    %3907 = vmatpush1.msra.mxu0 %v3333
    %3908 = vmatprep.subr.mxu0 %v3336
    %3909 = vmatpush1.msra.mxu0 %v3335
    %3910 = vmatprep.subr.mxu0 %v3338
    %3911 = vmatpush1.msra.mxu0 %v3337
    %3912 = vmatprep.subr.mxu0 %v3340
    %3913 = vmatpush1.msra.mxu0 %v3339
    %3914 = vmatprep.subr.mxu0 %v3342
    %3915 = vmatpush1.msra.mxu0 %v3341
    %3916 = vmatprep.subr.mxu0 %v3344
    %3917 = vmatpush1.msra.mxu0 %v3343
    %3918 = vmatprep.subr.mxu0 %v3346
    %3919 = vmatpush1.msra.mxu0 %v3345
    %3920 = vmatprep.subr.mxu0 0.0
    %3921 = vmatpush1.msra.mxu0 0.0
    %3922 = vmatprep.subr.mxu0 0.0
    %3923 = vmatpush1.msra.mxu0 0.0
    %3924 = vmatprep.subr.mxu0 0.0
    %3925 = vmatpush1.msra.mxu0 0.0
    %3926 = vmatprep.subr.mxu0 0.0
    %3927 = vmatpush1.msra.mxu0 0.0
    %3928 = vmatprep.subr.mxu0 0.0
    %3929 = vmatpush1.msra.mxu0 0.0
    %3930 = vmatprep.subr.mxu0 0.0
    %3931 = vmatpush1.msra.mxu0 0.0
    %3932 = vmatprep.subr.mxu0 0.0
    %3933 = vmatpush1.msra.mxu0 0.0
    %3934 = vmatprep.subr.mxu0 0.0
    %3935 = vmatpush1.msra.mxu0 0.0
    %3936 = vmatprep.subr.mxu0 0.0
    %3937 = vmatpush1.msra.mxu0 0.0
    %3938 = vmatprep.subr.mxu0 0.0
    %3939 = vmatpush1.msra.mxu0 0.0
    %3940 = vmatprep.subr.mxu0 0.0
    %3941 = vmatpush1.msra.mxu0 0.0
    %3942 = vmatprep.subr.mxu0 0.0
    %3943 = vmatpush1.msra.mxu0 0.0
    %3944 = vmatprep.subr.mxu0 0.0
    %3945 = vmatpush1.msra.mxu0 0.0
    %3946 = vmatprep.subr.mxu0 0.0
    %3947 = vmatpush1.msra.mxu0 0.0
    %3948 = vmatprep.subr.mxu0 0.0
    %3949 = vmatpush1.msra.mxu0 0.0
    %3950 = vmatprep.subr.mxu0 0.0
    %3951 = vmatpush1.msra.mxu0 0.0
    %3952 = vmatprep.subr.mxu0 0.0
    %3953 = vmatpush1.msra.mxu0 0.0
    %3954 = vmatprep.subr.mxu0 0.0
    %3955 = vmatpush1.msra.mxu0 0.0
    %3956 = vmatprep.subr.mxu0 0.0
    %3957 = vmatpush1.msra.mxu0 0.0
    %3958 = vmatprep.subr.mxu0 0.0
    %3959 = vmatpush1.msra.mxu0 0.0
    %3960 = vmatprep.subr.mxu0 0.0
    %3961 = vmatpush1.msra.mxu0 0.0
    %3962 = vmatprep.subr.mxu0 0.0
    %3963 = vmatpush1.msra.mxu0 0.0
    %3964 = vmatprep.subr.mxu0 0.0
    %3965 = vmatpush1.msra.mxu0 0.0
    %3966 = vmatprep.subr.mxu0 0.0
    %3967 = vmatpush1.msra.mxu0 0.0
    %3968 = vmatprep.mubr.f32.mxu0 0.0
    %3969 = vmatmul.mubr.f32.gmra.mrb[0].mxu0 %v3902
    %v3970 = vpop.f32.mrb[0].mxu0
    %v3971 = vadd.f32 0.0, %v3970
    %v3972 = vpop.f32.mrb[0].mxu0
    %v3973 = vadd.f32 0.0, %v3972
    %3974 = vdwg.mxu0
    %v3977 = vcombine.low %v3971, %v3973
    %v3979 = vunpack.c.l.s4 1966171168
    %v3980 = vunpack.c.0.s8 %v3979
    %v3981 = vlaneseq
    %v3982 = vshrl.u32 %v3981, 7
    %v3983 = vsub.s32 %v3980, %v3982
    %v3984 = vrot.slane %v3977, %v3983
    %v3986 = vunpack.c.l.s4 1966171168
    %v3987 = vunpack.c.0.s8 %v3986
    %v3988 = vlaneseq
    %v3989 = vshrl.u32 %v3988, 7
    %v3990 = vsub.s32 %v3987, %v3989
    %v3991 = vrot.slane %v3984, %v3990
    %v3993 = vadd.f32 %v3901, %v3991
    %v3994 = vxor.u32 %v3993, 2147483648
    %v3995 = vmul.f32 %v3994, 1.442695
    %v3996 = vpow.pop %v3995
    %v3997 = vadd.f32 %v3996, 1.0
    %v3998 = vrcp.pop %v3997
    %v3999 = vmul.f32 1.0, %v3998
    %v4000 = vtanh.pop %v3993
    %v4002 = vlaneseq
    %v4003 = vshrl.u32 %v4002, 7
    %v4004 = vsub.s32 0, %v4003
    %v4005 = vrot.slane %v4000, %v4004
    %v4006 = vlaneseq
    %v4007 = vshrl.u32 %v4006, 7
    %v4008 = vsub.s32 1, %v4007
    %v4009 = vrot.slane %v4000, %v4008
    %v4013 = vlaneseq
    %v4014 = vshrl.u32 %v4013, 7
    %v4015 = vsub.s32 0, %v4014
    %v4016 = vrot.slane %v3999, %v4015
    %v4017 = vlaneseq
    %v4018 = vshrl.u32 %v4017, 7
    %v4019 = vsub.s32 1, %v4018
    %v4020 = vrot.slane %v3999, %v4019
    %v4023 = vsel %vm300, %v4005, %v4016
    %v4024 = vsel %vm301, %v4009, %v4020
    %v4025 = vmul.f32 %v4023, %v3892
    %v4026 = vmul.f32 %v4023, %v4024
    %4028 = vrot.lane.b32.xlu0 %v4026, 64
    %v4029 = vpop.permute.xlu0 %4028
    %v4031 = vadd.f32 %v4025, %v4029
    %v4032 = vtanh.pop %v4031
    %v4033 = vmul.f32 %v4024, %v4032
    %4035 = vrot.lane.b32.xlu0 %v4033, 64
    %v4036 = vpop.permute.xlu0 %4035
    %4038 = vst.msk [vmem:[#allocation7 + $0x4] sm:$0x1] %vm441, %v4036
    %s4039 = scalar_lea.vmem [#allocation4], 5
    %v4040 = vld [vmem:[%s4039] ss:$8 sm:$0x3]
    %v4041 = vsel %vm303, %v4036, 0
    %4043 = vmatprep.subr.mxu0 %v3332
    %4044 = vmatpush1.msra.mxu0 %v3331
    %4045 = vmatprep.subr.mxu0 %v3334
    %4046 = vmatpush1.msra.mxu0 %v3333
    %4047 = vmatprep.subr.mxu0 %v3336
    %4048 = vmatpush1.msra.mxu0 %v3335
    %4049 = vmatprep.subr.mxu0 %v3338
    %4050 = vmatpush1.msra.mxu0 %v3337
    %4051 = vmatprep.subr.mxu0 %v3340
    %4052 = vmatpush1.msra.mxu0 %v3339
    %4053 = vmatprep.subr.mxu0 %v3342
    %4054 = vmatpush1.msra.mxu0 %v3341
    %4055 = vmatprep.subr.mxu0 %v3344
    %4056 = vmatpush1.msra.mxu0 %v3343
    %4057 = vmatprep.subr.mxu0 %v3346
    %4058 = vmatpush1.msra.mxu0 %v3345
    %4059 = vmatprep.subr.mxu0 0.0
    %4060 = vmatpush1.msra.mxu0 0.0
    %4061 = vmatprep.subr.mxu0 0.0
    %4062 = vmatpush1.msra.mxu0 0.0
    %4063 = vmatprep.subr.mxu0 0.0
    %4064 = vmatpush1.msra.mxu0 0.0
    %4065 = vmatprep.subr.mxu0 0.0
    %4066 = vmatpush1.msra.mxu0 0.0
    %4067 = vmatprep.subr.mxu0 0.0
    %4068 = vmatpush1.msra.mxu0 0.0
    %4069 = vmatprep.subr.mxu0 0.0
    %4070 = vmatpush1.msra.mxu0 0.0
    %4071 = vmatprep.subr.mxu0 0.0
    %4072 = vmatpush1.msra.mxu0 0.0
    %4073 = vmatprep.subr.mxu0 0.0
    %4074 = vmatpush1.msra.mxu0 0.0
    %4075 = vmatprep.subr.mxu0 0.0
    %4076 = vmatpush1.msra.mxu0 0.0
    %4077 = vmatprep.subr.mxu0 0.0
    %4078 = vmatpush1.msra.mxu0 0.0
    %4079 = vmatprep.subr.mxu0 0.0
    %4080 = vmatpush1.msra.mxu0 0.0
    %4081 = vmatprep.subr.mxu0 0.0
    %4082 = vmatpush1.msra.mxu0 0.0
    %4083 = vmatprep.subr.mxu0 0.0
    %4084 = vmatpush1.msra.mxu0 0.0
    %4085 = vmatprep.subr.mxu0 0.0
    %4086 = vmatpush1.msra.mxu0 0.0
    %4087 = vmatprep.subr.mxu0 0.0
    %4088 = vmatpush1.msra.mxu0 0.0
    %4089 = vmatprep.subr.mxu0 0.0
    %4090 = vmatpush1.msra.mxu0 0.0
    %4091 = vmatprep.subr.mxu0 0.0
    %4092 = vmatpush1.msra.mxu0 0.0
    %4093 = vmatprep.subr.mxu0 0.0
    %4094 = vmatpush1.msra.mxu0 0.0
    %4095 = vmatprep.subr.mxu0 0.0
    %4096 = vmatpush1.msra.mxu0 0.0
    %4097 = vmatprep.subr.mxu0 0.0
    %4098 = vmatpush1.msra.mxu0 0.0
    %4099 = vmatprep.subr.mxu0 0.0
    %4100 = vmatpush1.msra.mxu0 0.0
    %4101 = vmatprep.subr.mxu0 0.0
    %4102 = vmatpush1.msra.mxu0 0.0
    %4103 = vmatprep.subr.mxu0 0.0
    %4104 = vmatpush1.msra.mxu0 0.0
    %4105 = vmatprep.subr.mxu0 0.0
    %4106 = vmatpush1.msra.mxu0 0.0
    %4107 = vmatprep.mubr.f32.mxu0 0.0
    %4108 = vmatmul.mubr.f32.gmra.mrb[0].mxu0 %v4041
    %v4109 = vpop.f32.mrb[0].mxu0
    %v4110 = vadd.f32 0.0, %v4109
    %v4111 = vpop.f32.mrb[0].mxu0
    %v4112 = vadd.f32 0.0, %v4111
    %4113 = vdwg.mxu0
    %v4116 = vcombine.low %v4110, %v4112
    %v4118 = vunpack.c.l.s4 1966171168
    %v4119 = vunpack.c.0.s8 %v4118
    %v4120 = vlaneseq
    %v4121 = vshrl.u32 %v4120, 7
    %v4122 = vsub.s32 %v4119, %v4121
    %v4123 = vrot.slane %v4116, %v4122
    %v4125 = vunpack.c.l.s4 1966171168
    %v4126 = vunpack.c.0.s8 %v4125
    %v4127 = vlaneseq
    %v4128 = vshrl.u32 %v4127, 7
    %v4129 = vsub.s32 %v4126, %v4128
    %v4130 = vrot.slane %v4123, %v4129
    %v4132 = vadd.f32 %v4040, %v4130
    %v4133 = vxor.u32 %v4132, 2147483648
    %v4134 = vmul.f32 %v4133, 1.442695
    %v4135 = vpow.pop %v4134
    %v4136 = vadd.f32 %v4135, 1.0
    %v4137 = vrcp.pop %v4136
    %v4138 = vmul.f32 1.0, %v4137
    %v4139 = vtanh.pop %v4132
    %v4141 = vlaneseq
    %v4142 = vshrl.u32 %v4141, 7
    %v4143 = vsub.s32 0, %v4142
    %v4144 = vrot.slane %v4139, %v4143
    %v4145 = vlaneseq
    %v4146 = vshrl.u32 %v4145, 7
    %v4147 = vsub.s32 1, %v4146
    %v4148 = vrot.slane %v4139, %v4147
    %v4152 = vlaneseq
    %v4153 = vshrl.u32 %v4152, 7
    %v4154 = vsub.s32 0, %v4153
    %v4155 = vrot.slane %v4138, %v4154
    %v4156 = vlaneseq
    %v4157 = vshrl.u32 %v4156, 7
    %v4158 = vsub.s32 1, %v4157
    %v4159 = vrot.slane %v4138, %v4158
    %v4162 = vsel %vm300, %v4144, %v4155
    %v4163 = vsel %vm301, %v4148, %v4159
    %v4164 = vmul.f32 %v4162, %v4031
    %v4165 = vmul.f32 %v4162, %v4163
    %4167 = vrot.lane.b32.xlu0 %v4165, 64
    %v4168 = vpop.permute.xlu0 %4167
    %v4170 = vadd.f32 %v4164, %v4168
    %v4171 = vtanh.pop %v4170
    %v4172 = vmul.f32 %v4163, %v4171
    %4174 = vrot.lane.b32.xlu0 %v4172, 64
    %v4175 = vpop.permute.xlu0 %4174
    %4177 = vst.msk [vmem:[#allocation7 + $0x5] sm:$0x1] %vm441, %v4175
    %s4178 = scalar_lea.vmem [#allocation4], 6
    %v4179 = vld [vmem:[%s4178] ss:$8 sm:$0x3]
    %v4180 = vsel %vm303, %v4175, 0
    %4182 = vmatprep.subr.mxu0 %v3332
    %4183 = vmatpush1.msra.mxu0 %v3331
    %4184 = vmatprep.subr.mxu0 %v3334
    %4185 = vmatpush1.msra.mxu0 %v3333
    %4186 = vmatprep.subr.mxu0 %v3336
    %4187 = vmatpush1.msra.mxu0 %v3335
    %4188 = vmatprep.subr.mxu0 %v3338
    %4189 = vmatpush1.msra.mxu0 %v3337
    %4190 = vmatprep.subr.mxu0 %v3340
    %4191 = vmatpush1.msra.mxu0 %v3339
    %4192 = vmatprep.subr.mxu0 %v3342
    %4193 = vmatpush1.msra.mxu0 %v3341
    %4194 = vmatprep.subr.mxu0 %v3344
    %4195 = vmatpush1.msra.mxu0 %v3343
    %4196 = vmatprep.subr.mxu0 %v3346
    %4197 = vmatpush1.msra.mxu0 %v3345
    %4198 = vmatprep.subr.mxu0 0.0
    %4199 = vmatpush1.msra.mxu0 0.0
    %4200 = vmatprep.subr.mxu0 0.0
    %4201 = vmatpush1.msra.mxu0 0.0
    %4202 = vmatprep.subr.mxu0 0.0
    %4203 = vmatpush1.msra.mxu0 0.0
    %4204 = vmatprep.subr.mxu0 0.0
    %4205 = vmatpush1.msra.mxu0 0.0
    %4206 = vmatprep.subr.mxu0 0.0
    %4207 = vmatpush1.msra.mxu0 0.0
    %4208 = vmatprep.subr.mxu0 0.0
    %4209 = vmatpush1.msra.mxu0 0.0
    %4210 = vmatprep.subr.mxu0 0.0
    %4211 = vmatpush1.msra.mxu0 0.0
    %4212 = vmatprep.subr.mxu0 0.0
    %4213 = vmatpush1.msra.mxu0 0.0
    %4214 = vmatprep.subr.mxu0 0.0
    %4215 = vmatpush1.msra.mxu0 0.0
    %4216 = vmatprep.subr.mxu0 0.0
    %4217 = vmatpush1.msra.mxu0 0.0
    %4218 = vmatprep.subr.mxu0 0.0
    %4219 = vmatpush1.msra.mxu0 0.0
    %4220 = vmatprep.subr.mxu0 0.0
    %4221 = vmatpush1.msra.mxu0 0.0
    %4222 = vmatprep.subr.mxu0 0.0
    %4223 = vmatpush1.msra.mxu0 0.0
    %4224 = vmatprep.subr.mxu0 0.0
    %4225 = vmatpush1.msra.mxu0 0.0
    %4226 = vmatprep.subr.mxu0 0.0
    %4227 = vmatpush1.msra.mxu0 0.0
    %4228 = vmatprep.subr.mxu0 0.0
    %4229 = vmatpush1.msra.mxu0 0.0
    %4230 = vmatprep.subr.mxu0 0.0
    %4231 = vmatpush1.msra.mxu0 0.0
    %4232 = vmatprep.subr.mxu0 0.0
    %4233 = vmatpush1.msra.mxu0 0.0
    %4234 = vmatprep.subr.mxu0 0.0
    %4235 = vmatpush1.msra.mxu0 0.0
    %4236 = vmatprep.subr.mxu0 0.0
    %4237 = vmatpush1.msra.mxu0 0.0
    %4238 = vmatprep.subr.mxu0 0.0
    %4239 = vmatpush1.msra.mxu0 0.0
    %4240 = vmatprep.subr.mxu0 0.0
    %4241 = vmatpush1.msra.mxu0 0.0
    %4242 = vmatprep.subr.mxu0 0.0
    %4243 = vmatpush1.msra.mxu0 0.0
    %4244 = vmatprep.subr.mxu0 0.0
    %4245 = vmatpush1.msra.mxu0 0.0
    %4246 = vmatprep.mubr.f32.mxu0 0.0
    %4247 = vmatmul.mubr.f32.gmra.mrb[0].mxu0 %v4180
    %v4248 = vpop.f32.mrb[0].mxu0
    %v4249 = vadd.f32 0.0, %v4248
    %v4250 = vpop.f32.mrb[0].mxu0
    %v4251 = vadd.f32 0.0, %v4250
    %4252 = vdwg.mxu0
    %v4255 = vcombine.low %v4249, %v4251
    %v4257 = vunpack.c.l.s4 1966171168
    %v4258 = vunpack.c.0.s8 %v4257
    %v4259 = vlaneseq
    %v4260 = vshrl.u32 %v4259, 7
    %v4261 = vsub.s32 %v4258, %v4260
    %v4262 = vrot.slane %v4255, %v4261
    %v4264 = vunpack.c.l.s4 1966171168
    %v4265 = vunpack.c.0.s8 %v4264
    %v4266 = vlaneseq
    %v4267 = vshrl.u32 %v4266, 7
    %v4268 = vsub.s32 %v4265, %v4267
    %v4269 = vrot.slane %v4262, %v4268
    %v4271 = vadd.f32 %v4179, %v4269
    %v4272 = vxor.u32 %v4271, 2147483648
    %v4273 = vmul.f32 %v4272, 1.442695
    %v4274 = vpow.pop %v4273
    %v4275 = vadd.f32 %v4274, 1.0
    %v4276 = vrcp.pop %v4275
    %v4277 = vmul.f32 1.0, %v4276
    %v4278 = vtanh.pop %v4271
    %v4280 = vlaneseq
    %v4281 = vshrl.u32 %v4280, 7
    %v4282 = vsub.s32 0, %v4281
    %v4283 = vrot.slane %v4278, %v4282
    %v4284 = vlaneseq
    %v4285 = vshrl.u32 %v4284, 7
    %v4286 = vsub.s32 1, %v4285
    %v4287 = vrot.slane %v4278, %v4286
    %v4291 = vlaneseq
    %v4292 = vshrl.u32 %v4291, 7
    %v4293 = vsub.s32 0, %v4292
    %v4294 = vrot.slane %v4277, %v4293
    %v4295 = vlaneseq
    %v4296 = vshrl.u32 %v4295, 7
    %v4297 = vsub.s32 1, %v4296
    %v4298 = vrot.slane %v4277, %v4297
    %v4301 = vsel %vm300, %v4283, %v4294
    %v4302 = vsel %vm301, %v4287, %v4298
    %v4303 = vmul.f32 %v4301, %v4170
    %v4304 = vmul.f32 %v4301, %v4302
    %4306 = vrot.lane.b32.xlu0 %v4304, 64
    %v4307 = vpop.permute.xlu0 %4306
    %v4309 = vadd.f32 %v4303, %v4307
    %v4310 = vtanh.pop %v4309
    %v4311 = vmul.f32 %v4302, %v4310
    %4313 = vrot.lane.b32.xlu0 %v4311, 64
    %v4314 = vpop.permute.xlu0 %4313
    %4316 = vst.msk [vmem:[#allocation7 + $0x6] sm:$0x1] %vm441, %v4314
    %s4317 = scalar_lea.vmem [#allocation4], 7
    %v4318 = vld [vmem:[%s4317] ss:$8 sm:$0x3]
    %v4319 = vsel %vm303, %v4314, 0
    %4321 = vmatprep.subr.mxu0 %v3332
    %4322 = vmatpush1.msra.mxu0 %v3331
    %4323 = vmatprep.subr.mxu0 %v3334
    %4324 = vmatpush1.msra.mxu0 %v3333
    %4325 = vmatprep.subr.mxu0 %v3336
    %4326 = vmatpush1.msra.mxu0 %v3335
    %4327 = vmatprep.subr.mxu0 %v3338
    %4328 = vmatpush1.msra.mxu0 %v3337
    %4329 = vmatprep.subr.mxu0 %v3340
    %4330 = vmatpush1.msra.mxu0 %v3339
    %4331 = vmatprep.subr.mxu0 %v3342
    %4332 = vmatpush1.msra.mxu0 %v3341
    %4333 = vmatprep.subr.mxu0 %v3344
    %4334 = vmatpush1.msra.mxu0 %v3343
    %4335 = vmatprep.subr.mxu0 %v3346
    %4336 = vmatpush1.msra.mxu0 %v3345
    %4337 = vmatprep.subr.mxu0 0.0
    %4338 = vmatpush1.msra.mxu0 0.0
    %4339 = vmatprep.subr.mxu0 0.0
    %4340 = vmatpush1.msra.mxu0 0.0
    %4341 = vmatprep.subr.mxu0 0.0
    %4342 = vmatpush1.msra.mxu0 0.0
    %4343 = vmatprep.subr.mxu0 0.0
    %4344 = vmatpush1.msra.mxu0 0.0
    %4345 = vmatprep.subr.mxu0 0.0
    %4346 = vmatpush1.msra.mxu0 0.0
    %4347 = vmatprep.subr.mxu0 0.0
    %4348 = vmatpush1.msra.mxu0 0.0
    %4349 = vmatprep.subr.mxu0 0.0
    %4350 = vmatpush1.msra.mxu0 0.0
    %4351 = vmatprep.subr.mxu0 0.0
    %4352 = vmatpush1.msra.mxu0 0.0
    %4353 = vmatprep.subr.mxu0 0.0
    %4354 = vmatpush1.msra.mxu0 0.0
    %4355 = vmatprep.subr.mxu0 0.0
    %4356 = vmatpush1.msra.mxu0 0.0
    %4357 = vmatprep.subr.mxu0 0.0
    %4358 = vmatpush1.msra.mxu0 0.0
    %4359 = vmatprep.subr.mxu0 0.0
    %4360 = vmatpush1.msra.mxu0 0.0
    %4361 = vmatprep.subr.mxu0 0.0
    %4362 = vmatpush1.msra.mxu0 0.0
    %4363 = vmatprep.subr.mxu0 0.0
    %4364 = vmatpush1.msra.mxu0 0.0
    %4365 = vmatprep.subr.mxu0 0.0
    %4366 = vmatpush1.msra.mxu0 0.0
    %4367 = vmatprep.subr.mxu0 0.0
    %4368 = vmatpush1.msra.mxu0 0.0
    %4369 = vmatprep.subr.mxu0 0.0
    %4370 = vmatpush1.msra.mxu0 0.0
    %4371 = vmatprep.subr.mxu0 0.0
    %4372 = vmatpush1.msra.mxu0 0.0
    %4373 = vmatprep.subr.mxu0 0.0
    %4374 = vmatpush1.msra.mxu0 0.0
    %4375 = vmatprep.subr.mxu0 0.0
    %4376 = vmatpush1.msra.mxu0 0.0
    %4377 = vmatprep.subr.mxu0 0.0
    %4378 = vmatpush1.msra.mxu0 0.0
    %4379 = vmatprep.subr.mxu0 0.0
    %4380 = vmatpush1.msra.mxu0 0.0
    %4381 = vmatprep.subr.mxu0 0.0
    %4382 = vmatpush1.msra.mxu0 0.0
    %4383 = vmatprep.subr.mxu0 0.0
    %4384 = vmatpush1.msra.mxu0 0.0
    %4385 = vmatprep.mubr.f32.mxu0 0.0
    %4386 = vmatmul.mubr.f32.gmra.mrb[0].mxu0 %v4319
    %v4387 = vpop.f32.mrb[0].mxu0
    %v4388 = vadd.f32 0.0, %v4387
    %v4389 = vpop.f32.mrb[0].mxu0
    %v4390 = vadd.f32 0.0, %v4389
    %4391 = vdwg.mxu0
    %v4394 = vcombine.low %v4388, %v4390
    %v4396 = vunpack.c.l.s4 1966171168
    %v4397 = vunpack.c.0.s8 %v4396
    %v4398 = vlaneseq
    %v4399 = vshrl.u32 %v4398, 7
    %v4400 = vsub.s32 %v4397, %v4399
    %v4401 = vrot.slane %v4394, %v4400
    %v4403 = vunpack.c.l.s4 1966171168
    %v4404 = vunpack.c.0.s8 %v4403
    %v4405 = vlaneseq
    %v4406 = vshrl.u32 %v4405, 7
    %v4407 = vsub.s32 %v4404, %v4406
    %v4408 = vrot.slane %v4401, %v4407
    %v4410 = vadd.f32 %v4318, %v4408
    %v4411 = vxor.u32 %v4410, 2147483648
    %v4412 = vmul.f32 %v4411, 1.442695
    %v4413 = vpow.pop %v4412
    %v4414 = vadd.f32 %v4413, 1.0
    %v4415 = vrcp.pop %v4414
    %v4416 = vmul.f32 1.0, %v4415
    %v4417 = vtanh.pop %v4410
    %v4419 = vlaneseq
    %v4420 = vshrl.u32 %v4419, 7
    %v4421 = vsub.s32 0, %v4420
    %v4422 = vrot.slane %v4417, %v4421
    %v4423 = vlaneseq
    %v4424 = vshrl.u32 %v4423, 7
    %v4425 = vsub.s32 1, %v4424
    %v4426 = vrot.slane %v4417, %v4425
    %v4430 = vlaneseq
    %v4431 = vshrl.u32 %v4430, 7
    %v4432 = vsub.s32 0, %v4431
    %v4433 = vrot.slane %v4416, %v4432
    %v4434 = vlaneseq
    %v4435 = vshrl.u32 %v4434, 7
    %v4436 = vsub.s32 1, %v4435
    %v4437 = vrot.slane %v4416, %v4436
    %v4440 = vsel %vm300, %v4422, %v4433
    %v4441 = vsel %vm301, %v4426, %v4437
    %v4442 = vmul.f32 %v4440, %v4309
    %v4443 = vmul.f32 %v4440, %v4441
    %4445 = vrot.lane.b32.xlu0 %v4443, 64
    %v4446 = vpop.permute.xlu0 %4445
    %v4448 = vadd.f32 %v4442, %v4446
    %v4449 = vtanh.pop %v4448
    %v4450 = vmul.f32 %v4441, %v4449
    %4452 = vrot.lane.b32.xlu0 %v4450, 64
    %v4453 = vpop.permute.xlu0 %4452
    %4455 = vst.msk [vmem:[#allocation7 + $0x7] sm:$0x1] %vm441, %v4453
    %v4456 = vld [vmem:[#allocation7] sm:$0xff]
    %v4457 = vld [vmem:[#allocation19] sm:$0xff]
    %v4458 = vld [vmem:[#allocation19 + $0x8] sm:$0xff]
    %v4459 = vld [vmem:[#allocation19 + $0x10] sm:$0xff]
    %v4460 = vld [vmem:[#allocation19 + $0x18] sm:$0xff]
    %v4461 = vld [vmem:[#allocation19 + $0x20] sm:$0xff]
    %v4462 = vld [vmem:[#allocation19 + $0x28] sm:$0xff]
    %v4463 = vld [vmem:[#allocation19 + $0x30] sm:$0xff]
    %v4464 = vld [vmem:[#allocation19 + $0x38] sm:$0xff]
    %v4465 = vld [vmem:[%s14] sm:$0x1]
    %v4467 = vlaneseq
    %v4468 = vshrl.u32 %v4467, 7
    %v4469 = vsub.s32 0, %v4468
    %v4470 = vrot.slane %v4465, %v4469
    %v4473 = vsel %vm303, %v4456, 0
    %4475 = vmatprep.subr.mxu0 0.0
    %4476 = vmatpush1.msra.mxu0 %v4457
    %4477 = vmatprep.subr.mxu0 0.0
    %4478 = vmatpush1.msra.mxu0 %v4458
    %4479 = vmatprep.subr.mxu0 0.0
    %4480 = vmatpush1.msra.mxu0 %v4459
    %4481 = vmatprep.subr.mxu0 0.0
    %4482 = vmatpush1.msra.mxu0 %v4460
    %4483 = vmatprep.subr.mxu0 0.0
    %4484 = vmatpush1.msra.mxu0 %v4461
    %4485 = vmatprep.subr.mxu0 0.0
    %4486 = vmatpush1.msra.mxu0 %v4462
    %4487 = vmatprep.subr.mxu0 0.0
    %4488 = vmatpush1.msra.mxu0 %v4463
    %4489 = vmatprep.subr.mxu0 0.0
    %4490 = vmatpush1.msra.mxu0 %v4464
    %4491 = vmatprep.subr.mxu0 0.0
    %4492 = vmatpush1.msra.mxu0 0.0
    %4493 = vmatprep.subr.mxu0 0.0
    %4494 = vmatpush1.msra.mxu0 0.0
    %4495 = vmatprep.subr.mxu0 0.0
    %4496 = vmatpush1.msra.mxu0 0.0
    %4497 = vmatprep.subr.mxu0 0.0
    %4498 = vmatpush1.msra.mxu0 0.0
    %4499 = vmatprep.subr.mxu0 0.0
    %4500 = vmatpush1.msra.mxu0 0.0
    %4501 = vmatprep.subr.mxu0 0.0
    %4502 = vmatpush1.msra.mxu0 0.0
    %4503 = vmatprep.subr.mxu0 0.0
    %4504 = vmatpush1.msra.mxu0 0.0
    %4505 = vmatprep.subr.mxu0 0.0
    %4506 = vmatpush1.msra.mxu0 0.0
    %4507 = vmatprep.subr.mxu0 0.0
    %4508 = vmatpush1.msra.mxu0 0.0
    %4509 = vmatprep.subr.mxu0 0.0
    %4510 = vmatpush1.msra.mxu0 0.0
    %4511 = vmatprep.subr.mxu0 0.0
    %4512 = vmatpush1.msra.mxu0 0.0
    %4513 = vmatprep.subr.mxu0 0.0
    %4514 = vmatpush1.msra.mxu0 0.0
    %4515 = vmatprep.subr.mxu0 0.0
    %4516 = vmatpush1.msra.mxu0 0.0
    %4517 = vmatprep.subr.mxu0 0.0
    %4518 = vmatpush1.msra.mxu0 0.0
    %4519 = vmatprep.subr.mxu0 0.0
    %4520 = vmatpush1.msra.mxu0 0.0
    %4521 = vmatprep.subr.mxu0 0.0
    %4522 = vmatpush1.msra.mxu0 0.0
    %4523 = vmatprep.subr.mxu0 0.0
    %4524 = vmatpush1.msra.mxu0 0.0
    %4525 = vmatprep.subr.mxu0 0.0
    %4526 = vmatpush1.msra.mxu0 0.0
    %4527 = vmatprep.subr.mxu0 0.0
    %4528 = vmatpush1.msra.mxu0 0.0
    %4529 = vmatprep.subr.mxu0 0.0
    %4530 = vmatpush1.msra.mxu0 0.0
    %4531 = vmatprep.subr.mxu0 0.0
    %4532 = vmatpush1.msra.mxu0 0.0
    %4533 = vmatprep.subr.mxu0 0.0
    %4534 = vmatpush1.msra.mxu0 0.0
    %4535 = vmatprep.subr.mxu0 0.0
    %4536 = vmatpush1.msra.mxu0 0.0
    %4537 = vmatprep.subr.mxu0 0.0
    %4538 = vmatpush1.msra.mxu0 0.0
    %4539 = vmatprep.mubr.f32.mxu0 0.0
    %4540 = vmatmul.mubr.f32.gmra.mrb[0].mxu0 %v4473
    %v4541 = vpop.f32.mrb[0].mxu0
    %v4542 = vadd.f32 %v4470, %v4541
    %v4543 = vpop.f32.mrb[0].mxu0
    %4544 = vdwg.mxu0
    %4545 = vst [vmem:[%s15] sm:$0xff] %v4542
    // Predicated region
    $region94: #{_lambda_.1} parent=1 // pred_check
      _
    $region95: #{_lambda_.1} parent=1 // pred_check_branch
      %4547 = sbr.rel (0) target = $region97
    $region96: #{_lambda_.1} parent=1 // pred_region
      _
    $region97: #{_lambda_.1} parent=1 // pred_fallthru
      _
    // Predicated region
    $region98: #{_lambda_.1} parent=1 // pred_check
      _
    $region99: #{_lambda_.1} parent=1 // pred_check_branch
      %4549 = sbr.rel (0) target = $region101
    $region100: #{_lambda_.1} parent=1 // pred_region
      _
    $region101: #{_lambda_.1} parent=1 // pred_fallthru
      _
    %4550 = vsyncpa [#allocation9], 1
    %4551 = vsyncpa [#allocation11], 1
    %4552 = vsyncpa [#allocation14], 1
    %4553 = vsyncpa [#allocation17], 1
    %4554 = vsyncpa [#allocation20], 1

</llo_original>
